<compile_context>
chip_gen: v6e
topology: v6e:2x2x1
jax: 0.10.0
libtpu: 0.0.40
codegen_flags: <defaults>
</compile_context>

<pallas_src>
import functools

import jax
import jax.numpy as jnp
from jax.experimental import pallas as pl
from jax.experimental.pallas import tpu as pltpu

# ----------------------------- model hyper-params (small, synthetic) ---------
B, S = 2, 8            # batch, sequence length (S must be a power of two)
VOCAB = 64
D_MODEL = 32
NUM_HEADS = 4
HEAD_DIM = D_MODEL // NUM_HEADS     # must be a power of two
FFN = 64
NUM_ENC_LAYERS = 1
NUM_DEC_LAYERS = 1
NUM_LABELS = 13
EOS_ID = 2
DECODER_START_ID = 2
POS_OFFSET = 2          # BartLearnedPositionalEmbedding offset
LN_EPS = 1e-5
LANE = 128              # lane-dense padded width (residual stream width in-kernel)
NEG_INF = -1e9

assert S & (S - 1) == 0, "S must be a power of two"
assert HEAD_DIM & (HEAD_DIM - 1) == 0, "HEAD_DIM must be a power of two"
assert D_MODEL <= LANE and FFN <= LANE and NUM_LABELS <= LANE


# ----------------------------- fused Pallas kernel ---------------------------
def _bart_kernel(eos_ref, xenc_ref, xdec_ref, am_ref, w_ref, b_ref, out_ref,
                 *, n_enc, n_dec, seq, d_model, n_heads):
    """One batch element per grid step: full BART encoder+decoder+cls head.

    eos_ref : (B,)  int32 SMEM (scalar prefetch) — EOS position per row
    xenc/xdec_ref : (1, S, 128) f32   token+pos embeddings (lane-padded)
    am_ref  : (1, 1, H*S) f32         attention mask tiled per head block
    w_ref   : (n_blocks*128, 128) bf16 packed weight slab (static block offsets)
    b_ref   : (n_rows, 128) f32        packed bias / LN-param slab
    out_ref : (1, 1, 128) f32          relu(logits) at the EOS row (lane-padded)
    """
    S_ = seq
    D = d_model
    H = n_heads
    Dh = D // H
    P = LANE
    HS = H * S_
    lg_s = S_.bit_length() - 1
    lg_dh = Dh.bit_length() - 1
    scale = Dh ** -0.5
    f32 = jnp.float32
    b_id = pl.program_id(0)

    # ---- compile-time-structured constants (iota + shift/AND; no div/mod) ----
    lane = jax.lax.broadcasted_iota(jnp.int32, (1, P), 1)
    dmask = (lane < D).astype(f32)                       # true-feature lane mask

    rrow = jax.lax.broadcasted_iota(jnp.int32, (HS, P), 0)
    ncol = jax.lax.broadcasted_iota(jnp.int32, (HS, P), 1)
    # block-diagonal head selector for packed K / packed V (heads along sublane
    # blocks of size S, features along lanes)
    mv = (((rrow >> lg_s) == (ncol >> lg_dh)) & (ncol < D)).astype(f32)

    c1 = jax.lax.broadcasted_iota(jnp.int32, (HS, HS), 0)
    c2 = jax.lax.broadcasted_iota(jnp.int32, (HS, HS), 1)
    esum = ((c1 >> lg_s) == (c2 >> lg_s)).astype(f32)    # within-head-block ones

    qrow = jax.lax.broadcasted_iota(jnp.int32, (S_, HS), 0)
    kcol = jax.lax.broadcasted_iota(jnp.int32, (S_, HS), 1) & (S_ - 1)
    causal_mask = jnp.where(kcol <= qrow, 0.0, NEG_INF).astype(f32)   # (S, H*S)

    # runtime encoder key-padding mask (already tiled per head block)
    pad_mask = jnp.where(am_ref[0] > 0.5, 0.0, NEG_INF).astype(f32)   # (1, H*S)

    # ---- packed slab consumption (static offsets, consumption order fixed) ---
    wofs = [0]
    bofs = [0]

    def W():                                   # next (128,128) bf16 weight block
        r = wofs[0] * P
        wofs[0] += 1
        return w_ref[r:r + P, :]

    def Bv():                                  # next (1,128) f32 bias / LN row
        r = bofs[0]
        bofs[0] += 1
        return b_ref[r:r + 1, :]

    def mm(a, w):                              # bf16 MXU inputs, f32 accumulation
        return jnp.dot(a.astype(jnp.bfloat16), w.astype(jnp.bfloat16),
                       preferred_element_type=f32)

    def mm_t(a, bm):                           # (M,K) x (N,K) -> (M,N), no transpose
        return jax.lax.dot_general(a.astype(jnp.bfloat16), bm.astype(jnp.bfloat16),
                                   (((1,), (1,)), ((), ())),
                                   preferred_element_type=f32)

    def layer_norm(x):
        g = Bv()
        beta = Bv()
        mu = jnp.sum(x, axis=-1, keepdims=True) * (1.0 / D)
        xc = (x - mu) * dmask                  # keep padded lanes exactly zero
        var = jnp.sum(xc * xc, axis=-1, keepdims=True) * (1.0 / D)
        return xc * jax.lax.rsqrt(var + LN_EPS) * g + beta

    def attention(xq, xkv, mask):
        # Projections: full (S,128)x(128,128) matmuls (weights K/N zero-padded).
        q = (mm(xq, W()) + Bv()) * scale                  # (S, P)
        k = mm(xkv, W()) + Bv()
        v = mm(xkv, W()) + Bv()
        # Packed per-head K/V: replicate along sublanes, zero out other heads.
        k_pack = jnp.concatenate([k] * H, axis=0) * mv    # (H*S, P)
        v_pack = jnp.concatenate([v] * H, axis=0) * mv    # (H*S, P)
        s = mm_t(q, k_pack) + mask                        # (S, H*S) packed scores
        m = jnp.max(s, axis=-1, keepdims=True)            # global row max (safe)
        p = jnp.exp(s - m)
        denom = jnp.dot(p, esum, preferred_element_type=f32)   # per-block sums
        p = p * pl.reciprocal(denom, approx=True)
        ctx = mm(p, v_pack)                               # (S, P) merged heads
        return mm(ctx, W()) + Bv()                        # output projection

    def ffn(x):
        h = mm(x, W()) + Bv()
        # TODO(synk): HF BART uses exact erf GELU; tanh approximation used here.
        h = jax.nn.gelu(h, approximate=True)
        return mm(h, W()) + Bv()

    # ---- encoder -------------------------------------------------------------
    x = layer_norm(xenc_ref[0])                           # embedding layernorm
    for _ in range(n_enc):
        x = layer_norm(x + attention(x, x, pad_mask))
        x = layer_norm(x + ffn(x))
    enc_out = x

    # ---- decoder -------------------------------------------------------------
    y = layer_norm(xdec_ref[0])                           # embedding layernorm
    for _ in range(n_dec):
        y = layer_norm(y + attention(y, y, causal_mask))
        y = layer_norm(y + attention(y, enc_out, pad_mask))
        y = layer_norm(y + ffn(y))

    # ---- classification head, pooled at the per-row EOS position, ReLU -------
    h = jnp.tanh(mm(y, W()) + Bv())
    logits = jnp.maximum(mm(h, W()) + Bv(), 0.0)          # (S, P); lanes>=13 are 0
    eos = eos_ref[b_id]
    sel = (jax.lax.broadcasted_iota(jnp.int32, (S_, 1), 0) == eos).astype(f32)
    out_ref[0] = jnp.sum(logits * sel, axis=0, keepdims=True)   # (1, 128)


# ----------------------------- one-time parameter packing --------------------
def pack_params(params):
    """Pre-fuse / pad all weights ONCE (outside the per-call jitted forward)."""
    P = LANE

    def pad2(w):            # (K, N) -> (128, 128), zero-padded
        return jnp.pad(w, ((0, P - w.shape[0]), (0, P - w.shape[1])))

    def pad1(v):            # (N,) -> (128,), zero-padded
        return jnp.pad(v, ((0, P - v.shape[0]),))

    wblocks, brows = [], []

    def emit_attn(a):       # weight order Wq,Wk,Wv,Wo ; bias order bq,bk,bv,bo
        for wn, bn in (("wq", "bq"), ("wk", "bk"), ("wv", "bv"), ("wo", "bo")):
            wblocks.append(pad2(a[wn]))
            brows.append(pad1(a[bn]))

    def emit_ln(g, b):
        brows.append(pad1(g))
        brows.append(pad1(b))

    def emit_ffn(l):
        wblocks.append(pad2(l["fc1_w"])); brows.append(pad1(l["fc1_b"]))
        wblocks.append(pad2(l["fc2_w"])); brows.append(pad1(l["fc2_b"]))

    emit_ln(params["enc_ln_emb_g"], params["enc_ln_emb_b"])
    for l in params["enc_layers"]:
        emit_attn(l["self_attn"]); emit_ln(l["ln1_g"], l["ln1_b"])
        emit_ffn(l);               emit_ln(l["ln2_g"], l["ln2_b"])
    emit_ln(params["dec_ln_emb_g"], params["dec_ln_emb_b"])
    for l in params["dec_layers"]:
        emit_attn(l["self_attn"]);  emit_ln(l["ln1_g"], l["ln1_b"])
        emit_attn(l["cross_attn"]); emit_ln(l["ln2_g"], l["ln2_b"])
        emit_ffn(l);                emit_ln(l["ln3_g"], l["ln3_b"])
    wblocks.append(pad2(params["cls_dense_w"])); brows.append(pad1(params["cls_dense_b"]))
    wblocks.append(pad2(params["cls_out_w"]));   brows.append(pad1(params["cls_out_b"]))

    wslab = jnp.concatenate(wblocks, axis=0).astype(jnp.bfloat16)   # (n*128, 128)
    bslab = jnp.stack(brows, axis=0).astype(jnp.float32)            # (n_rows, 128)
    pad_rows = (-bslab.shape[0]) % 8
    if pad_rows:
        bslab = jnp.pad(bslab, ((0, pad_rows), (0, 0)))

    # lane-pad embedding tables so the per-call gathers already produce 128-lane rows
    emb = jnp.pad(params["embed_tokens"], ((0, 0), (0, P - D_MODEL)))
    enc_pos = jnp.pad(params["enc_pos"], ((0, 0), (0, P - D_MODEL)))
    dec_pos = jnp.pad(params["dec_pos"], ((0, 0), (0, P - D_MODEL)))
    return dict(wslab=wslab, bslab=bslab, emb=emb, enc_pos=enc_pos, dec_pos=dec_pos)


# ----------------------------- JAX wrapper ------------------------------------
def lsg_bart_eval_forward(packed, input_ids, attention_mask):
    """Eval path of LSGBARTEvalModel.forward (labels=None): relu(logits)."""
    Bt, St = input_ids.shape
    P = LANE
    HS = NUM_HEADS * St

    # decoder_input_ids = shift_tokens_right(input_ids)
    dec_ids = jnp.concatenate(
        [jnp.full((Bt, 1), DECODER_START_ID, input_ids.dtype), input_ids[:, :-1]],
        axis=1)

    # embedding gathers stay in XLA (data-dependent); tables are pre-lane-padded
    enc_pos = packed["enc_pos"][POS_OFFSET:POS_OFFSET + St]
    dec_pos = packed["dec_pos"][POS_OFFSET:POS_OFFSET + St]
    x_enc = packed["emb"][input_ids] + enc_pos[None]          # (B, S, 128)
    x_dec = packed["emb"][dec_ids] + dec_pos[None]            # (B, S, 128)

    # attention mask tiled per head block -> packed (B, 1, H*S)
    am_packed = jnp.tile(attention_mask.astype(jnp.float32), (1, NUM_HEADS))[:, None, :]

    # per-row (last) EOS position for classification pooling
    is_eos = input_ids == EOS_ID
    last_eos = St - 1 - jnp.argmax(is_eos[:, ::-1], axis=1)
    eos_pos = jnp.where(is_eos.any(axis=1), last_eos, St - 1).astype(jnp.int32)

    wslab = packed["wslab"]
    bslab = packed["bslab"]

    grid_spec = pltpu.PrefetchScalarGridSpec(
        num_scalar_prefetch=1,                # eos_pos -> SMEM
        grid=(Bt,),                           # one batch element per grid step
        in_specs=[
            pl.BlockSpec((1, St, P), lambda b, eos: (b, 0, 0)),    # x_enc
            pl.BlockSpec((1, St, P), lambda b, eos: (b, 0, 0)),    # x_dec
            pl.BlockSpec((1, 1, HS), lambda b, eos: (b, 0, 0)),    # attn mask row
            pl.BlockSpec(wslab.shape, lambda b, eos: (0, 0)),      # weight slab (resident)
            pl.BlockSpec(bslab.shape, lambda b, eos: (0, 0)),      # bias slab (resident)
        ],
        out_specs=pl.BlockSpec((1, 1, P), lambda b, eos: (b, 0, 0)),
    )

    kernel = functools.partial(
        _bart_kernel,
        n_enc=NUM_ENC_LAYERS, n_dec=NUM_DEC_LAYERS,
        seq=St, d_model=D_MODEL, n_heads=NUM_HEADS)

    out = pl.pallas_call(
        kernel,
        out_shape=jax.ShapeDtypeStruct((Bt, 1, P), jnp.float32),
        grid_spec=grid_spec,
        compiler_params=pltpu.CompilerParams(
            dimension_semantics=("parallel",)),   # 2 TCs on v7x; ~free on v5e/v6e
    )(eos_pos, x_enc, x_dec, am_packed, wslab, bslab)

    return out[:, 0, :NUM_LABELS]                                   # (B, 13)


# ----------------------------- deterministic parameter init ------------------
def _init_params(key):
    keys = iter(jax.random.split(key, 256))

    def w(shape):
        return (0.02 * jax.random.normal(next(keys), shape)).astype(jnp.float32)

    def zeros(n):
        return jnp.zeros((n,), jnp.float32)

    def ones(n):
        return jnp.ones((n,), jnp.float32)

    def attn_block():
        return dict(
            wq=w((D_MODEL, D_MODEL)), bq=zeros(D_MODEL),
            wk=w((D_MODEL, D_MODEL)), bk=zeros(D_MODEL),
            wv=w((D_MODEL, D_MODEL)), bv=zeros(D_MODEL),
            wo=w((D_MODEL, D_MODEL)), bo=zeros(D_MODEL),
        )

    def enc_layer():
        return dict(
            self_attn=attn_block(),
            ln1_g=ones(D_MODEL), ln1_b=zeros(D_MODEL),
            fc1_w=w((D_MODEL, FFN)), fc1_b=zeros(FFN),
            fc2_w=w((FFN, D_MODEL)), fc2_b=zeros(D_MODEL),
            ln2_g=ones(D_MODEL), ln2_b=zeros(D_MODEL),
        )

    def dec_layer():
        return dict(
            self_attn=attn_block(),
            ln1_g=ones(D_MODEL), ln1_b=zeros(D_MODEL),
            cross_attn=attn_block(),
            ln2_g=ones(D_MODEL), ln2_b=zeros(D_MODEL),
            fc1_w=w((D_MODEL, FFN)), fc1_b=zeros(FFN),
            fc2_w=w((FFN, D_MODEL)), fc2_b=zeros(D_MODEL),
            ln3_g=ones(D_MODEL), ln3_b=zeros(D_MODEL),
        )

    return dict(
        embed_tokens=w((VOCAB, D_MODEL)),                 # shared enc/dec embedding
        enc_pos=w((S + POS_OFFSET, D_MODEL)),
        dec_pos=w((S + POS_OFFSET, D_MODEL)),
        enc_ln_emb_g=ones(D_MODEL), enc_ln_emb_b=zeros(D_MODEL),
        dec_ln_emb_g=ones(D_MODEL), dec_ln_emb_b=zeros(D_MODEL),
        enc_layers=[enc_layer() for _ in range(NUM_ENC_LAYERS)],
        dec_layers=[dec_layer() for _ in range(NUM_DEC_LAYERS)],
        cls_dense_w=w((D_MODEL, D_MODEL)), cls_dense_b=zeros(D_MODEL),
        cls_out_w=w((D_MODEL, NUM_LABELS)), cls_out_b=zeros(NUM_LABELS),
    )


# ----------------------------- main -------------------------------------------
if __name__ == "__main__":
    key = jax.random.PRNGKey(0)
    k_param, k_ids = jax.random.split(key)

    params = _init_params(k_param)
    packed = pack_params(params)          # one-time prep (outside the jitted path)

    input_ids = jax.random.randint(k_ids, (B, S), 3, VOCAB, dtype=jnp.int32)
    input_ids = input_ids.at[:, -1].set(EOS_ID)           # EOS at last position
    attention_mask = jnp.ones((B, S), jnp.int32)

    fwd = jax.jit(lsg_bart_eval_forward)
    logits = fwd(packed, input_ids, attention_mask)
    logits = jax.block_until_ready(logits)

    assert logits.shape == (B, NUM_LABELS)
    assert logits.dtype == jnp.float32
    assert bool(jnp.all(logits >= 0.0))                   # ReLU output is non-negative
    print("KERNEL_OK")
</pallas_src>

<mosaic_0001>
module attributes {stable_mosaic.version = 11 : i64} {
  func.func @_bart_kernel(%arg0: i32, %arg1: memref<2xi32, #tpu.memory_space<smem>>, %arg2: memref<1x8x128xf32, #tpu.memory_space<vmem>>, %arg3: memref<1x8x128xf32, #tpu.memory_space<vmem>>, %arg4: memref<1x1x32xf32, #tpu.memory_space<vmem>>, %arg5: memref<2304x128xbf16, #tpu.memory_space<vmem>>, %arg6: memref<32x128xf32, #tpu.memory_space<vmem>>, %arg7: memref<1x1x128xf32, #tpu.memory_space<vmem>>) attributes {dimension_semantics = [#tpu.dimension_semantics<parallel>], iteration_bounds = array<i64: 2>, scalar_prefetch = 1 : i64, scratch_operands = 0 : i64, tpu.core_type = #tpu.core_type<tc>, window_params = [{transform_indices = @transform_0, window_bounds = array<i64: 1, 8, 128>}, {transform_indices = @transform_1, window_bounds = array<i64: 1, 8, 128>}, {transform_indices = @transform_2, window_bounds = array<i64: 1, 1, 32>}, {pipeline_mode = #tpu.pipeline_mode<synchronous>, transform_indices = @transform_3, window_bounds = array<i64: 2304, 128>}, {pipeline_mode = #tpu.pipeline_mode<synchronous>, transform_indices = @transform_4, window_bounds = array<i64: 32, 128>}, {transform_indices = @transform_5, window_bounds = array<i64: 1, 1, 128>}]} {
    %0 = tpu.iota {dimensions = array<i32: 1>} : vector<1x128xi32>
    %c32_i32 = arith.constant 32 : i32
    %1 = vector.broadcast %c32_i32 : i32 to vector<1x128xi32>
    %2 = arith.cmpi slt, %0, %1 : vector<1x128xi32>
    %3 = arith.extui %2 : vector<1x128xi1> to vector<1x128xi32>
    %4 = arith.sitofp %3 : vector<1x128xi32> to vector<1x128xf32>
    %5 = tpu.iota {dimensions = array<i32: 0>} : vector<32x128xi32>
    %6 = tpu.iota {dimensions = array<i32: 1>} : vector<32x128xi32>
    %c3_i32 = arith.constant 3 : i32
    %7 = vector.broadcast %c3_i32 : i32 to vector<32x128xi32>
    %8 = arith.shrsi %5, %7 : vector<32x128xi32>
    %c3_i32_0 = arith.constant 3 : i32
    %9 = vector.broadcast %c3_i32_0 : i32 to vector<32x128xi32>
    %10 = arith.shrsi %6, %9 : vector<32x128xi32>
    %11 = arith.cmpi eq, %8, %10 : vector<32x128xi32>
    %c32_i32_1 = arith.constant 32 : i32
    %12 = vector.broadcast %c32_i32_1 : i32 to vector<32x128xi32>
    %13 = arith.cmpi slt, %6, %12 : vector<32x128xi32>
    %14 = arith.andi %11, %13 : vector<32x128xi1>
    %15 = arith.extui %14 : vector<32x128xi1> to vector<32x128xi32>
    %16 = arith.sitofp %15 : vector<32x128xi32> to vector<32x128xf32>
    %17 = tpu.iota {dimensions = array<i32: 0>} : vector<32x32xi32>
    %18 = tpu.iota {dimensions = array<i32: 1>} : vector<32x32xi32>
    %c3_i32_2 = arith.constant 3 : i32
    %19 = vector.broadcast %c3_i32_2 : i32 to vector<32x32xi32>
    %20 = arith.shrsi %17, %19 : vector<32x32xi32>
    %c3_i32_3 = arith.constant 3 : i32
    %21 = vector.broadcast %c3_i32_3 : i32 to vector<32x32xi32>
    %22 = arith.shrsi %18, %21 : vector<32x32xi32>
    %23 = arith.cmpi eq, %20, %22 : vector<32x32xi32>
    %24 = arith.extui %23 : vector<32x32xi1> to vector<32x32xi32>
    %25 = arith.sitofp %24 : vector<32x32xi32> to vector<32x32xf32>
    %26 = tpu.iota {dimensions = array<i32: 0>} : vector<8x32xi32>
    %27 = tpu.iota {dimensions = array<i32: 1>} : vector<8x32xi32>
    %c7_i32 = arith.constant 7 : i32
    %28 = vector.broadcast %c7_i32 : i32 to vector<8x32xi32>
    %29 = arith.andi %27, %28 : vector<8x32xi32>
    %30 = arith.cmpi sle, %29, %26 : vector<8x32xi32>
    %cst = arith.constant 0.000000e+00 : f32
    %cst_4 = arith.constant -1.000000e+09 : f32
    %31 = vector.broadcast %cst : f32 to vector<8x32xf32>
    %32 = vector.broadcast %cst_4 : f32 to vector<8x32xf32>
    %33 = arith.select %30, %31, %32 : vector<8x32xi1>, vector<8x32xf32>
    %c0 = arith.constant 0 : index
    %c0_5 = arith.constant 0 : index
    %c0_6 = arith.constant 0 : index
    %34 = vector.load %arg4[%c0, %c0_5, %c0_6] : memref<1x1x32xf32, #tpu.memory_space<vmem>>, vector<1x1x32xf32>
    %35 = vector.shape_cast %34 : vector<1x1x32xf32> to vector<1x32xf32>
    %cst_7 = arith.constant 5.000000e-01 : f32
    %36 = vector.broadcast %cst_7 : f32 to vector<1x32xf32>
    %37 = arith.cmpf ogt, %35, %36 : vector<1x32xf32>
    %cst_8 = arith.constant 0.000000e+00 : f32
    %cst_9 = arith.constant -1.000000e+09 : f32
    %38 = vector.broadcast %cst_8 : f32 to vector<1x32xf32>
    %39 = vector.broadcast %cst_9 : f32 to vector<1x32xf32>
    %40 = arith.select %37, %38, %39 : vector<1x32xi1>, vector<1x32xf32>
    %c0_10 = arith.constant 0 : index
    %c0_11 = arith.constant 0 : index
    %c0_12 = arith.constant 0 : index
    %41 = vector.load %arg2[%c0_10, %c0_11, %c0_12] : memref<1x8x128xf32, #tpu.memory_space<vmem>>, vector<1x8x128xf32>
    %42 = vector.shape_cast %41 : vector<1x8x128xf32> to vector<8x128xf32>
    %c0_13 = arith.constant 0 : index
    %c0_14 = arith.constant 0 : index
    %43 = vector.load %arg6[%c0_13, %c0_14] : memref<32x128xf32, #tpu.memory_space<vmem>>, vector<1x128xf32>
    %c1 = arith.constant 1 : index
    %c0_15 = arith.constant 0 : index
    %44 = vector.load %arg6[%c1, %c0_15] : memref<32x128xf32, #tpu.memory_space<vmem>>, vector<1x128xf32>
    %cst_16 = arith.constant dense<0.000000e+00> : vector<8xf32>
    %45 = vector.multi_reduction <add>, %42, %cst_16 [1] : vector<8x128xf32> to vector<8xf32>
    %46 = vector.shape_cast %45 : vector<8xf32> to vector<8x1xf32>
    %cst_17 = arith.constant 3.125000e-02 : f32
    %47 = vector.broadcast %cst_17 : f32 to vector<8x1xf32>
    %48 = arith.mulf %46, %47 : vector<8x1xf32>
    %49 = vector.broadcast %48 : vector<8x1xf32> to vector<8x128xf32>
    %50 = arith.subf %42, %49 : vector<8x128xf32>
    %51 = vector.broadcast %4 : vector<1x128xf32> to vector<8x128xf32>
    %52 = arith.mulf %50, %51 : vector<8x128xf32>
    %53 = arith.mulf %52, %52 : vector<8x128xf32>
    %cst_18 = arith.constant dense<0.000000e+00> : vector<8xf32>
    %54 = vector.multi_reduction <add>, %53, %cst_18 [1] : vector<8x128xf32> to vector<8xf32>
    %55 = vector.shape_cast %54 : vector<8xf32> to vector<8x1xf32>
    %cst_19 = arith.constant 3.125000e-02 : f32
    %56 = vector.broadcast %cst_19 : f32 to vector<8x1xf32>
    %57 = arith.mulf %55, %56 : vector<8x1xf32>
    %cst_20 = arith.constant 9.99999974E-6 : f32
    %58 = vector.broadcast %cst_20 : f32 to vector<8x1xf32>
    %59 = arith.addf %57, %58 : vector<8x1xf32>
    %60 = math.rsqrt %59 : vector<8x1xf32>
    %61 = vector.broadcast %60 : vector<8x1xf32> to vector<8x128xf32>
    %62 = arith.mulf %52, %61 : vector<8x128xf32>
    %63 = vector.broadcast %43 : vector<1x128xf32> to vector<8x128xf32>
    %64 = arith.mulf %62, %63 : vector<8x128xf32>
    %65 = vector.broadcast %44 : vector<1x128xf32> to vector<8x128xf32>
    %66 = arith.addf %64, %65 : vector<8x128xf32>
    %c0_21 = arith.constant 0 : index
    %c0_22 = arith.constant 0 : index
    %67 = vector.load %arg5[%c0_21, %c0_22] : memref<2304x128xbf16, #tpu.memory_space<vmem>>, vector<128x128xbf16>
    %68 = arith.truncf %66 : vector<8x128xf32> to vector<8x128xbf16>
    %cst_23 = arith.constant dense<0.000000e+00> : vector<8x128xf32>
    %69 = tpu.matmul %68, %67, %cst_23 {dimension_numbers = #tpu.dot_dimension_numbers<[1], [0], [0], [1], [0, 0, 1, 1], [], []>} : vector<8x128xbf16>, vector<128x128xbf16>, vector<8x128xf32> -> vector<8x128xf32>
    %c2 = arith.constant 2 : index
    %c0_24 = arith.constant 0 : index
    %70 = vector.load %arg6[%c2, %c0_24] : memref<32x128xf32, #tpu.memory_space<vmem>>, vector<1x128xf32>
    %71 = vector.broadcast %70 : vector<1x128xf32> to vector<8x128xf32>
    %72 = arith.addf %69, %71 : vector<8x128xf32>
    %cst_25 = arith.constant 0.353553385 : f32
    %73 = vector.broadcast %cst_25 : f32 to vector<8x128xf32>
    %74 = arith.mulf %72, %73 : vector<8x128xf32>
    %c128 = arith.constant 128 : index
    %c0_26 = arith.constant 0 : index
    %75 = vector.load %arg5[%c128, %c0_26] : memref<2304x128xbf16, #tpu.memory_space<vmem>>, vector<128x128xbf16>
    %76 = arith.truncf %66 : vector<8x128xf32> to vector<8x128xbf16>
    %cst_27 = arith.constant dense<0.000000e+00> : vector<8x128xf32>
    %77 = tpu.matmul %76, %75, %cst_27 {dimension_numbers = #tpu.dot_dimension_numbers<[1], [0], [0], [1], [0, 0, 1, 1], [], []>} : vector<8x128xbf16>, vector<128x128xbf16>, vector<8x128xf32> -> vector<8x128xf32>
    %c3 = arith.constant 3 : index
    %c0_28 = arith.constant 0 : index
    %78 = vector.load %arg6[%c3, %c0_28] : memref<32x128xf32, #tpu.memory_space<vmem>>, vector<1x128xf32>
    %79 = vector.broadcast %78 : vector<1x128xf32> to vector<8x128xf32>
    %80 = arith.addf %77, %79 : vector<8x128xf32>
    %c256 = arith.constant 256 : index
    %c0_29 = arith.constant 0 : index
    %81 = vector.load %arg5[%c256, %c0_29] : memref<2304x128xbf16, #tpu.memory_space<vmem>>, vector<128x128xbf16>
    %82 = arith.truncf %66 : vector<8x128xf32> to vector<8x128xbf16>
    %cst_30 = arith.constant dense<0.000000e+00> : vector<8x128xf32>
    %83 = tpu.matmul %82, %81, %cst_30 {dimension_numbers = #tpu.dot_dimension_numbers<[1], [0], [0], [1], [0, 0, 1, 1], [], []>} : vector<8x128xbf16>, vector<128x128xbf16>, vector<8x128xf32> -> vector<8x128xf32>
    %c4 = arith.constant 4 : index
    %c0_31 = arith.constant 0 : index
    %84 = vector.load %arg6[%c4, %c0_31] : memref<32x128xf32, #tpu.memory_space<vmem>>, vector<1x128xf32>
    %85 = vector.broadcast %84 : vector<1x128xf32> to vector<8x128xf32>
    %86 = arith.addf %83, %85 : vector<8x128xf32>
    %87 = tpu.concatenate %80, %80, %80, %80 in 0 : vector<8x128xf32>, vector<8x128xf32>, vector<8x128xf32>, vector<8x128xf32> -> vector<32x128xf32>
    %88 = arith.mulf %87, %16 : vector<32x128xf32>
    %89 = tpu.concatenate %86, %86, %86, %86 in 0 : vector<8x128xf32>, vector<8x128xf32>, vector<8x128xf32>, vector<8x128xf32> -> vector<32x128xf32>
    %90 = arith.mulf %89, %16 : vector<32x128xf32>
    %91 = arith.truncf %74 : vector<8x128xf32> to vector<8x128xbf16>
    %92 = arith.truncf %88 : vector<32x128xf32> to vector<32x128xbf16>
    %cst_32 = arith.constant dense<0.000000e+00> : vector<8x32xf32>
    %93 = tpu.matmul %91, %92, %cst_32 {dimension_numbers = #tpu.dot_dimension_numbers<[1], [1], [0], [0], [0, 0, 1, 0], [], []>} : vector<8x128xbf16>, vector<32x128xbf16>, vector<8x32xf32> -> vector<8x32xf32>
    %94 = vector.broadcast %40 : vector<1x32xf32> to vector<8x32xf32>
    %95 = arith.addf %93, %94 : vector<8x32xf32>
    %cst_33 = arith.constant dense<0xFF800000> : vector<8xf32>
    %96 = vector.multi_reduction <maximumf>, %95, %cst_33 [1] : vector<8x32xf32> to vector<8xf32>
    %97 = vector.shape_cast %96 : vector<8xf32> to vector<8x1xf32>
    %98 = vector.broadcast %97 : vector<8x1xf32> to vector<8x32xf32>
    %99 = arith.subf %95, %98 : vector<8x32xf32>
    %100 = math.exp %99 : vector<8x32xf32>
    %cst_34 = arith.constant dense<0.000000e+00> : vector<8x32xf32>
    %101 = tpu.matmul %100, %25, %cst_34 {dimension_numbers = #tpu.dot_dimension_numbers<[1], [0], [0], [1], [0, 0, 1, 1], [], []>} : vector<8x32xf32>, vector<32x32xf32>, vector<8x32xf32> -> vector<8x32xf32>
    %102 = tpu.reciprocal %101 {approx = true} : vector<8x32xf32> -> vector<8x32xf32>
    %103 = arith.mulf %100, %102 : vector<8x32xf32>
    %104 = arith.truncf %103 : vector<8x32xf32> to vector<8x32xbf16>
    %105 = arith.truncf %90 : vector<32x128xf32> to vector<32x128xbf16>
    %cst_35 = arith.constant dense<0.000000e+00> : vector<8x128xf32>
    %106 = tpu.matmul %104, %105, %cst_35 {dimension_numbers = #tpu.dot_dimension_numbers<[1], [0], [0], [1], [0, 0, 1, 1], [], []>} : vector<8x32xbf16>, vector<32x128xbf16>, vector<8x128xf32> -> vector<8x128xf32>
    %c384 = arith.constant 384 : index
    %c0_36 = arith.constant 0 : index
    %107 = vector.load %arg5[%c384, %c0_36] : memref<2304x128xbf16, #tpu.memory_space<vmem>>, vector<128x128xbf16>
    %108 = arith.truncf %106 : vector<8x128xf32> to vector<8x128xbf16>
    %cst_37 = arith.constant dense<0.000000e+00> : vector<8x128xf32>
    %109 = tpu.matmul %108, %107, %cst_37 {dimension_numbers = #tpu.dot_dimension_numbers<[1], [0], [0], [1], [0, 0, 1, 1], [], []>} : vector<8x128xbf16>, vector<128x128xbf16>, vector<8x128xf32> -> vector<8x128xf32>
    %c5 = arith.constant 5 : index
    %c0_38 = arith.constant 0 : index
    %110 = vector.load %arg6[%c5, %c0_38] : memref<32x128xf32, #tpu.memory_space<vmem>>, vector<1x128xf32>
    %111 = vector.broadcast %110 : vector<1x128xf32> to vector<8x128xf32>
    %112 = arith.addf %109, %111 : vector<8x128xf32>
    %113 = arith.addf %66, %112 : vector<8x128xf32>
    %c6 = arith.constant 6 : index
    %c0_39 = arith.constant 0 : index
    %114 = vector.load %arg6[%c6, %c0_39] : memref<32x128xf32, #tpu.memory_space<vmem>>, vector<1x128xf32>
    %c7 = arith.constant 7 : index
    %c0_40 = arith.constant 0 : index
    %115 = vector.load %arg6[%c7, %c0_40] : memref<32x128xf32, #tpu.memory_space<vmem>>, vector<1x128xf32>
    %cst_41 = arith.constant dense<0.000000e+00> : vector<8xf32>
    %116 = vector.multi_reduction <add>, %113, %cst_41 [1] : vector<8x128xf32> to vector<8xf32>
    %117 = vector.shape_cast %116 : vector<8xf32> to vector<8x1xf32>
    %cst_42 = arith.constant 3.125000e-02 : f32
    %118 = vector.broadcast %cst_42 : f32 to vector<8x1xf32>
    %119 = arith.mulf %117, %118 : vector<8x1xf32>
    %120 = vector.broadcast %119 : vector<8x1xf32> to vector<8x128xf32>
    %121 = arith.subf %113, %120 : vector<8x128xf32>
    %122 = vector.broadcast %4 : vector<1x128xf32> to vector<8x128xf32>
    %123 = arith.mulf %121, %122 : vector<8x128xf32>
    %124 = arith.mulf %123, %123 : vector<8x128xf32>
    %cst_43 = arith.constant dense<0.000000e+00> : vector<8xf32>
    %125 = vector.multi_reduction <add>, %124, %cst_43 [1] : vector<8x128xf32> to vector<8xf32>
    %126 = vector.shape_cast %125 : vector<8xf32> to vector<8x1xf32>
    %cst_44 = arith.constant 3.125000e-02 : f32
    %127 = vector.broadcast %cst_44 : f32 to vector<8x1xf32>
    %128 = arith.mulf %126, %127 : vector<8x1xf32>
    %cst_45 = arith.constant 9.99999974E-6 : f32
    %129 = vector.broadcast %cst_45 : f32 to vector<8x1xf32>
    %130 = arith.addf %128, %129 : vector<8x1xf32>
    %131 = math.rsqrt %130 : vector<8x1xf32>
    %132 = vector.broadcast %131 : vector<8x1xf32> to vector<8x128xf32>
    %133 = arith.mulf %123, %132 : vector<8x128xf32>
    %134 = vector.broadcast %114 : vector<1x128xf32> to vector<8x128xf32>
    %135 = arith.mulf %133, %134 : vector<8x128xf32>
    %136 = vector.broadcast %115 : vector<1x128xf32> to vector<8x128xf32>
    %137 = arith.addf %135, %136 : vector<8x128xf32>
    %c512 = arith.constant 512 : index
    %c0_46 = arith.constant 0 : index
    %138 = vector.load %arg5[%c512, %c0_46] : memref<2304x128xbf16, #tpu.memory_space<vmem>>, vector<128x128xbf16>
    %139 = arith.truncf %137 : vector<8x128xf32> to vector<8x128xbf16>
    %cst_47 = arith.constant dense<0.000000e+00> : vector<8x128xf32>
    %140 = tpu.matmul %139, %138, %cst_47 {dimension_numbers = #tpu.dot_dimension_numbers<[1], [0], [0], [1], [0, 0, 1, 1], [], []>} : vector<8x128xbf16>, vector<128x128xbf16>, vector<8x128xf32> -> vector<8x128xf32>
    %c8 = arith.constant 8 : index
    %c0_48 = arith.constant 0 : index
    %141 = vector.load %arg6[%c8, %c0_48] : memref<32x128xf32, #tpu.memory_space<vmem>>, vector<1x128xf32>
    %142 = vector.broadcast %141 : vector<1x128xf32> to vector<8x128xf32>
    %143 = arith.addf %140, %142 : vector<8x128xf32>
    %144 = arith.mulf %143, %143 : vector<8x128xf32>
    %145 = arith.mulf %143, %144 : vector<8x128xf32>
    %cst_49 = arith.constant 4.471500e-02 : f32
    %146 = vector.broadcast %cst_49 : f32 to vector<8x128xf32>
    %147 = arith.mulf %146, %145 : vector<8x128xf32>
    %148 = arith.addf %143, %147 : vector<8x128xf32>
    %cst_50 = arith.constant 0.797884583 : f32
    %149 = vector.broadcast %cst_50 : f32 to vector<8x128xf32>
    %150 = arith.mulf %149, %148 : vector<8x128xf32>
    %151 = math.tanh %150 : vector<8x128xf32>
    %cst_51 = arith.constant 1.000000e+00 : f32
    %152 = vector.broadcast %cst_51 : f32 to vector<8x128xf32>
    %153 = arith.addf %152, %151 : vector<8x128xf32>
    %cst_52 = arith.constant 5.000000e-01 : f32
    %154 = vector.broadcast %cst_52 : f32 to vector<8x128xf32>
    %155 = arith.mulf %154, %153 : vector<8x128xf32>
    %156 = arith.mulf %143, %155 : vector<8x128xf32>
    %c640 = arith.constant 640 : index
    %c0_53 = arith.constant 0 : index
    %157 = vector.load %arg5[%c640, %c0_53] : memref<2304x128xbf16, #tpu.memory_space<vmem>>, vector<128x128xbf16>
    %158 = arith.truncf %156 : vector<8x128xf32> to vector<8x128xbf16>
    %cst_54 = arith.constant dense<0.000000e+00> : vector<8x128xf32>
    %159 = tpu.matmul %158, %157, %cst_54 {dimension_numbers = #tpu.dot_dimension_numbers<[1], [0], [0], [1], [0, 0, 1, 1], [], []>} : vector<8x128xbf16>, vector<128x128xbf16>, vector<8x128xf32> -> vector<8x128xf32>
    %c9 = arith.constant 9 : index
    %c0_55 = arith.constant 0 : index
    %160 = vector.load %arg6[%c9, %c0_55] : memref<32x128xf32, #tpu.memory_space<vmem>>, vector<1x128xf32>
    %161 = vector.broadcast %160 : vector<1x128xf32> to vector<8x128xf32>
    %162 = arith.addf %159, %161 : vector<8x128xf32>
    %163 = arith.addf %137, %162 : vector<8x128xf32>
    %c10 = arith.constant 10 : index
    %c0_56 = arith.constant 0 : index
    %164 = vector.load %arg6[%c10, %c0_56] : memref<32x128xf32, #tpu.memory_space<vmem>>, vector<1x128xf32>
    %c11 = arith.constant 11 : index
    %c0_57 = arith.constant 0 : index
    %165 = vector.load %arg6[%c11, %c0_57] : memref<32x128xf32, #tpu.memory_space<vmem>>, vector<1x128xf32>
    %cst_58 = arith.constant dense<0.000000e+00> : vector<8xf32>
    %166 = vector.multi_reduction <add>, %163, %cst_58 [1] : vector<8x128xf32> to vector<8xf32>
    %167 = vector.shape_cast %166 : vector<8xf32> to vector<8x1xf32>
    %cst_59 = arith.constant 3.125000e-02 : f32
    %168 = vector.broadcast %cst_59 : f32 to vector<8x1xf32>
    %169 = arith.mulf %167, %168 : vector<8x1xf32>
    %170 = vector.broadcast %169 : vector<8x1xf32> to vector<8x128xf32>
    %171 = arith.subf %163, %170 : vector<8x128xf32>
    %172 = vector.broadcast %4 : vector<1x128xf32> to vector<8x128xf32>
    %173 = arith.mulf %171, %172 : vector<8x128xf32>
    %174 = arith.mulf %173, %173 : vector<8x128xf32>
    %cst_60 = arith.constant dense<0.000000e+00> : vector<8xf32>
    %175 = vector.multi_reduction <add>, %174, %cst_60 [1] : vector<8x128xf32> to vector<8xf32>
    %176 = vector.shape_cast %175 : vector<8xf32> to vector<8x1xf32>
    %cst_61 = arith.constant 3.125000e-02 : f32
    %177 = vector.broadcast %cst_61 : f32 to vector<8x1xf32>
    %178 = arith.mulf %176, %177 : vector<8x1xf32>
    %cst_62 = arith.constant 9.99999974E-6 : f32
    %179 = vector.broadcast %cst_62 : f32 to vector<8x1xf32>
    %180 = arith.addf %178, %179 : vector<8x1xf32>
    %181 = math.rsqrt %180 : vector<8x1xf32>
    %182 = vector.broadcast %181 : vector<8x1xf32> to vector<8x128xf32>
    %183 = arith.mulf %173, %182 : vector<8x128xf32>
    %184 = vector.broadcast %164 : vector<1x128xf32> to vector<8x128xf32>
    %185 = arith.mulf %183, %184 : vector<8x128xf32>
    %186 = vector.broadcast %165 : vector<1x128xf32> to vector<8x128xf32>
    %187 = arith.addf %185, %186 : vector<8x128xf32>
    %c0_63 = arith.constant 0 : index
    %c0_64 = arith.constant 0 : index
    %c0_65 = arith.constant 0 : index
    %188 = vector.load %arg3[%c0_63, %c0_64, %c0_65] : memref<1x8x128xf32, #tpu.memory_space<vmem>>, vector<1x8x128xf32>
    %189 = vector.shape_cast %188 : vector<1x8x128xf32> to vector<8x128xf32>
    %c12 = arith.constant 12 : index
    %c0_66 = arith.constant 0 : index
    %190 = vector.load %arg6[%c12, %c0_66] : memref<32x128xf32, #tpu.memory_space<vmem>>, vector<1x128xf32>
    %c13 = arith.constant 13 : index
    %c0_67 = arith.constant 0 : index
    %191 = vector.load %arg6[%c13, %c0_67] : memref<32x128xf32, #tpu.memory_space<vmem>>, vector<1x128xf32>
    %cst_68 = arith.constant dense<0.000000e+00> : vector<8xf32>
    %192 = vector.multi_reduction <add>, %189, %cst_68 [1] : vector<8x128xf32> to vector<8xf32>
    %193 = vector.shape_cast %192 : vector<8xf32> to vector<8x1xf32>
    %cst_69 = arith.constant 3.125000e-02 : f32
    %194 = vector.broadcast %cst_69 : f32 to vector<8x1xf32>
    %195 = arith.mulf %193, %194 : vector<8x1xf32>
    %196 = vector.broadcast %195 : vector<8x1xf32> to vector<8x128xf32>
    %197 = arith.subf %189, %196 : vector<8x128xf32>
    %198 = vector.broadcast %4 : vector<1x128xf32> to vector<8x128xf32>
    %199 = arith.mulf %197, %198 : vector<8x128xf32>
    %200 = arith.mulf %199, %199 : vector<8x128xf32>
    %cst_70 = arith.constant dense<0.000000e+00> : vector<8xf32>
    %201 = vector.multi_reduction <add>, %200, %cst_70 [1] : vector<8x128xf32> to vector<8xf32>
    %202 = vector.shape_cast %201 : vector<8xf32> to vector<8x1xf32>
    %cst_71 = arith.constant 3.125000e-02 : f32
    %203 = vector.broadcast %cst_71 : f32 to vector<8x1xf32>
    %204 = arith.mulf %202, %203 : vector<8x1xf32>
    %cst_72 = arith.constant 9.99999974E-6 : f32
    %205 = vector.broadcast %cst_72 : f32 to vector<8x1xf32>
    %206 = arith.addf %204, %205 : vector<8x1xf32>
    %207 = math.rsqrt %206 : vector<8x1xf32>
    %208 = vector.broadcast %207 : vector<8x1xf32> to vector<8x128xf32>
    %209 = arith.mulf %199, %208 : vector<8x128xf32>
    %210 = vector.broadcast %190 : vector<1x128xf32> to vector<8x128xf32>
    %211 = arith.mulf %209, %210 : vector<8x128xf32>
    %212 = vector.broadcast %191 : vector<1x128xf32> to vector<8x128xf32>
    %213 = arith.addf %211, %212 : vector<8x128xf32>
    %c768 = arith.constant 768 : index
    %c0_73 = arith.constant 0 : index
    %214 = vector.load %arg5[%c768, %c0_73] : memref<2304x128xbf16, #tpu.memory_space<vmem>>, vector<128x128xbf16>
    %215 = arith.truncf %213 : vector<8x128xf32> to vector<8x128xbf16>
    %cst_74 = arith.constant dense<0.000000e+00> : vector<8x128xf32>
    %216 = tpu.matmul %215, %214, %cst_74 {dimension_numbers = #tpu.dot_dimension_numbers<[1], [0], [0], [1], [0, 0, 1, 1], [], []>} : vector<8x128xbf16>, vector<128x128xbf16>, vector<8x128xf32> -> vector<8x128xf32>
    %c14 = arith.constant 14 : index
    %c0_75 = arith.constant 0 : index
    %217 = vector.load %arg6[%c14, %c0_75] : memref<32x128xf32, #tpu.memory_space<vmem>>, vector<1x128xf32>
    %218 = vector.broadcast %217 : vector<1x128xf32> to vector<8x128xf32>
    %219 = arith.addf %216, %218 : vector<8x128xf32>
    %cst_76 = arith.constant 0.353553385 : f32
    %220 = vector.broadcast %cst_76 : f32 to vector<8x128xf32>
    %221 = arith.mulf %219, %220 : vector<8x128xf32>
    %c896 = arith.constant 896 : index
    %c0_77 = arith.constant 0 : index
    %222 = vector.load %arg5[%c896, %c0_77] : memref<2304x128xbf16, #tpu.memory_space<vmem>>, vector<128x128xbf16>
    %223 = arith.truncf %213 : vector<8x128xf32> to vector<8x128xbf16>
    %cst_78 = arith.constant dense<0.000000e+00> : vector<8x128xf32>
    %224 = tpu.matmul %223, %222, %cst_78 {dimension_numbers = #tpu.dot_dimension_numbers<[1], [0], [0], [1], [0, 0, 1, 1], [], []>} : vector<8x128xbf16>, vector<128x128xbf16>, vector<8x128xf32> -> vector<8x128xf32>
    %c15 = arith.constant 15 : index
    %c0_79 = arith.constant 0 : index
    %225 = vector.load %arg6[%c15, %c0_79] : memref<32x128xf32, #tpu.memory_space<vmem>>, vector<1x128xf32>
    %226 = vector.broadcast %225 : vector<1x128xf32> to vector<8x128xf32>
    %227 = arith.addf %224, %226 : vector<8x128xf32>
    %c1024 = arith.constant 1024 : index
    %c0_80 = arith.constant 0 : index
    %228 = vector.load %arg5[%c1024, %c0_80] : memref<2304x128xbf16, #tpu.memory_space<vmem>>, vector<128x128xbf16>
    %229 = arith.truncf %213 : vector<8x128xf32> to vector<8x128xbf16>
    %cst_81 = arith.constant dense<0.000000e+00> : vector<8x128xf32>
    %230 = tpu.matmul %229, %228, %cst_81 {dimension_numbers = #tpu.dot_dimension_numbers<[1], [0], [0], [1], [0, 0, 1, 1], [], []>} : vector<8x128xbf16>, vector<128x128xbf16>, vector<8x128xf32> -> vector<8x128xf32>
    %c16 = arith.constant 16 : index
    %c0_82 = arith.constant 0 : index
    %231 = vector.load %arg6[%c16, %c0_82] : memref<32x128xf32, #tpu.memory_space<vmem>>, vector<1x128xf32>
    %232 = vector.broadcast %231 : vector<1x128xf32> to vector<8x128xf32>
    %233 = arith.addf %230, %232 : vector<8x128xf32>
    %234 = tpu.concatenate %227, %227, %227, %227 in 0 : vector<8x128xf32>, vector<8x128xf32>, vector<8x128xf32>, vector<8x128xf32> -> vector<32x128xf32>
    %235 = arith.mulf %234, %16 : vector<32x128xf32>
    %236 = tpu.concatenate %233, %233, %233, %233 in 0 : vector<8x128xf32>, vector<8x128xf32>, vector<8x128xf32>, vector<8x128xf32> -> vector<32x128xf32>
    %237 = arith.mulf %236, %16 : vector<32x128xf32>
    %238 = arith.truncf %221 : vector<8x128xf32> to vector<8x128xbf16>
    %239 = arith.truncf %235 : vector<32x128xf32> to vector<32x128xbf16>
    %cst_83 = arith.constant dense<0.000000e+00> : vector<8x32xf32>
    %240 = tpu.matmul %238, %239, %cst_83 {dimension_numbers = #tpu.dot_dimension_numbers<[1], [1], [0], [0], [0, 0, 1, 0], [], []>} : vector<8x128xbf16>, vector<32x128xbf16>, vector<8x32xf32> -> vector<8x32xf32>
    %241 = arith.addf %240, %33 : vector<8x32xf32>
    %cst_84 = arith.constant dense<0xFF800000> : vector<8xf32>
    %242 = vector.multi_reduction <maximumf>, %241, %cst_84 [1] : vector<8x32xf32> to vector<8xf32>
    %243 = vector.shape_cast %242 : vector<8xf32> to vector<8x1xf32>
    %244 = vector.broadcast %243 : vector<8x1xf32> to vector<8x32xf32>
    %245 = arith.subf %241, %244 : vector<8x32xf32>
    %246 = math.exp %245 : vector<8x32xf32>
    %cst_85 = arith.constant dense<0.000000e+00> : vector<8x32xf32>
    %247 = tpu.matmul %246, %25, %cst_85 {dimension_numbers = #tpu.dot_dimension_numbers<[1], [0], [0], [1], [0, 0, 1, 1], [], []>} : vector<8x32xf32>, vector<32x32xf32>, vector<8x32xf32> -> vector<8x32xf32>
    %248 = tpu.reciprocal %247 {approx = true} : vector<8x32xf32> -> vector<8x32xf32>
    %249 = arith.mulf %246, %248 : vector<8x32xf32>
    %250 = arith.truncf %249 : vector<8x32xf32> to vector<8x32xbf16>
    %251 = arith.truncf %237 : vector<32x128xf32> to vector<32x128xbf16>
    %cst_86 = arith.constant dense<0.000000e+00> : vector<8x128xf32>
    %252 = tpu.matmul %250, %251, %cst_86 {dimension_numbers = #tpu.dot_dimension_numbers<[1], [0], [0], [1], [0, 0, 1, 1], [], []>} : vector<8x32xbf16>, vector<32x128xbf16>, vector<8x128xf32> -> vector<8x128xf32>
    %c1152 = arith.constant 1152 : index
    %c0_87 = arith.constant 0 : index
    %253 = vector.load %arg5[%c1152, %c0_87] : memref<2304x128xbf16, #tpu.memory_space<vmem>>, vector<128x128xbf16>
    %254 = arith.truncf %252 : vector<8x128xf32> to vector<8x128xbf16>
    %cst_88 = arith.constant dense<0.000000e+00> : vector<8x128xf32>
    %255 = tpu.matmul %254, %253, %cst_88 {dimension_numbers = #tpu.dot_dimension_numbers<[1], [0], [0], [1], [0, 0, 1, 1], [], []>} : vector<8x128xbf16>, vector<128x128xbf16>, vector<8x128xf32> -> vector<8x128xf32>
    %c17 = arith.constant 17 : index
    %c0_89 = arith.constant 0 : index
    %256 = vector.load %arg6[%c17, %c0_89] : memref<32x128xf32, #tpu.memory_space<vmem>>, vector<1x128xf32>
    %257 = vector.broadcast %256 : vector<1x128xf32> to vector<8x128xf32>
    %258 = arith.addf %255, %257 : vector<8x128xf32>
    %259 = arith.addf %213, %258 : vector<8x128xf32>
    %c18 = arith.constant 18 : index
    %c0_90 = arith.constant 0 : index
    %260 = vector.load %arg6[%c18, %c0_90] : memref<32x128xf32, #tpu.memory_space<vmem>>, vector<1x128xf32>
    %c19 = arith.constant 19 : index
    %c0_91 = arith.constant 0 : index
    %261 = vector.load %arg6[%c19, %c0_91] : memref<32x128xf32, #tpu.memory_space<vmem>>, vector<1x128xf32>
    %cst_92 = arith.constant dense<0.000000e+00> : vector<8xf32>
    %262 = vector.multi_reduction <add>, %259, %cst_92 [1] : vector<8x128xf32> to vector<8xf32>
    %263 = vector.shape_cast %262 : vector<8xf32> to vector<8x1xf32>
    %cst_93 = arith.constant 3.125000e-02 : f32
    %264 = vector.broadcast %cst_93 : f32 to vector<8x1xf32>
    %265 = arith.mulf %263, %264 : vector<8x1xf32>
    %266 = vector.broadcast %265 : vector<8x1xf32> to vector<8x128xf32>
    %267 = arith.subf %259, %266 : vector<8x128xf32>
    %268 = vector.broadcast %4 : vector<1x128xf32> to vector<8x128xf32>
    %269 = arith.mulf %267, %268 : vector<8x128xf32>
    %270 = arith.mulf %269, %269 : vector<8x128xf32>
    %cst_94 = arith.constant dense<0.000000e+00> : vector<8xf32>
    %271 = vector.multi_reduction <add>, %270, %cst_94 [1] : vector<8x128xf32> to vector<8xf32>
    %272 = vector.shape_cast %271 : vector<8xf32> to vector<8x1xf32>
    %cst_95 = arith.constant 3.125000e-02 : f32
    %273 = vector.broadcast %cst_95 : f32 to vector<8x1xf32>
    %274 = arith.mulf %272, %273 : vector<8x1xf32>
    %cst_96 = arith.constant 9.99999974E-6 : f32
    %275 = vector.broadcast %cst_96 : f32 to vector<8x1xf32>
    %276 = arith.addf %274, %275 : vector<8x1xf32>
    %277 = math.rsqrt %276 : vector<8x1xf32>
    %278 = vector.broadcast %277 : vector<8x1xf32> to vector<8x128xf32>
    %279 = arith.mulf %269, %278 : vector<8x128xf32>
    %280 = vector.broadcast %260 : vector<1x128xf32> to vector<8x128xf32>
    %281 = arith.mulf %279, %280 : vector<8x128xf32>
    %282 = vector.broadcast %261 : vector<1x128xf32> to vector<8x128xf32>
    %283 = arith.addf %281, %282 : vector<8x128xf32>
    %c1280 = arith.constant 1280 : index
    %c0_97 = arith.constant 0 : index
    %284 = vector.load %arg5[%c1280, %c0_97] : memref<2304x128xbf16, #tpu.memory_space<vmem>>, vector<128x128xbf16>
    %285 = arith.truncf %283 : vector<8x128xf32> to vector<8x128xbf16>
    %cst_98 = arith.constant dense<0.000000e+00> : vector<8x128xf32>
    %286 = tpu.matmul %285, %284, %cst_98 {dimension_numbers = #tpu.dot_dimension_numbers<[1], [0], [0], [1], [0, 0, 1, 1], [], []>} : vector<8x128xbf16>, vector<128x128xbf16>, vector<8x128xf32> -> vector<8x128xf32>
    %c20 = arith.constant 20 : index
    %c0_99 = arith.constant 0 : index
    %287 = vector.load %arg6[%c20, %c0_99] : memref<32x128xf32, #tpu.memory_space<vmem>>, vector<1x128xf32>
    %288 = vector.broadcast %287 : vector<1x128xf32> to vector<8x128xf32>
    %289 = arith.addf %286, %288 : vector<8x128xf32>
    %cst_100 = arith.constant 0.353553385 : f32
    %290 = vector.broadcast %cst_100 : f32 to vector<8x128xf32>
    %291 = arith.mulf %289, %290 : vector<8x128xf32>
    %c1408 = arith.constant 1408 : index
    %c0_101 = arith.constant 0 : index
    %292 = vector.load %arg5[%c1408, %c0_101] : memref<2304x128xbf16, #tpu.memory_space<vmem>>, vector<128x128xbf16>
    %293 = arith.truncf %187 : vector<8x128xf32> to vector<8x128xbf16>
    %cst_102 = arith.constant dense<0.000000e+00> : vector<8x128xf32>
    %294 = tpu.matmul %293, %292, %cst_102 {dimension_numbers = #tpu.dot_dimension_numbers<[1], [0], [0], [1], [0, 0, 1, 1], [], []>} : vector<8x128xbf16>, vector<128x128xbf16>, vector<8x128xf32> -> vector<8x128xf32>
    %c21 = arith.constant 21 : index
    %c0_103 = arith.constant 0 : index
    %295 = vector.load %arg6[%c21, %c0_103] : memref<32x128xf32, #tpu.memory_space<vmem>>, vector<1x128xf32>
    %296 = vector.broadcast %295 : vector<1x128xf32> to vector<8x128xf32>
    %297 = arith.addf %294, %296 : vector<8x128xf32>
    %c1536 = arith.constant 1536 : index
    %c0_104 = arith.constant 0 : index
    %298 = vector.load %arg5[%c1536, %c0_104] : memref<2304x128xbf16, #tpu.memory_space<vmem>>, vector<128x128xbf16>
    %299 = arith.truncf %187 : vector<8x128xf32> to vector<8x128xbf16>
    %cst_105 = arith.constant dense<0.000000e+00> : vector<8x128xf32>
    %300 = tpu.matmul %299, %298, %cst_105 {dimension_numbers = #tpu.dot_dimension_numbers<[1], [0], [0], [1], [0, 0, 1, 1], [], []>} : vector<8x128xbf16>, vector<128x128xbf16>, vector<8x128xf32> -> vector<8x128xf32>
    %c22 = arith.constant 22 : index
    %c0_106 = arith.constant 0 : index
    %301 = vector.load %arg6[%c22, %c0_106] : memref<32x128xf32, #tpu.memory_space<vmem>>, vector<1x128xf32>
    %302 = vector.broadcast %301 : vector<1x128xf32> to vector<8x128xf32>
    %303 = arith.addf %300, %302 : vector<8x128xf32>
    %304 = tpu.concatenate %297, %297, %297, %297 in 0 : vector<8x128xf32>, vector<8x128xf32>, vector<8x128xf32>, vector<8x128xf32> -> vector<32x128xf32>
    %305 = arith.mulf %304, %16 : vector<32x128xf32>
    %306 = tpu.concatenate %303, %303, %303, %303 in 0 : vector<8x128xf32>, vector<8x128xf32>, vector<8x128xf32>, vector<8x128xf32> -> vector<32x128xf32>
    %307 = arith.mulf %306, %16 : vector<32x128xf32>
    %308 = arith.truncf %291 : vector<8x128xf32> to vector<8x128xbf16>
    %309 = arith.truncf %305 : vector<32x128xf32> to vector<32x128xbf16>
    %cst_107 = arith.constant dense<0.000000e+00> : vector<8x32xf32>
    %310 = tpu.matmul %308, %309, %cst_107 {dimension_numbers = #tpu.dot_dimension_numbers<[1], [1], [0], [0], [0, 0, 1, 0], [], []>} : vector<8x128xbf16>, vector<32x128xbf16>, vector<8x32xf32> -> vector<8x32xf32>
    %311 = vector.broadcast %40 : vector<1x32xf32> to vector<8x32xf32>
    %312 = arith.addf %310, %311 : vector<8x32xf32>
    %cst_108 = arith.constant dense<0xFF800000> : vector<8xf32>
    %313 = vector.multi_reduction <maximumf>, %312, %cst_108 [1] : vector<8x32xf32> to vector<8xf32>
    %314 = vector.shape_cast %313 : vector<8xf32> to vector<8x1xf32>
    %315 = vector.broadcast %314 : vector<8x1xf32> to vector<8x32xf32>
    %316 = arith.subf %312, %315 : vector<8x32xf32>
    %317 = math.exp %316 : vector<8x32xf32>
    %cst_109 = arith.constant dense<0.000000e+00> : vector<8x32xf32>
    %318 = tpu.matmul %317, %25, %cst_109 {dimension_numbers = #tpu.dot_dimension_numbers<[1], [0], [0], [1], [0, 0, 1, 1], [], []>} : vector<8x32xf32>, vector<32x32xf32>, vector<8x32xf32> -> vector<8x32xf32>
    %319 = tpu.reciprocal %318 {approx = true} : vector<8x32xf32> -> vector<8x32xf32>
    %320 = arith.mulf %317, %319 : vector<8x32xf32>
    %321 = arith.truncf %320 : vector<8x32xf32> to vector<8x32xbf16>
    %322 = arith.truncf %307 : vector<32x128xf32> to vector<32x128xbf16>
    %cst_110 = arith.constant dense<0.000000e+00> : vector<8x128xf32>
    %323 = tpu.matmul %321, %322, %cst_110 {dimension_numbers = #tpu.dot_dimension_numbers<[1], [0], [0], [1], [0, 0, 1, 1], [], []>} : vector<8x32xbf16>, vector<32x128xbf16>, vector<8x128xf32> -> vector<8x128xf32>
    %c1664 = arith.constant 1664 : index
    %c0_111 = arith.constant 0 : index
    %324 = vector.load %arg5[%c1664, %c0_111] : memref<2304x128xbf16, #tpu.memory_space<vmem>>, vector<128x128xbf16>
    %325 = arith.truncf %323 : vector<8x128xf32> to vector<8x128xbf16>
    %cst_112 = arith.constant dense<0.000000e+00> : vector<8x128xf32>
    %326 = tpu.matmul %325, %324, %cst_112 {dimension_numbers = #tpu.dot_dimension_numbers<[1], [0], [0], [1], [0, 0, 1, 1], [], []>} : vector<8x128xbf16>, vector<128x128xbf16>, vector<8x128xf32> -> vector<8x128xf32>
    %c23 = arith.constant 23 : index
    %c0_113 = arith.constant 0 : index
    %327 = vector.load %arg6[%c23, %c0_113] : memref<32x128xf32, #tpu.memory_space<vmem>>, vector<1x128xf32>
    %328 = vector.broadcast %327 : vector<1x128xf32> to vector<8x128xf32>
    %329 = arith.addf %326, %328 : vector<8x128xf32>
    %330 = arith.addf %283, %329 : vector<8x128xf32>
    %c24 = arith.constant 24 : index
    %c0_114 = arith.constant 0 : index
    %331 = vector.load %arg6[%c24, %c0_114] : memref<32x128xf32, #tpu.memory_space<vmem>>, vector<1x128xf32>
    %c25 = arith.constant 25 : index
    %c0_115 = arith.constant 0 : index
    %332 = vector.load %arg6[%c25, %c0_115] : memref<32x128xf32, #tpu.memory_space<vmem>>, vector<1x128xf32>
    %cst_116 = arith.constant dense<0.000000e+00> : vector<8xf32>
    %333 = vector.multi_reduction <add>, %330, %cst_116 [1] : vector<8x128xf32> to vector<8xf32>
    %334 = vector.shape_cast %333 : vector<8xf32> to vector<8x1xf32>
    %cst_117 = arith.constant 3.125000e-02 : f32
    %335 = vector.broadcast %cst_117 : f32 to vector<8x1xf32>
    %336 = arith.mulf %334, %335 : vector<8x1xf32>
    %337 = vector.broadcast %336 : vector<8x1xf32> to vector<8x128xf32>
    %338 = arith.subf %330, %337 : vector<8x128xf32>
    %339 = vector.broadcast %4 : vector<1x128xf32> to vector<8x128xf32>
    %340 = arith.mulf %338, %339 : vector<8x128xf32>
    %341 = arith.mulf %340, %340 : vector<8x128xf32>
    %cst_118 = arith.constant dense<0.000000e+00> : vector<8xf32>
    %342 = vector.multi_reduction <add>, %341, %cst_118 [1] : vector<8x128xf32> to vector<8xf32>
    %343 = vector.shape_cast %342 : vector<8xf32> to vector<8x1xf32>
    %cst_119 = arith.constant 3.125000e-02 : f32
    %344 = vector.broadcast %cst_119 : f32 to vector<8x1xf32>
    %345 = arith.mulf %343, %344 : vector<8x1xf32>
    %cst_120 = arith.constant 9.99999974E-6 : f32
    %346 = vector.broadcast %cst_120 : f32 to vector<8x1xf32>
    %347 = arith.addf %345, %346 : vector<8x1xf32>
    %348 = math.rsqrt %347 : vector<8x1xf32>
    %349 = vector.broadcast %348 : vector<8x1xf32> to vector<8x128xf32>
    %350 = arith.mulf %340, %349 : vector<8x128xf32>
    %351 = vector.broadcast %331 : vector<1x128xf32> to vector<8x128xf32>
    %352 = arith.mulf %350, %351 : vector<8x128xf32>
    %353 = vector.broadcast %332 : vector<1x128xf32> to vector<8x128xf32>
    %354 = arith.addf %352, %353 : vector<8x128xf32>
    %c1792 = arith.constant 1792 : index
    %c0_121 = arith.constant 0 : index
    %355 = vector.load %arg5[%c1792, %c0_121] : memref<2304x128xbf16, #tpu.memory_space<vmem>>, vector<128x128xbf16>
    %356 = arith.truncf %354 : vector<8x128xf32> to vector<8x128xbf16>
    %cst_122 = arith.constant dense<0.000000e+00> : vector<8x128xf32>
    %357 = tpu.matmul %356, %355, %cst_122 {dimension_numbers = #tpu.dot_dimension_numbers<[1], [0], [0], [1], [0, 0, 1, 1], [], []>} : vector<8x128xbf16>, vector<128x128xbf16>, vector<8x128xf32> -> vector<8x128xf32>
    %c26 = arith.constant 26 : index
    %c0_123 = arith.constant 0 : index
    %358 = vector.load %arg6[%c26, %c0_123] : memref<32x128xf32, #tpu.memory_space<vmem>>, vector<1x128xf32>
    %359 = vector.broadcast %358 : vector<1x128xf32> to vector<8x128xf32>
    %360 = arith.addf %357, %359 : vector<8x128xf32>
    %361 = arith.mulf %360, %360 : vector<8x128xf32>
    %362 = arith.mulf %360, %361 : vector<8x128xf32>
    %cst_124 = arith.constant 4.471500e-02 : f32
    %363 = vector.broadcast %cst_124 : f32 to vector<8x128xf32>
    %364 = arith.mulf %363, %362 : vector<8x128xf32>
    %365 = arith.addf %360, %364 : vector<8x128xf32>
    %cst_125 = arith.constant 0.797884583 : f32
    %366 = vector.broadcast %cst_125 : f32 to vector<8x128xf32>
    %367 = arith.mulf %366, %365 : vector<8x128xf32>
    %368 = math.tanh %367 : vector<8x128xf32>
    %cst_126 = arith.constant 1.000000e+00 : f32
    %369 = vector.broadcast %cst_126 : f32 to vector<8x128xf32>
    %370 = arith.addf %369, %368 : vector<8x128xf32>
    %cst_127 = arith.constant 5.000000e-01 : f32
    %371 = vector.broadcast %cst_127 : f32 to vector<8x128xf32>
    %372 = arith.mulf %371, %370 : vector<8x128xf32>
    %373 = arith.mulf %360, %372 : vector<8x128xf32>
    %c1920 = arith.constant 1920 : index
    %c0_128 = arith.constant 0 : index
    %374 = vector.load %arg5[%c1920, %c0_128] : memref<2304x128xbf16, #tpu.memory_space<vmem>>, vector<128x128xbf16>
    %375 = arith.truncf %373 : vector<8x128xf32> to vector<8x128xbf16>
    %cst_129 = arith.constant dense<0.000000e+00> : vector<8x128xf32>
    %376 = tpu.matmul %375, %374, %cst_129 {dimension_numbers = #tpu.dot_dimension_numbers<[1], [0], [0], [1], [0, 0, 1, 1], [], []>} : vector<8x128xbf16>, vector<128x128xbf16>, vector<8x128xf32> -> vector<8x128xf32>
    %c27 = arith.constant 27 : index
    %c0_130 = arith.constant 0 : index
    %377 = vector.load %arg6[%c27, %c0_130] : memref<32x128xf32, #tpu.memory_space<vmem>>, vector<1x128xf32>
    %378 = vector.broadcast %377 : vector<1x128xf32> to vector<8x128xf32>
    %379 = arith.addf %376, %378 : vector<8x128xf32>
    %380 = arith.addf %354, %379 : vector<8x128xf32>
    %c28 = arith.constant 28 : index
    %c0_131 = arith.constant 0 : index
    %381 = vector.load %arg6[%c28, %c0_131] : memref<32x128xf32, #tpu.memory_space<vmem>>, vector<1x128xf32>
    %c29 = arith.constant 29 : index
    %c0_132 = arith.constant 0 : index
    %382 = vector.load %arg6[%c29, %c0_132] : memref<32x128xf32, #tpu.memory_space<vmem>>, vector<1x128xf32>
    %cst_133 = arith.constant dense<0.000000e+00> : vector<8xf32>
    %383 = vector.multi_reduction <add>, %380, %cst_133 [1] : vector<8x128xf32> to vector<8xf32>
    %384 = vector.shape_cast %383 : vector<8xf32> to vector<8x1xf32>
    %cst_134 = arith.constant 3.125000e-02 : f32
    %385 = vector.broadcast %cst_134 : f32 to vector<8x1xf32>
    %386 = arith.mulf %384, %385 : vector<8x1xf32>
    %387 = vector.broadcast %386 : vector<8x1xf32> to vector<8x128xf32>
    %388 = arith.subf %380, %387 : vector<8x128xf32>
    %389 = vector.broadcast %4 : vector<1x128xf32> to vector<8x128xf32>
    %390 = arith.mulf %388, %389 : vector<8x128xf32>
    %391 = arith.mulf %390, %390 : vector<8x128xf32>
    %cst_135 = arith.constant dense<0.000000e+00> : vector<8xf32>
    %392 = vector.multi_reduction <add>, %391, %cst_135 [1] : vector<8x128xf32> to vector<8xf32>
    %393 = vector.shape_cast %392 : vector<8xf32> to vector<8x1xf32>
    %cst_136 = arith.constant 3.125000e-02 : f32
    %394 = vector.broadcast %cst_136 : f32 to vector<8x1xf32>
    %395 = arith.mulf %393, %394 : vector<8x1xf32>
    %cst_137 = arith.constant 9.99999974E-6 : f32
    %396 = vector.broadcast %cst_137 : f32 to vector<8x1xf32>
    %397 = arith.addf %395, %396 : vector<8x1xf32>
    %398 = math.rsqrt %397 : vector<8x1xf32>
    %399 = vector.broadcast %398 : vector<8x1xf32> to vector<8x128xf32>
    %400 = arith.mulf %390, %399 : vector<8x128xf32>
    %401 = vector.broadcast %381 : vector<1x128xf32> to vector<8x128xf32>
    %402 = arith.mulf %400, %401 : vector<8x128xf32>
    %403 = vector.broadcast %382 : vector<1x128xf32> to vector<8x128xf32>
    %404 = arith.addf %402, %403 : vector<8x128xf32>
    %c2048 = arith.constant 2048 : index
    %c0_138 = arith.constant 0 : index
    %405 = vector.load %arg5[%c2048, %c0_138] : memref<2304x128xbf16, #tpu.memory_space<vmem>>, vector<128x128xbf16>
    %406 = arith.truncf %404 : vector<8x128xf32> to vector<8x128xbf16>
    %cst_139 = arith.constant dense<0.000000e+00> : vector<8x128xf32>
    %407 = tpu.matmul %406, %405, %cst_139 {dimension_numbers = #tpu.dot_dimension_numbers<[1], [0], [0], [1], [0, 0, 1, 1], [], []>} : vector<8x128xbf16>, vector<128x128xbf16>, vector<8x128xf32> -> vector<8x128xf32>
    %c30 = arith.constant 30 : index
    %c0_140 = arith.constant 0 : index
    %408 = vector.load %arg6[%c30, %c0_140] : memref<32x128xf32, #tpu.memory_space<vmem>>, vector<1x128xf32>
    %409 = vector.broadcast %408 : vector<1x128xf32> to vector<8x128xf32>
    %410 = arith.addf %407, %409 : vector<8x128xf32>
    %411 = math.tanh %410 : vector<8x128xf32>
    %c2176 = arith.constant 2176 : index
    %c0_141 = arith.constant 0 : index
    %412 = vector.load %arg5[%c2176, %c0_141] : memref<2304x128xbf16, #tpu.memory_space<vmem>>, vector<128x128xbf16>
    %413 = arith.truncf %411 : vector<8x128xf32> to vector<8x128xbf16>
    %cst_142 = arith.constant dense<0.000000e+00> : vector<8x128xf32>
    %414 = tpu.matmul %413, %412, %cst_142 {dimension_numbers = #tpu.dot_dimension_numbers<[1], [0], [0], [1], [0, 0, 1, 1], [], []>} : vector<8x128xbf16>, vector<128x128xbf16>, vector<8x128xf32> -> vector<8x128xf32>
    %c31 = arith.constant 31 : index
    %c0_143 = arith.constant 0 : index
    %415 = vector.load %arg6[%c31, %c0_143] : memref<32x128xf32, #tpu.memory_space<vmem>>, vector<1x128xf32>
    %416 = vector.broadcast %415 : vector<1x128xf32> to vector<8x128xf32>
    %417 = arith.addf %414, %416 : vector<8x128xf32>
    %cst_144 = arith.constant 0.000000e+00 : f32
    %418 = vector.broadcast %cst_144 : f32 to vector<8x128xf32>
    %419 = arith.maximumf %417, %418 : vector<8x128xf32>
    %420 = arith.index_cast %arg0 : i32 to index
    %421 = memref.load %arg1[%420] : memref<2xi32, #tpu.memory_space<smem>>
    %422 = tpu.iota {dimensions = array<i32: 0>} : vector<8x1xi32>
    %423 = vector.broadcast %421 : i32 to vector<8x1xi32>
    %424 = arith.cmpi eq, %422, %423 : vector<8x1xi32>
    %425 = arith.extui %424 : vector<8x1xi1> to vector<8x1xi32>
    %426 = arith.sitofp %425 : vector<8x1xi32> to vector<8x1xf32>
    %427 = vector.broadcast %426 : vector<8x1xf32> to vector<8x128xf32>
    %428 = arith.mulf %419, %427 : vector<8x128xf32>
    %cst_145 = arith.constant dense<0.000000e+00> : vector<128xf32>
    %429 = vector.multi_reduction <add>, %428, %cst_145 [0] : vector<8x128xf32> to vector<128xf32>
    %430 = vector.shape_cast %429 : vector<128xf32> to vector<1x128xf32>
    %c0_146 = arith.constant 0 : index
    %c0_147 = arith.constant 0 : index
    %c0_148 = arith.constant 0 : index
    %431 = vector.load %arg7[%c0_146, %c0_147, %c0_148] : memref<1x1x128xf32, #tpu.memory_space<vmem>>, vector<1x1x128xf32>
    %432 = vector.shape_cast %431 : vector<1x1x128xf32> to vector<1x128xf32>
    %433 = vector.shape_cast %430 : vector<1x128xf32> to vector<1x1x128xf32>
    tpu.vector_store %arg7[%c0_146, %c0_147, %c0_148], %433 {strides = array<i32>} : memref<1x1x128xf32, #tpu.memory_space<vmem>>, vector<1x1x128xf32>,
    return
  }
  func.func @transform_0(%arg0: i32, %arg1: memref<2xi32, #tpu.memory_space<smem>>) -> (i32, i32, i32) {
    %c0_i32 = arith.constant 0 : i32
    %c0_i32_0 = arith.constant 0 : i32
    %c0_i32_1 = arith.constant 0 : i32
    return %arg0, %c0_i32, %c0_i32_0 : i32, i32, i32
  }
  func.func @transform_1(%arg0: i32, %arg1: memref<2xi32, #tpu.memory_space<smem>>) -> (i32, i32, i32) {
    %c0_i32 = arith.constant 0 : i32
    %c0_i32_0 = arith.constant 0 : i32
    %c0_i32_1 = arith.constant 0 : i32
    return %arg0, %c0_i32, %c0_i32_0 : i32, i32, i32
  }
  func.func @transform_2(%arg0: i32, %arg1: memref<2xi32, #tpu.memory_space<smem>>) -> (i32, i32, i32) {
    %c0_i32 = arith.constant 0 : i32
    %c0_i32_0 = arith.constant 0 : i32
    %c0_i32_1 = arith.constant 0 : i32
    return %arg0, %c0_i32, %c0_i32_0 : i32, i32, i32
  }
  func.func @transform_3(%arg0: i32, %arg1: memref<2xi32, #tpu.memory_space<smem>>) -> (i32, i32) {
    %c0_i32 = arith.constant 0 : i32
    %c0_i32_0 = arith.constant 0 : i32
    %c0_i32_1 = arith.constant 0 : i32
    return %c0_i32, %c0_i32_0 : i32, i32
  }
  func.func @transform_4(%arg0: i32, %arg1: memref<2xi32, #tpu.memory_space<smem>>) -> (i32, i32) {
    %c0_i32 = arith.constant 0 : i32
    %c0_i32_0 = arith.constant 0 : i32
    %c0_i32_1 = arith.constant 0 : i32
    return %c0_i32, %c0_i32_0 : i32, i32
  }
  func.func @transform_5(%arg0: i32, %arg1: memref<2xi32, #tpu.memory_space<smem>>) -> (i32, i32, i32) {
    %c0_i32 = arith.constant 0 : i32
    %c0_i32_0 = arith.constant 0 : i32
    %c0_i32_1 = arith.constant 0 : i32
    return %arg0, %c0_i32, %c0_i32_0 : i32, i32, i32
  }
}

</mosaic_0001>

<llo_original>
// kernel: lsg_bart_eval_forward.1
$region0: #{lsg_bart_eval_forward.1}
  #allocation0 [shape = 'u32[]', space=smem, size = 0x4, offset = 0x4, fixed_abs, tag = 'smem constant byte address 0x4 - core index']
  #allocation1 [shape = 'u32[144,128]{1,0:T(1,128)}', space=vmem, size = 0x12000, scoped, tag = 'internal scratch']
  #allocation2 [shape = 's32[1]{0}', space=sflag, size = 0x4, scoped, tag = 'scoped memory for lsg_bart_eval_forward.1']
  #allocation3 [shape = 'u8[512]{0}', space=smem, size = 0x200, scoped, tag = 'prefetched SMEM operand 0']
  %s0 = inlined_call_operand.vmem [shape: s32[2], index: 0, kind: input, shape index: {}]
  %s1 = inlined_call_operand.vmem [shape: f32[2,8,128], index: 1, kind: input, shape index: {}]
  %s2 = inlined_call_operand.vmem [shape: f32[2,8,128], index: 2, kind: input, shape index: {}]
  %s3 = inlined_call_operand.vmem [shape: f32[2,1,32], index: 3, kind: input, shape index: {}]
  %s4 = inlined_call_operand.hbm [shape: bf16[2304,128], index: 4, kind: input, shape index: {}]
  %s5 = inlined_call_operand.vmem [shape: f32[32,128], index: 5, kind: input, shape index: {}]
  %s6 = inlined_call_operand.hbm [shape: f32[2,1,128], index: 6, kind: output, shape index: {}]
  %s7 = sld [smem:[#allocation0]]
  $region57: #{lsg_bart_eval_forward.1} parent=0
    _
  %s9 = ssub.s32 1, %s7
  %s10 = scalar_select 0, %s9, %s7
  %s11 = sshll.u32 %s0, 4
  %s12 = int_to_ptr.vmem [resolvable:$true] %s11
  %14 = dma.vmem_to_smem %s12, 16, [#allocation3], [#allocation2]
  %15 = dma.done [#allocation2], 16
  %16 = sfence
  $region1: #{lsg_bart_eval_forward.1} parent=0
    #allocation4 [shape = 'u8[589824]{0}', space=vmem, size = 0x90000, scoped, tag = 'input window, operand 4, single buffered']
    #allocation5 [shape = 's32[2]{0}', space=sflag, size = 0x8, scoped, tag = 'scoped memory for lsg_bart_eval_forward.1']
    #allocation6 [shape = 's32[2]{0}', space=sflag, size = 0x8, scoped, tag = 'scoped memory for lsg_bart_eval_forward.1']
    #allocation7 [shape = 'u8[1024]{0}', space=vmem, size = 0x400, scoped, tag = 'output window, operand 0']
    %17 = vsyncpa [#allocation5], 0
    %18 = vsyncpa [#allocation6], 0
    %s19 = scalar_lea.sflag [#allocation6], 1
    %20 = vsyncpa %s19, 0
    loop: start=0, step=1, limit=4
    $region2: #{lsg_bart_eval_forward.1} parent=1 // loop_pre_header
      _
    $region3: #{lsg_bart_eval_forward.1} parent=1 // loop_header
      %s22 = sphi 0, %s26
      %p23 = scmp.ge.s32.totalorder %s22, 4
      %s32 = sphi 0, %s34
      %s35 = sphi 0, %s32
      %s36 = sphi 0, %s35
      %s52 = sphi 0, %s36
      %s58 = sphi 0, %s60
      %s61 = sphi 0, %s58
      %s62 = sphi 0, %s61
      %s78 = sphi 0, %s62
      %s84 = sphi 0, %s86
      %s87 = sphi 0, %s84
      %s88 = sphi 0, %s87
      %s104 = sphi 0, %s88
      %s108 = sphi 0, %s108
      %s110 = sphi 0, %s108
      %s111 = sphi 0, %s110
      %s125 = sphi 0, %s111
      %s129 = sphi 0, %s129
      %s131 = sphi 0, %s129
      %s132 = sphi 0, %s131
      %s146 = sphi 0, %s132
      %s152 = sphi 0, %s154
      %s155 = sphi 0, %s152
      %s156 = sphi 0, %s155
      %s172 = sphi 0, %s156
    $region4: #{lsg_bart_eval_forward.1} parent=1 // loop_header_branch
      %25 = sbr.rel (%p23) target = $region8
    $region5: #{lsg_bart_eval_forward.1} parent=1 // loop_body
      %s27 = ssub.s32 %s22, 1
      %s28 = ssub.s32 %s22, 2
      %s29 = sadd.s32 %s22, 1
      %s30 = ssub.s32 %s22, %s29
      %p31 = scmp.eq.s32.totalorder %s30, 0
      %s33 = sadd.s32 %s32, 1
      %s34 = scalar_select %p31, %s32, %s33
      %p37 = pneg %p31
      %p38 = scmp.eq.s32.totalorder %s22, 1
      %p39 = por %p37, %p38
      %p40 = scmp.ne.s32.totalorder %s32, %s35
      %p41 = scmp.eq.s32.totalorder %s22, 0
      %p42 = por %p40, %p41
      %p43 = scmp.ne.s32.totalorder %s32, %s35
      %p44 = scmp.eq.s32.totalorder %s27, 1
      %p45 = por %p43, %p44
      %p46 = scmp.ne.s32.totalorder %s35, %s36
      %p47 = scmp.eq.s32.totalorder %s27, 0
      %p48 = por %p46, %p47
      %p49 = scmp.ne.s32.totalorder %s35, %s36
      %p50 = scmp.eq.s32.totalorder %s28, 1
      %p51 = por %p49, %p50
      %p53 = scmp.ne.s32.totalorder %s36, %s52
      %p54 = scmp.eq.s32.totalorder %s28, 0
      %p55 = por %p53, %p54
      %s56 = ssub.s32 %s22, %s29
      %p57 = scmp.eq.s32.totalorder %s56, 0
      %s59 = sadd.s32 %s58, 1
      %s60 = scalar_select %p57, %s58, %s59
      %p63 = pneg %p57
      %p64 = scmp.eq.s32.totalorder %s22, 1
      %p65 = por %p63, %p64
      %p66 = scmp.ne.s32.totalorder %s58, %s61
      %p67 = scmp.eq.s32.totalorder %s22, 0
      %p68 = por %p66, %p67
      %p69 = scmp.ne.s32.totalorder %s58, %s61
      %p70 = scmp.eq.s32.totalorder %s27, 1
      %p71 = por %p69, %p70
      %p72 = scmp.ne.s32.totalorder %s61, %s62
      %p73 = scmp.eq.s32.totalorder %s27, 0
      %p74 = por %p72, %p73
      %p75 = scmp.ne.s32.totalorder %s61, %s62
      %p76 = scmp.eq.s32.totalorder %s28, 1
      %p77 = por %p75, %p76
      %p79 = scmp.ne.s32.totalorder %s62, %s78
      %p80 = scmp.eq.s32.totalorder %s28, 0
      %p81 = por %p79, %p80
      %s82 = ssub.s32 %s22, %s29
      %p83 = scmp.eq.s32.totalorder %s82, 0
      %s85 = sadd.s32 %s84, 1
      %s86 = scalar_select %p83, %s84, %s85
      %p89 = pneg %p83
      %p90 = scmp.eq.s32.totalorder %s22, 1
      %p91 = por %p89, %p90
      %p92 = scmp.ne.s32.totalorder %s84, %s87
      %p93 = scmp.eq.s32.totalorder %s22, 0
      %p94 = por %p92, %p93
      %p95 = scmp.ne.s32.totalorder %s84, %s87
      %p96 = scmp.eq.s32.totalorder %s27, 1
      %p97 = por %p95, %p96
      %p98 = scmp.ne.s32.totalorder %s87, %s88
      %p99 = scmp.eq.s32.totalorder %s27, 0
      %p100 = por %p98, %p99
      %p101 = scmp.ne.s32.totalorder %s87, %s88
      %p102 = scmp.eq.s32.totalorder %s28, 1
      %p103 = por %p101, %p102
      %p105 = scmp.ne.s32.totalorder %s88, %s104
      %p106 = scmp.eq.s32.totalorder %s28, 0
      %p107 = por %p105, %p106
      %s109 = sadd.s32 %s108, 1
      %p112 = scmp.eq.s32.totalorder %s22, 1
      %p113 = scmp.ne.s32.totalorder %s108, %s110
      %p114 = scmp.eq.s32.totalorder %s22, 0
      %p115 = por %p113, %p114
      %p116 = scmp.ne.s32.totalorder %s108, %s110
      %p117 = scmp.eq.s32.totalorder %s27, 1
      %p118 = por %p116, %p117
      %p119 = scmp.ne.s32.totalorder %s110, %s111
      %p120 = scmp.eq.s32.totalorder %s27, 0
      %p121 = por %p119, %p120
      %p122 = scmp.ne.s32.totalorder %s110, %s111
      %p123 = scmp.eq.s32.totalorder %s28, 1
      %p124 = por %p122, %p123
      %p126 = scmp.ne.s32.totalorder %s111, %s125
      %p127 = scmp.eq.s32.totalorder %s28, 0
      %p128 = por %p126, %p127
      %s130 = sadd.s32 %s129, 1
      %p133 = scmp.eq.s32.totalorder %s22, 1
      %p134 = scmp.ne.s32.totalorder %s129, %s131
      %p135 = scmp.eq.s32.totalorder %s22, 0
      %p136 = por %p134, %p135
      %p137 = scmp.ne.s32.totalorder %s129, %s131
      %p138 = scmp.eq.s32.totalorder %s27, 1
      %p139 = por %p137, %p138
      %p140 = scmp.ne.s32.totalorder %s131, %s132
      %p141 = scmp.eq.s32.totalorder %s27, 0
      %p142 = por %p140, %p141
      %p143 = scmp.ne.s32.totalorder %s131, %s132
      %p144 = scmp.eq.s32.totalorder %s28, 1
      %p145 = por %p143, %p144
      %p147 = scmp.ne.s32.totalorder %s132, %s146
      %p148 = scmp.eq.s32.totalorder %s28, 0
      %p149 = por %p147, %p148
      %s150 = ssub.s32 %s22, %s29
      %p151 = scmp.eq.s32.totalorder %s150, 0
      %s153 = sadd.s32 %s152, 1
      %s154 = scalar_select %p151, %s152, %s153
      %p157 = pneg %p151
      %p158 = scmp.eq.s32.totalorder %s22, 1
      %p159 = por %p157, %p158
      %p160 = scmp.ne.s32.totalorder %s152, %s155
      %p161 = scmp.eq.s32.totalorder %s22, 0
      %p162 = por %p160, %p161
      %p163 = scmp.ne.s32.totalorder %s152, %s155
      %p164 = scmp.eq.s32.totalorder %s27, 1
      %p165 = por %p163, %p164
      %p166 = scmp.ne.s32.totalorder %s155, %s156
      %p167 = scmp.eq.s32.totalorder %s27, 0
      %p168 = por %p166, %p167
      %p169 = scmp.ne.s32.totalorder %s155, %s156
      %p170 = scmp.eq.s32.totalorder %s28, 1
      %p171 = por %p169, %p170
      %p173 = scmp.ne.s32.totalorder %s156, %s172
      %p174 = scmp.eq.s32.totalorder %s28, 0
      %p175 = por %p173, %p174
      %p176 = scmp.le.s32.totalorder 1, %s22
      %p177 = scmp.lt.s32.totalorder %s22, 3
      %p178 = pnand %p176, %p177
      %p179 = pneg %p178
      // Predicated region
      $region9: #{lsg_bart_eval_forward.1} parent=5 // pred_check
        _
      $region10: #{lsg_bart_eval_forward.1} parent=5 // pred_check_branch
        %181 = sbr.rel (%p178) target = $region12
      $region11: #{lsg_bart_eval_forward.1} parent=5 // pred_region
        %s182 = ssub.s32 %s22, 1
        // Predicated region
        $region13: #{lsg_bart_eval_forward.1} parent=11 // pred_check
          %p183 = pneg %p121
        $region14: #{lsg_bart_eval_forward.1} parent=11 // pred_check_branch
          %185 = sbr.rel (%p183) target = $region16
        $region15: #{lsg_bart_eval_forward.1} parent=11 // pred_region
          %s187 = ssub.s32 18432, 18432
          %188 = vsyncadd [#allocation5], %s187
          %s189 = sshll.u32 [#allocation4], 4
          %s190 = int_to_ptr.vmem [resolvable:$true] %s189
          %195 = dma.hbm_to_vmem [thread:$0]  %s4, 18432, %s190, [#allocation5], 64, 64, 4
        $region16: #{lsg_bart_eval_forward.1} parent=11 // pred_fallthru
          _
        // Predicated region
        $region17: #{lsg_bart_eval_forward.1} parent=11 // pred_check
          %p196 = pneg %p142
        $region18: #{lsg_bart_eval_forward.1} parent=11 // pred_check_branch
          %198 = sbr.rel (%p196) target = $region20
        $region19: #{lsg_bart_eval_forward.1} parent=11 // pred_region
          _
        $region20: #{lsg_bart_eval_forward.1} parent=11 // pred_fallthru
          _
      $region12: #{lsg_bart_eval_forward.1} parent=5 // pred_fallthru
        _
      %p199 = scmp.lt.s32.totalorder %s22, 2
      // Predicated region
      $region21: #{lsg_bart_eval_forward.1} parent=5 // pred_check
        %p200 = pneg %p199
      $region22: #{lsg_bart_eval_forward.1} parent=5 // pred_check_branch
        %202 = sbr.rel (%p200) target = $region24
      $region23: #{lsg_bart_eval_forward.1} parent=5 // pred_region
        // Predicated region
        $region25: #{lsg_bart_eval_forward.1} parent=23 // pred_check
          %p203 = pneg %p42
        $region26: #{lsg_bart_eval_forward.1} parent=23 // pred_check_branch
          %205 = sbr.rel (%p203) target = $region28
        $region27: #{lsg_bart_eval_forward.1} parent=23 // pred_region
          %p206 = scmp.lt.s32.totalorder %s22, 1
          %s207 = scalar_select %p206, %s22, 1
          %s208 = smul.addr %s207, 8
          %s209 = scalar_lea.vmem %s1, %s208
        $region28: #{lsg_bart_eval_forward.1} parent=23 // pred_fallthru
          _
        // Predicated region
        $region29: #{lsg_bart_eval_forward.1} parent=23 // pred_check
          %p210 = pneg %p68
        $region30: #{lsg_bart_eval_forward.1} parent=23 // pred_check_branch
          %212 = sbr.rel (%p210) target = $region32
        $region31: #{lsg_bart_eval_forward.1} parent=23 // pred_region
          %p213 = scmp.lt.s32.totalorder %s22, 1
          %s214 = scalar_select %p213, %s22, 1
          %s215 = smul.addr %s214, 8
          %s216 = scalar_lea.vmem %s2, %s215
        $region32: #{lsg_bart_eval_forward.1} parent=23 // pred_fallthru
          _
        // Predicated region
        $region33: #{lsg_bart_eval_forward.1} parent=23 // pred_check
          %p217 = pneg %p94
        $region34: #{lsg_bart_eval_forward.1} parent=23 // pred_check_branch
          %219 = sbr.rel (%p217) target = $region36
        $region35: #{lsg_bart_eval_forward.1} parent=23 // pred_region
          %p220 = scmp.lt.s32.totalorder %s22, 1
          %s221 = scalar_select %p220, %s22, 1
          %s222 = scalar_lea.vmem %s3, %s221
        $region36: #{lsg_bart_eval_forward.1} parent=23 // pred_fallthru
          _
      $region24: #{lsg_bart_eval_forward.1} parent=5 // pred_fallthru
        _
      %p223 = scmp.le.s32.totalorder 1, %s22
      %p224 = scmp.lt.s32.totalorder %s22, 3
      %p225 = pnand %p223, %p224
      %p226 = pneg %p225
      // Predicated region
      $region37: #{lsg_bart_eval_forward.1} parent=5 // pred_check
        _
      $region38: #{lsg_bart_eval_forward.1} parent=5 // pred_check_branch
        %228 = sbr.rel (%p225) target = $region40
      $region39: #{lsg_bart_eval_forward.1} parent=5 // pred_region
        %s229 = ssub.s32 %s22, 1
        // Predicated region
        $region41: #{lsg_bart_eval_forward.1} parent=39 // pred_check
          %p230 = pneg %p121
        $region42: #{lsg_bart_eval_forward.1} parent=39 // pred_check_branch
          %232 = sbr.rel (%p230) target = $region44
        $region43: #{lsg_bart_eval_forward.1} parent=39 // pred_region
          %233 = dma.done [#allocation5], 18432
        $region44: #{lsg_bart_eval_forward.1} parent=39 // pred_fallthru
          _
        %p234 = scmp.lt.s32.totalorder %s27, 1
        %s235 = scalar_select %p234, %s27, 1
        %s236 = smul.addr %s235, 8
        %s237 = scalar_lea.vmem %s1, %s236
        %p238 = pneg %p48
        %p239 = pneg %p45
        %p240 = scmp.lt.s32.totalorder %s27, 1
        %s241 = scalar_select %p240, %s27, 1
        %s242 = smul.addr %s241, 8
        %s243 = scalar_lea.vmem %s2, %s242
        %p244 = pneg %p74
        %p245 = pneg %p71
        %p246 = scmp.lt.s32.totalorder %s27, 1
        %s247 = scalar_select %p246, %s27, 1
        %s248 = scalar_lea.vmem %s3, %s247
        %p249 = pneg %p100
        %p250 = pneg %p97
        %p251 = pneg %p121
        %p252 = pneg %p118
        %p253 = pneg %p142
        %p254 = pneg %p139
        %p255 = pneg %p168
        %p256 = pneg %p165
        %s257 = sand.u32 %s155, 1
        %s258 = scalar_lea.sflag [#allocation6], %s257
        %s259 = sand.u32 %s155, 1
        %s260 = scalar_lea.vmem [#allocation7], %s259
        %p261 = scmp.lt.s32.totalorder %s27, 1
        %s262 = scalar_select %p261, %s27, 1
        %s263 = smul.addr %s262, 8
        %s264 = scalar_lea.vmem %s1, %s263
        %p265 = scmp.lt.s32.totalorder %s27, 1
        %s266 = scalar_select %p265, %s27, 1
        %s267 = smul.addr %s266, 8
        %s268 = scalar_lea.vmem %s2, %s267
        %p269 = scmp.lt.s32.totalorder %s27, 1
        %s270 = scalar_select %p269, %s27, 1
        %s271 = scalar_lea.vmem %s3, %s270
        %v273 = vlaneseq
        %v274 = vand.u32 %v273, 127
        %vm275 = vcmp.lt.s32.totalorder %v274, 32
        %v276 = vsel %vm275, 1, 0
        %v277 = vcvt.s32.f32 %v276
        %v278 = vlaneseq
        %v279 = vshrl.u32 %v278, 7
        %v280 = vadd.s32 %v279, 8
        %v281 = vadd.s32 %v279, 16
        %v282 = vadd.s32 %v279, 24
        %v283 = vshra.s32 %v279, 3
        %v284 = vshra.s32 %v280, 3
        %v285 = vshra.s32 %v281, 3
        %v286 = vshra.s32 %v282, 3
        %v287 = vshra.s32 %v274, 3
        %vm288 = vcmp.eq.s32.totalorder %v283, %v287
        %vm289 = vcmp.eq.s32.totalorder %v284, %v287
        %vm290 = vcmp.eq.s32.totalorder %v285, %v287
        %vm291 = vcmp.eq.s32.totalorder %v286, %v287
        %vm292 = vmand %vm288, %vm275
        %vm293 = vmand %vm289, %vm275
        %vm294 = vmand %vm290, %vm275
        %vm295 = vmand %vm291, %vm275
        %v296 = vsel %vm292, 1, 0
        %v297 = vsel %vm293, 1, 0
        %v298 = vsel %vm294, 1, 0
        %v299 = vsel %vm295, 1, 0
        %v300 = vcvt.s32.f32 %v296
        %v301 = vcvt.s32.f32 %v297
        %v302 = vcvt.s32.f32 %v298
        %v303 = vcvt.s32.f32 %v299
        %v304 = vsel %vm288, 1, 0
        %v305 = vsel %vm289, 1, 0
        %v306 = vsel %vm290, 1, 0
        %v307 = vsel %vm291, 1, 0
        %v308 = vcvt.s32.f32 %v304
        %v309 = vcvt.s32.f32 %v305
        %v310 = vcvt.s32.f32 %v306
        %v311 = vcvt.s32.f32 %v307
        %v312 = vand.u32 %v274, 7
        %vm313 = vcmp.le.s32.totalorder %v312, %v279
        %v314 = vsel %vm313, 0.0, -1e+09
        %v315 = vld [vmem:[%s271] sm:$0x1]
        %vm316 = vcmp.gt.f32.partialorder %v315, 0.5
        %v317 = vsel %vm316, 0.0, -1e+09
        %v318 = vld [vmem:[%s264] sm:$0xff]
        %v319 = vld [vmem:[%s5] sm:$0x1]
        %v320 = vld [vmem:[%s5 + $0x1] sm:$0x1]
        %321 = vadd.xlane.f32.xlu0 %v318
        %v322 = vpop.xlane.xlu0 %321
        %v323 = vmul.f32 %v322, 0.03125
        %v324 = vsub.f32 %v318, %v323
        %v325 = vmul.f32 %v324, %v277
        %v326 = vmul.f32 %v325, %v325
        %327 = vadd.xlane.f32.xlu0 %v326
        %v328 = vpop.xlane.xlu0 %327
        %v329 = vmul.f32 %v328, 0.03125
        %v330 = vadd.f32 %v329, 1e-05
        %v331 = vrsqrt.pop %v330
        %v332 = vmul.f32 %v325, %v331
        %v333 = vlaneseq
        %v334 = vshrl.u32 %v333, 7
        %v335 = vsub.s32 0, %v334
        %v336 = vrot.slane %v319, %v335
        %v337 = vmul.f32 %v332, %v336
        %v338 = vlaneseq
        %v339 = vshrl.u32 %v338, 7
        %v340 = vsub.s32 0, %v339
        %v341 = vrot.slane %v320, %v340
        %v342 = vadd.f32 %v337, %v341
        %v343 = vld [vmem:[#allocation4] sm:$0xf]
        %v344 = vld [vmem:[#allocation4 + $0x4] sm:$0xf]
        %v345 = vld [vmem:[#allocation4 + $0x8] sm:$0xf]
        %v346 = vld [vmem:[#allocation4 + $0xc] sm:$0xf]
        %v347 = vld [vmem:[#allocation4 + $0x10] sm:$0xf]
        %v348 = vld [vmem:[#allocation4 + $0x14] sm:$0xf]
        %v349 = vld [vmem:[#allocation4 + $0x18] sm:$0xf]
        %v350 = vld [vmem:[#allocation4 + $0x1c] sm:$0xf]
        %v351 = vld [vmem:[#allocation4 + $0x20] sm:$0xf]
        %v352 = vld [vmem:[#allocation4 + $0x24] sm:$0xf]
        %v353 = vld [vmem:[#allocation4 + $0x28] sm:$0xf]
        %v354 = vld [vmem:[#allocation4 + $0x2c] sm:$0xf]
        %v355 = vld [vmem:[#allocation4 + $0x30] sm:$0xf]
        %v356 = vld [vmem:[#allocation4 + $0x34] sm:$0xf]
        %v357 = vld [vmem:[#allocation4 + $0x38] sm:$0xf]
        %v358 = vld [vmem:[#allocation4 + $0x3c] sm:$0xf]
        %v359 = vpack.c.bf16 %v342, %v342
        %v360 = vld [vmem:[%s5 + $0x2] sm:$0x1]
        %v361 = vlaneseq
        %v362 = vshrl.u32 %v361, 7
        %v363 = vsub.s32 0, %v362
        %v364 = vrot.slane %v360, %v363
        %v381 = vunpack.c.l.b16 %v343
        %v382 = vunpack.c.l.b16 %v344
        %v383 = vunpack.c.l.b16 %v345
        %v384 = vunpack.c.l.b16 %v346
        %v385 = vunpack.c.l.b16 %v347
        %v386 = vunpack.c.l.b16 %v348
        %v387 = vunpack.c.l.b16 %v349
        %v388 = vunpack.c.l.b16 %v350
        %v389 = vunpack.c.l.b16 %v351
        %v390 = vunpack.c.l.b16 %v352
        %v391 = vunpack.c.l.b16 %v353
        %v392 = vunpack.c.l.b16 %v354
        %v393 = vunpack.c.l.b16 %v355
        %v394 = vunpack.c.l.b16 %v356
        %v395 = vunpack.c.l.b16 %v357
        %v396 = vunpack.c.l.b16 %v358
        %v397 = vpack.c.b16 %v382, %v381
        %v398 = vpack.c.b16 %v384, %v383
        %v399 = vpack.c.b16 %v386, %v385
        %v400 = vpack.c.b16 %v388, %v387
        %v401 = vpack.c.b16 %v390, %v389
        %v402 = vpack.c.b16 %v392, %v391
        %v403 = vpack.c.b16 %v394, %v393
        %v404 = vpack.c.b16 %v396, %v395
        %413 = vmatprep.subr.bf16.mxu0 0
        %414 = vmatpush1.bf16.msra.mxu0 %v404
        %415 = vmatprep.subr.bf16.mxu0 0
        %416 = vmatpush1.bf16.msra.mxu0 %v403
        %417 = vmatprep.subr.bf16.mxu0 0
        %418 = vmatpush1.bf16.msra.mxu0 %v402
        %419 = vmatprep.subr.bf16.mxu0 0
        %420 = vmatpush1.bf16.msra.mxu0 %v401
        %421 = vmatprep.subr.bf16.mxu0 0
        %422 = vmatpush1.bf16.msra.mxu0 %v400
        %423 = vmatprep.subr.bf16.mxu0 0
        %424 = vmatpush1.bf16.msra.mxu0 %v399
        %425 = vmatprep.subr.bf16.mxu0 0
        %426 = vmatpush1.bf16.msra.mxu0 %v398
        %427 = vmatprep.subr.bf16.mxu0 0
        %428 = vmatpush1.bf16.msra.mxu0 %v397
        %429 = vmatprep.subr.bf16.mxu0 0
        %430 = vmatpush2.bf16.msra.mxu0 0
        %431 = vmatprep.subr.bf16.mxu0 0
        %432 = vmatpush2.bf16.msra.mxu0 0
        %433 = vmatprep.subr.bf16.mxu0 0
        %434 = vmatpush2.bf16.msra.mxu0 0
        %435 = vmatprep.subr.bf16.mxu0 0
        %436 = vmatpush2.bf16.msra.mxu0 0
        %437 = vmatprep.subr.bf16.mxu0 0
        %438 = vmatpush2.bf16.msra.mxu0 0
        %439 = vmatprep.subr.bf16.mxu0 0
        %440 = vmatpush2.bf16.msra.mxu0 0
        %441 = vmatprep.subr.bf16.mxu0 0
        %442 = vmatpush2.bf16.msra.mxu0 0
        %443 = vmatprep.subr.bf16.mxu0 0
        %444 = vmatpush2.bf16.msra.mxu0 0
        %445 = vmatprep.mubr.bf16.mxu0 0
        %446 = vmatmul.mubr.bf16.gmra.mxu0 %v359
        %v447 = vpop.f32.mrf.mxu0
        %v448 = vadd.f32 %v364, %v447
        %v449 = vpop.f32.mrf.mxu0
        %v450 = vpop.f32.mrf.mxu0
        %v451 = vpop.f32.mrf.mxu0
        %452 = vdwg.mxu0
        %v453 = vmul.f32 %v448, 0.35355338
        %v454 = vld [vmem:[#allocation4 + $0x40] sm:$0xf]
        %v455 = vld [vmem:[#allocation4 + $0x44] sm:$0xf]
        %v456 = vld [vmem:[#allocation4 + $0x48] sm:$0xf]
        %v457 = vld [vmem:[#allocation4 + $0x4c] sm:$0xf]
        %v458 = vld [vmem:[#allocation4 + $0x50] sm:$0xf]
        %v459 = vld [vmem:[#allocation4 + $0x54] sm:$0xf]
        %v460 = vld [vmem:[#allocation4 + $0x58] sm:$0xf]
        %v461 = vld [vmem:[#allocation4 + $0x5c] sm:$0xf]
        %v462 = vld [vmem:[#allocation4 + $0x60] sm:$0xf]
        %v463 = vld [vmem:[#allocation4 + $0x64] sm:$0xf]
        %v464 = vld [vmem:[#allocation4 + $0x68] sm:$0xf]
        %v465 = vld [vmem:[#allocation4 + $0x6c] sm:$0xf]
        %v466 = vld [vmem:[#allocation4 + $0x70] sm:$0xf]
        %v467 = vld [vmem:[#allocation4 + $0x74] sm:$0xf]
        %v468 = vld [vmem:[#allocation4 + $0x78] sm:$0xf]
        %v469 = vld [vmem:[#allocation4 + $0x7c] sm:$0xf]
        %v470 = vld [vmem:[%s5 + $0x3] sm:$0x1]
        %v471 = vlaneseq
        %v472 = vshrl.u32 %v471, 7
        %v473 = vsub.s32 0, %v472
        %v474 = vrot.slane %v470, %v473
        %v491 = vunpack.c.l.b16 %v454
        %v492 = vunpack.c.l.b16 %v455
        %v493 = vunpack.c.l.b16 %v456
        %v494 = vunpack.c.l.b16 %v457
        %v495 = vunpack.c.l.b16 %v458
        %v496 = vunpack.c.l.b16 %v459
        %v497 = vunpack.c.l.b16 %v460
        %v498 = vunpack.c.l.b16 %v461
        %v499 = vunpack.c.l.b16 %v462
        %v500 = vunpack.c.l.b16 %v463
        %v501 = vunpack.c.l.b16 %v464
        %v502 = vunpack.c.l.b16 %v465
        %v503 = vunpack.c.l.b16 %v466
        %v504 = vunpack.c.l.b16 %v467
        %v505 = vunpack.c.l.b16 %v468
        %v506 = vunpack.c.l.b16 %v469
        %v507 = vpack.c.b16 %v492, %v491
        %v508 = vpack.c.b16 %v494, %v493
        %v509 = vpack.c.b16 %v496, %v495
        %v510 = vpack.c.b16 %v498, %v497
        %v511 = vpack.c.b16 %v500, %v499
        %v512 = vpack.c.b16 %v502, %v501
        %v513 = vpack.c.b16 %v504, %v503
        %v514 = vpack.c.b16 %v506, %v505
        %523 = vmatprep.subr.bf16.mxu0 0
        %524 = vmatpush1.bf16.msra.mxu0 %v514
        %525 = vmatprep.subr.bf16.mxu0 0
        %526 = vmatpush1.bf16.msra.mxu0 %v513
        %527 = vmatprep.subr.bf16.mxu0 0
        %528 = vmatpush1.bf16.msra.mxu0 %v512
        %529 = vmatprep.subr.bf16.mxu0 0
        %530 = vmatpush1.bf16.msra.mxu0 %v511
        %531 = vmatprep.subr.bf16.mxu0 0
        %532 = vmatpush1.bf16.msra.mxu0 %v510
        %533 = vmatprep.subr.bf16.mxu0 0
        %534 = vmatpush1.bf16.msra.mxu0 %v509
        %535 = vmatprep.subr.bf16.mxu0 0
        %536 = vmatpush1.bf16.msra.mxu0 %v508
        %537 = vmatprep.subr.bf16.mxu0 0
        %538 = vmatpush1.bf16.msra.mxu0 %v507
        %539 = vmatprep.subr.bf16.mxu0 0
        %540 = vmatpush2.bf16.msra.mxu0 0
        %541 = vmatprep.subr.bf16.mxu0 0
        %542 = vmatpush2.bf16.msra.mxu0 0
        %543 = vmatprep.subr.bf16.mxu0 0
        %544 = vmatpush2.bf16.msra.mxu0 0
        %545 = vmatprep.subr.bf16.mxu0 0
        %546 = vmatpush2.bf16.msra.mxu0 0
        %547 = vmatprep.subr.bf16.mxu0 0
        %548 = vmatpush2.bf16.msra.mxu0 0
        %549 = vmatprep.subr.bf16.mxu0 0
        %550 = vmatpush2.bf16.msra.mxu0 0
        %551 = vmatprep.subr.bf16.mxu0 0
        %552 = vmatpush2.bf16.msra.mxu0 0
        %553 = vmatprep.subr.bf16.mxu0 0
        %554 = vmatpush2.bf16.msra.mxu0 0
        %555 = vmatprep.mubr.bf16.mxu0 0
        %556 = vmatmul.mubr.bf16.gmra.mxu0 %v359
        %v557 = vpop.f32.mrf.mxu0
        %v558 = vadd.f32 %v474, %v557
        %v559 = vpop.f32.mrf.mxu0
        %v560 = vpop.f32.mrf.mxu0
        %v561 = vpop.f32.mrf.mxu0
        %562 = vdwg.mxu0
        %v563 = vld [vmem:[#allocation4 + $0x80] sm:$0xf]
        %v564 = vld [vmem:[#allocation4 + $0x84] sm:$0xf]
        %v565 = vld [vmem:[#allocation4 + $0x88] sm:$0xf]
        %v566 = vld [vmem:[#allocation4 + $0x8c] sm:$0xf]
        %v567 = vld [vmem:[#allocation4 + $0x90] sm:$0xf]
        %v568 = vld [vmem:[#allocation4 + $0x94] sm:$0xf]
        %v569 = vld [vmem:[#allocation4 + $0x98] sm:$0xf]
        %v570 = vld [vmem:[#allocation4 + $0x9c] sm:$0xf]
        %v571 = vld [vmem:[#allocation4 + $0xa0] sm:$0xf]
        %v572 = vld [vmem:[#allocation4 + $0xa4] sm:$0xf]
        %v573 = vld [vmem:[#allocation4 + $0xa8] sm:$0xf]
        %v574 = vld [vmem:[#allocation4 + $0xac] sm:$0xf]
        %v575 = vld [vmem:[#allocation4 + $0xb0] sm:$0xf]
        %v576 = vld [vmem:[#allocation4 + $0xb4] sm:$0xf]
        %v577 = vld [vmem:[#allocation4 + $0xb8] sm:$0xf]
        %v578 = vld [vmem:[#allocation4 + $0xbc] sm:$0xf]
        %v579 = vld [vmem:[%s5 + $0x4] sm:$0x1]
        %v580 = vlaneseq
        %v581 = vshrl.u32 %v580, 7
        %v582 = vsub.s32 0, %v581
        %v583 = vrot.slane %v579, %v582
        %v600 = vunpack.c.l.b16 %v563
        %v601 = vunpack.c.l.b16 %v564
        %v602 = vunpack.c.l.b16 %v565
        %v603 = vunpack.c.l.b16 %v566
        %v604 = vunpack.c.l.b16 %v567
        %v605 = vunpack.c.l.b16 %v568
        %v606 = vunpack.c.l.b16 %v569
        %v607 = vunpack.c.l.b16 %v570
        %v608 = vunpack.c.l.b16 %v571
        %v609 = vunpack.c.l.b16 %v572
        %v610 = vunpack.c.l.b16 %v573
        %v611 = vunpack.c.l.b16 %v574
        %v612 = vunpack.c.l.b16 %v575
        %v613 = vunpack.c.l.b16 %v576
        %v614 = vunpack.c.l.b16 %v577
        %v615 = vunpack.c.l.b16 %v578
        %v616 = vpack.c.b16 %v601, %v600
        %v617 = vpack.c.b16 %v603, %v602
        %v618 = vpack.c.b16 %v605, %v604
        %v619 = vpack.c.b16 %v607, %v606
        %v620 = vpack.c.b16 %v609, %v608
        %v621 = vpack.c.b16 %v611, %v610
        %v622 = vpack.c.b16 %v613, %v612
        %v623 = vpack.c.b16 %v615, %v614
        %632 = vmatprep.subr.bf16.mxu0 0
        %633 = vmatpush1.bf16.msra.mxu0 %v623
        %634 = vmatprep.subr.bf16.mxu0 0
        %635 = vmatpush1.bf16.msra.mxu0 %v622
        %636 = vmatprep.subr.bf16.mxu0 0
        %637 = vmatpush1.bf16.msra.mxu0 %v621
        %638 = vmatprep.subr.bf16.mxu0 0
        %639 = vmatpush1.bf16.msra.mxu0 %v620
        %640 = vmatprep.subr.bf16.mxu0 0
        %641 = vmatpush1.bf16.msra.mxu0 %v619
        %642 = vmatprep.subr.bf16.mxu0 0
        %643 = vmatpush1.bf16.msra.mxu0 %v618
        %644 = vmatprep.subr.bf16.mxu0 0
        %645 = vmatpush1.bf16.msra.mxu0 %v617
        %646 = vmatprep.subr.bf16.mxu0 0
        %647 = vmatpush1.bf16.msra.mxu0 %v616
        %648 = vmatprep.subr.bf16.mxu0 0
        %649 = vmatpush2.bf16.msra.mxu0 0
        %650 = vmatprep.subr.bf16.mxu0 0
        %651 = vmatpush2.bf16.msra.mxu0 0
        %652 = vmatprep.subr.bf16.mxu0 0
        %653 = vmatpush2.bf16.msra.mxu0 0
        %654 = vmatprep.subr.bf16.mxu0 0
        %655 = vmatpush2.bf16.msra.mxu0 0
        %656 = vmatprep.subr.bf16.mxu0 0
        %657 = vmatpush2.bf16.msra.mxu0 0
        %658 = vmatprep.subr.bf16.mxu0 0
        %659 = vmatpush2.bf16.msra.mxu0 0
        %660 = vmatprep.subr.bf16.mxu0 0
        %661 = vmatpush2.bf16.msra.mxu0 0
        %662 = vmatprep.subr.bf16.mxu0 0
        %663 = vmatpush2.bf16.msra.mxu0 0
        %664 = vmatprep.mubr.bf16.mxu0 0
        %665 = vmatmul.mubr.bf16.gmra.mxu0 %v359
        %v666 = vpop.f32.mrf.mxu0
        %v667 = vadd.f32 %v583, %v666
        %v668 = vpop.f32.mrf.mxu0
        %v669 = vpop.f32.mrf.mxu0
        %v670 = vpop.f32.mrf.mxu0
        %671 = vdwg.mxu0
        %v672 = vmul.f32 %v558, %v300
        %v673 = vmul.f32 %v558, %v301
        %v674 = vmul.f32 %v558, %v302
        %v675 = vmul.f32 %v558, %v303
        %v676 = vmul.f32 %v667, %v300
        %v677 = vmul.f32 %v667, %v301
        %v678 = vmul.f32 %v667, %v302
        %v679 = vmul.f32 %v667, %v303
        %v680 = vpack.c.bf16 %v453, %v453
        %v681 = vpack.c.bf16 %v673, %v672
        %v682 = vpack.c.bf16 %v675, %v674
        %v684 = vlaneseq
        %v685 = vshrl.u32 %v684, 7
        %v686 = vsub.s32 0, %v685
        %v687 = vrot.slane %v317, %v686
        %689 = vmatprep.subr.bf16.mxu0 0
        %690 = vmatpush1.bf16.xpose.msra.mxu0 0
        %691 = vmatprep.subr.bf16.mxu0 0
        %692 = vmatpush1.bf16.xpose.msra.mxu0 0
        %693 = vmatprep.subr.bf16.mxu0 0
        %694 = vmatpush1.bf16.xpose.msra.mxu0 0
        %695 = vmatprep.subr.bf16.mxu0 0
        %696 = vmatpush1.bf16.xpose.msra.mxu0 0
        %697 = vmatprep.subr.bf16.mxu0 0
        %698 = vmatpush1.bf16.xpose.msra.mxu0 0
        %699 = vmatprep.subr.bf16.mxu0 0
        %700 = vmatpush1.bf16.xpose.msra.mxu0 0
        %701 = vmatprep.subr.bf16.mxu0 0
        %702 = vmatpush1.bf16.xpose.msra.mxu0 %v682
        %703 = vmatprep.subr.bf16.mxu0 0
        %704 = vmatpush1.bf16.xpose.msra.mxu0 %v681
        %705 = vmatprep.subr.bf16.mxu0 0
        %706 = vmatpush2.bf16.xpose.msra.mxu0 0
        %707 = vmatprep.subr.bf16.mxu0 0
        %708 = vmatpush2.bf16.xpose.msra.mxu0 0
        %709 = vmatprep.subr.bf16.mxu0 0
        %710 = vmatpush2.bf16.xpose.msra.mxu0 0
        %711 = vmatprep.subr.bf16.mxu0 0
        %712 = vmatpush2.bf16.xpose.msra.mxu0 0
        %713 = vmatprep.subr.bf16.mxu0 0
        %714 = vmatpush2.bf16.xpose.msra.mxu0 0
        %715 = vmatprep.subr.bf16.mxu0 0
        %716 = vmatpush2.bf16.xpose.msra.mxu0 0
        %717 = vmatprep.subr.bf16.mxu0 0
        %718 = vmatpush2.bf16.xpose.msra.mxu0 0
        %719 = vmatprep.subr.bf16.mxu0 0
        %720 = vmatpush2.bf16.xpose.msra.mxu0 0
        %721 = vmatprep.mubr.bf16.mxu0 0
        %722 = vmatmul.mubr.bf16.gmra.mxu0 %v680
        %v723 = vpop.f32.mrf.mxu0
        %v724 = vadd.f32 %v687, %v723
        %v725 = vpop.f32.mrf.mxu0
        %v726 = vpop.f32.mrf.mxu0
        %v727 = vpop.f32.mrf.mxu0
        %728 = vdwg.mxu0
        %vm729 = vcmask 261120
        %v730 = vsel %vm729, %v724, -inf
        %731 = vmax.xlane.f32.xlu0 %v730
        %v732 = vpop.xlane.xlu0 %731
        %v733 = vsub.f32 %v724, %v732
        %v734 = vmul.f32 %v733, 1.442695
        %v735 = vpow.pop %v734
        %v737 = vsel %vm729, %v735, 0
        %739 = vmatprep.subr.mxu0 0.0
        %740 = vmatpush1.msra.mxu0 0.0
        %741 = vmatprep.subr.mxu0 0.0
        %742 = vmatpush1.msra.mxu0 0.0
        %743 = vmatprep.subr.mxu0 0.0
        %744 = vmatpush1.msra.mxu0 0.0
        %745 = vmatprep.subr.mxu0 0.0
        %746 = vmatpush1.msra.mxu0 0.0
        %747 = vmatprep.subr.mxu0 0.0
        %748 = vmatpush1.msra.mxu0 0.0
        %749 = vmatprep.subr.mxu0 0.0
        %750 = vmatpush1.msra.mxu0 0.0
        %751 = vmatprep.subr.mxu0 0.0
        %752 = vmatpush1.msra.mxu0 0.0
        %753 = vmatprep.subr.mxu0 0.0
        %754 = vmatpush1.msra.mxu0 0.0
        %755 = vmatprep.subr.mxu0 0.0
        %756 = vmatpush1.msra.mxu0 0.0
        %757 = vmatprep.subr.mxu0 0.0
        %758 = vmatpush1.msra.mxu0 0.0
        %759 = vmatprep.subr.mxu0 0.0
        %760 = vmatpush1.msra.mxu0 0.0
        %761 = vmatprep.subr.mxu0 0.0
        %762 = vmatpush1.msra.mxu0 0.0
        %763 = vmatprep.subr.mxu0 0.0
        %764 = vmatpush1.msra.mxu0 %v311
        %765 = vmatprep.subr.mxu0 0.0
        %766 = vmatpush1.msra.mxu0 %v310
        %767 = vmatprep.subr.mxu0 0.0
        %768 = vmatpush1.msra.mxu0 %v309
        %769 = vmatprep.subr.mxu0 0.0
        %770 = vmatpush1.msra.mxu0 %v308
        %771 = vmatprep.subr.mxu0 0.0
        %772 = vmatpush2.msra.mxu0 0.0
        %773 = vmatprep.subr.mxu0 0.0
        %774 = vmatpush2.msra.mxu0 0.0
        %775 = vmatprep.subr.mxu0 0.0
        %776 = vmatpush2.msra.mxu0 0.0
        %777 = vmatprep.subr.mxu0 0.0
        %778 = vmatpush2.msra.mxu0 0.0
        %779 = vmatprep.subr.mxu0 0.0
        %780 = vmatpush2.msra.mxu0 0.0
        %781 = vmatprep.subr.mxu0 0.0
        %782 = vmatpush2.msra.mxu0 0.0
        %783 = vmatprep.subr.mxu0 0.0
        %784 = vmatpush2.msra.mxu0 0.0
        %785 = vmatprep.subr.mxu0 0.0
        %786 = vmatpush2.msra.mxu0 0.0
        %787 = vmatprep.subr.mxu0 0.0
        %788 = vmatpush2.msra.mxu0 0.0
        %789 = vmatprep.subr.mxu0 0.0
        %790 = vmatpush2.msra.mxu0 0.0
        %791 = vmatprep.subr.mxu0 0.0
        %792 = vmatpush2.msra.mxu0 0.0
        %793 = vmatprep.subr.mxu0 0.0
        %794 = vmatpush2.msra.mxu0 0.0
        %795 = vmatprep.subr.mxu0 0.0
        %796 = vmatpush2.msra.mxu0 0.0
        %797 = vmatprep.subr.mxu0 0.0
        %798 = vmatpush2.msra.mxu0 0.0
        %799 = vmatprep.subr.mxu0 0.0
        %800 = vmatpush2.msra.mxu0 0.0
        %801 = vmatprep.subr.mxu0 0.0
        %802 = vmatpush2.msra.mxu0 0.0
        %803 = vmatprep.mubr.f32.mxu0 0.0
        %804 = vmatmul.mubr.f32.gmra.mxu0 %v737
        %v805 = vpop.f32.mrf.mxu0
        %v806 = vadd.f32 0.0, %v805
        %v807 = vpop.f32.mrf.mxu0
        %808 = vdwg.mxu0
        %v809 = vrcp.pop %v806
        %v810 = vmul.f32 %v735, %v809
        %v811 = vpack.c.bf16 %v810, %v810
        %v812 = vpack.c.bf16 %v677, %v676
        %v813 = vpack.c.bf16 %v679, %v678
        %v815 = vsel %vm729, %v811, 0
        %817 = vmatprep.subr.bf16.mxu0 0
        %818 = vmatpush1.bf16.msra.mxu0 0
        %819 = vmatprep.subr.bf16.mxu0 0
        %820 = vmatpush1.bf16.msra.mxu0 0
        %821 = vmatprep.subr.bf16.mxu0 0
        %822 = vmatpush1.bf16.msra.mxu0 0
        %823 = vmatprep.subr.bf16.mxu0 0
        %824 = vmatpush1.bf16.msra.mxu0 0
        %825 = vmatprep.subr.bf16.mxu0 0
        %826 = vmatpush1.bf16.msra.mxu0 0
        %827 = vmatprep.subr.bf16.mxu0 0
        %828 = vmatpush1.bf16.msra.mxu0 0
        %829 = vmatprep.subr.bf16.mxu0 0
        %830 = vmatpush1.bf16.msra.mxu0 %v813
        %831 = vmatprep.subr.bf16.mxu0 0
        %832 = vmatpush1.bf16.msra.mxu0 %v812
        %833 = vmatprep.subr.bf16.mxu0 0
        %834 = vmatpush2.bf16.msra.mxu0 0
        %835 = vmatprep.subr.bf16.mxu0 0
        %836 = vmatpush2.bf16.msra.mxu0 0
        %837 = vmatprep.subr.bf16.mxu0 0
        %838 = vmatpush2.bf16.msra.mxu0 0
        %839 = vmatprep.subr.bf16.mxu0 0
        %840 = vmatpush2.bf16.msra.mxu0 0
        %841 = vmatprep.subr.bf16.mxu0 0
        %842 = vmatpush2.bf16.msra.mxu0 0
        %843 = vmatprep.subr.bf16.mxu0 0
        %844 = vmatpush2.bf16.msra.mxu0 0
        %845 = vmatprep.subr.bf16.mxu0 0
        %846 = vmatpush2.bf16.msra.mxu0 0
        %847 = vmatprep.subr.bf16.mxu0 0
        %848 = vmatpush2.bf16.msra.mxu0 0
        %849 = vmatprep.mubr.bf16.mxu0 0
        %850 = vmatmul.mubr.bf16.gmra.mxu0 %v815
        %v851 = vpop.f32.mrf.mxu0
        %v852 = vadd.f32 0.0, %v851
        %v853 = vpop.f32.mrf.mxu0
        %v854 = vpop.f32.mrf.mxu0
        %v855 = vpop.f32.mrf.mxu0
        %856 = vdwg.mxu0
        %v857 = vld [vmem:[#allocation4 + $0xc0] sm:$0xf]
        %v858 = vld [vmem:[#allocation4 + $0xc4] sm:$0xf]
        %v859 = vld [vmem:[#allocation4 + $0xc8] sm:$0xf]
        %v860 = vld [vmem:[#allocation4 + $0xcc] sm:$0xf]
        %v861 = vld [vmem:[#allocation4 + $0xd0] sm:$0xf]
        %v862 = vld [vmem:[#allocation4 + $0xd4] sm:$0xf]
        %v863 = vld [vmem:[#allocation4 + $0xd8] sm:$0xf]
        %v864 = vld [vmem:[#allocation4 + $0xdc] sm:$0xf]
        %v865 = vld [vmem:[#allocation4 + $0xe0] sm:$0xf]
        %v866 = vld [vmem:[#allocation4 + $0xe4] sm:$0xf]
        %v867 = vld [vmem:[#allocation4 + $0xe8] sm:$0xf]
        %v868 = vld [vmem:[#allocation4 + $0xec] sm:$0xf]
        %v869 = vld [vmem:[#allocation4 + $0xf0] sm:$0xf]
        %v870 = vld [vmem:[#allocation4 + $0xf4] sm:$0xf]
        %v871 = vld [vmem:[#allocation4 + $0xf8] sm:$0xf]
        %v872 = vld [vmem:[#allocation4 + $0xfc] sm:$0xf]
        %v873 = vpack.c.bf16 %v852, %v852
        %v874 = vld [vmem:[%s5 + $0x5] sm:$0x1]
        %v875 = vlaneseq
        %v876 = vshrl.u32 %v875, 7
        %v877 = vsub.s32 0, %v876
        %v878 = vrot.slane %v874, %v877
        %v895 = vunpack.c.l.b16 %v857
        %v896 = vunpack.c.l.b16 %v858
        %v897 = vunpack.c.l.b16 %v859
        %v898 = vunpack.c.l.b16 %v860
        %v899 = vunpack.c.l.b16 %v861
        %v900 = vunpack.c.l.b16 %v862
        %v901 = vunpack.c.l.b16 %v863
        %v902 = vunpack.c.l.b16 %v864
        %v903 = vunpack.c.l.b16 %v865
        %v904 = vunpack.c.l.b16 %v866
        %v905 = vunpack.c.l.b16 %v867
        %v906 = vunpack.c.l.b16 %v868
        %v907 = vunpack.c.l.b16 %v869
        %v908 = vunpack.c.l.b16 %v870
        %v909 = vunpack.c.l.b16 %v871
        %v910 = vunpack.c.l.b16 %v872
        %v911 = vpack.c.b16 %v896, %v895
        %v912 = vpack.c.b16 %v898, %v897
        %v913 = vpack.c.b16 %v900, %v899
        %v914 = vpack.c.b16 %v902, %v901
        %v915 = vpack.c.b16 %v904, %v903
        %v916 = vpack.c.b16 %v906, %v905
        %v917 = vpack.c.b16 %v908, %v907
        %v918 = vpack.c.b16 %v910, %v909
        %927 = vmatprep.subr.bf16.mxu0 0
        %928 = vmatpush1.bf16.msra.mxu0 %v918
        %929 = vmatprep.subr.bf16.mxu0 0
        %930 = vmatpush1.bf16.msra.mxu0 %v917
        %931 = vmatprep.subr.bf16.mxu0 0
        %932 = vmatpush1.bf16.msra.mxu0 %v916
        %933 = vmatprep.subr.bf16.mxu0 0
        %934 = vmatpush1.bf16.msra.mxu0 %v915
        %935 = vmatprep.subr.bf16.mxu0 0
        %936 = vmatpush1.bf16.msra.mxu0 %v914
        %937 = vmatprep.subr.bf16.mxu0 0
        %938 = vmatpush1.bf16.msra.mxu0 %v913
        %939 = vmatprep.subr.bf16.mxu0 0
        %940 = vmatpush1.bf16.msra.mxu0 %v912
        %941 = vmatprep.subr.bf16.mxu0 0
        %942 = vmatpush1.bf16.msra.mxu0 %v911
        %943 = vmatprep.subr.bf16.mxu0 0
        %944 = vmatpush2.bf16.msra.mxu0 0
        %945 = vmatprep.subr.bf16.mxu0 0
        %946 = vmatpush2.bf16.msra.mxu0 0
        %947 = vmatprep.subr.bf16.mxu0 0
        %948 = vmatpush2.bf16.msra.mxu0 0
        %949 = vmatprep.subr.bf16.mxu0 0
        %950 = vmatpush2.bf16.msra.mxu0 0
        %951 = vmatprep.subr.bf16.mxu0 0
        %952 = vmatpush2.bf16.msra.mxu0 0
        %953 = vmatprep.subr.bf16.mxu0 0
        %954 = vmatpush2.bf16.msra.mxu0 0
        %955 = vmatprep.subr.bf16.mxu0 0
        %956 = vmatpush2.bf16.msra.mxu0 0
        %957 = vmatprep.subr.bf16.mxu0 0
        %958 = vmatpush2.bf16.msra.mxu0 0
        %959 = vmatprep.mubr.bf16.mxu0 0
        %960 = vmatmul.mubr.bf16.gmra.mxu0 %v873
        %v961 = vpop.f32.mrf.mxu0
        %v962 = vadd.f32 %v878, %v961
        %v963 = vpop.f32.mrf.mxu0
        %v964 = vpop.f32.mrf.mxu0
        %v965 = vpop.f32.mrf.mxu0
        %966 = vdwg.mxu0
        %v967 = vadd.f32 %v342, %v962
        %v968 = vld [vmem:[%s5 + $0x6] sm:$0x1]
        %v969 = vld [vmem:[%s5 + $0x7] sm:$0x1]
        %970 = vadd.xlane.f32.xlu0 %v967
        %v971 = vpop.xlane.xlu0 %970
        %v972 = vmul.f32 %v971, 0.03125
        %v973 = vsub.f32 %v967, %v972
        %v974 = vmul.f32 %v973, %v277
        %v975 = vmul.f32 %v974, %v974
        %976 = vadd.xlane.f32.xlu0 %v975
        %v977 = vpop.xlane.xlu0 %976
        %v978 = vmul.f32 %v977, 0.03125
        %v979 = vadd.f32 %v978, 1e-05
        %v980 = vrsqrt.pop %v979
        %v981 = vmul.f32 %v974, %v980
        %v982 = vlaneseq
        %v983 = vshrl.u32 %v982, 7
        %v984 = vsub.s32 0, %v983
        %v985 = vrot.slane %v968, %v984
        %v986 = vmul.f32 %v981, %v985
        %v987 = vlaneseq
        %v988 = vshrl.u32 %v987, 7
        %v989 = vsub.s32 0, %v988
        %v990 = vrot.slane %v969, %v989
        %v991 = vadd.f32 %v986, %v990
        %v992 = vld [vmem:[#allocation4 + $0x100] sm:$0xf]
        %v993 = vld [vmem:[#allocation4 + $0x104] sm:$0xf]
        %v994 = vld [vmem:[#allocation4 + $0x108] sm:$0xf]
        %v995 = vld [vmem:[#allocation4 + $0x10c] sm:$0xf]
        %v996 = vld [vmem:[#allocation4 + $0x110] sm:$0xf]
        %v997 = vld [vmem:[#allocation4 + $0x114] sm:$0xf]
        %v998 = vld [vmem:[#allocation4 + $0x118] sm:$0xf]
        %v999 = vld [vmem:[#allocation4 + $0x11c] sm:$0xf]
        %v1000 = vld [vmem:[#allocation4 + $0x120] sm:$0xf]
        %v1001 = vld [vmem:[#allocation4 + $0x124] sm:$0xf]
        %v1002 = vld [vmem:[#allocation4 + $0x128] sm:$0xf]
        %v1003 = vld [vmem:[#allocation4 + $0x12c] sm:$0xf]
        %v1004 = vld [vmem:[#allocation4 + $0x130] sm:$0xf]
        %v1005 = vld [vmem:[#allocation4 + $0x134] sm:$0xf]
        %v1006 = vld [vmem:[#allocation4 + $0x138] sm:$0xf]
        %v1007 = vld [vmem:[#allocation4 + $0x13c] sm:$0xf]
        %v1008 = vpack.c.bf16 %v991, %v991
        %v1009 = vld [vmem:[%s5 + $0x8] sm:$0x1]
        %v1010 = vlaneseq
        %v1011 = vshrl.u32 %v1010, 7
        %v1012 = vsub.s32 0, %v1011
        %v1013 = vrot.slane %v1009, %v1012
        %v1030 = vunpack.c.l.b16 %v992
        %v1031 = vunpack.c.l.b16 %v993
        %v1032 = vunpack.c.l.b16 %v994
        %v1033 = vunpack.c.l.b16 %v995
        %v1034 = vunpack.c.l.b16 %v996
        %v1035 = vunpack.c.l.b16 %v997
        %v1036 = vunpack.c.l.b16 %v998
        %v1037 = vunpack.c.l.b16 %v999
        %v1038 = vunpack.c.l.b16 %v1000
        %v1039 = vunpack.c.l.b16 %v1001
        %v1040 = vunpack.c.l.b16 %v1002
        %v1041 = vunpack.c.l.b16 %v1003
        %v1042 = vunpack.c.l.b16 %v1004
        %v1043 = vunpack.c.l.b16 %v1005
        %v1044 = vunpack.c.l.b16 %v1006
        %v1045 = vunpack.c.l.b16 %v1007
        %v1046 = vpack.c.b16 %v1031, %v1030
        %v1047 = vpack.c.b16 %v1033, %v1032
        %v1048 = vpack.c.b16 %v1035, %v1034
        %v1049 = vpack.c.b16 %v1037, %v1036
        %v1050 = vpack.c.b16 %v1039, %v1038
        %v1051 = vpack.c.b16 %v1041, %v1040
        %v1052 = vpack.c.b16 %v1043, %v1042
        %v1053 = vpack.c.b16 %v1045, %v1044
        %1062 = vmatprep.subr.bf16.mxu0 0
        %1063 = vmatpush1.bf16.msra.mxu0 %v1053
        %1064 = vmatprep.subr.bf16.mxu0 0
        %1065 = vmatpush1.bf16.msra.mxu0 %v1052
        %1066 = vmatprep.subr.bf16.mxu0 0
        %1067 = vmatpush1.bf16.msra.mxu0 %v1051
        %1068 = vmatprep.subr.bf16.mxu0 0
        %1069 = vmatpush1.bf16.msra.mxu0 %v1050
        %1070 = vmatprep.subr.bf16.mxu0 0
        %1071 = vmatpush1.bf16.msra.mxu0 %v1049
        %1072 = vmatprep.subr.bf16.mxu0 0
        %1073 = vmatpush1.bf16.msra.mxu0 %v1048
        %1074 = vmatprep.subr.bf16.mxu0 0
        %1075 = vmatpush1.bf16.msra.mxu0 %v1047
        %1076 = vmatprep.subr.bf16.mxu0 0
        %1077 = vmatpush1.bf16.msra.mxu0 %v1046
        %1078 = vmatprep.subr.bf16.mxu0 0
        %1079 = vmatpush2.bf16.msra.mxu0 0
        %1080 = vmatprep.subr.bf16.mxu0 0
        %1081 = vmatpush2.bf16.msra.mxu0 0
        %1082 = vmatprep.subr.bf16.mxu0 0
        %1083 = vmatpush2.bf16.msra.mxu0 0
        %1084 = vmatprep.subr.bf16.mxu0 0
        %1085 = vmatpush2.bf16.msra.mxu0 0
        %1086 = vmatprep.subr.bf16.mxu0 0
        %1087 = vmatpush2.bf16.msra.mxu0 0
        %1088 = vmatprep.subr.bf16.mxu0 0
        %1089 = vmatpush2.bf16.msra.mxu0 0
        %1090 = vmatprep.subr.bf16.mxu0 0
        %1091 = vmatpush2.bf16.msra.mxu0 0
        %1092 = vmatprep.subr.bf16.mxu0 0
        %1093 = vmatpush2.bf16.msra.mxu0 0
        %1094 = vmatprep.mubr.bf16.mxu0 0
        %1095 = vmatmul.mubr.bf16.gmra.mxu0 %v1008
        %v1096 = vpop.f32.mrf.mxu0
        %v1097 = vadd.f32 %v1013, %v1096
        %v1098 = vpop.f32.mrf.mxu0
        %v1099 = vpop.f32.mrf.mxu0
        %v1100 = vpop.f32.mrf.mxu0
        %1101 = vdwg.mxu0
        %v1102 = vmul.f32 %v1097, %v1097
        %v1103 = vmul.f32 %v1097, %v1102
        %v1104 = vmul.f32 %v1103, 0.044715
        %v1105 = vadd.f32 %v1097, %v1104
        %v1106 = vmul.f32 %v1105, 0.7978846
        %v1107 = vtanh.pop %v1106
        %v1108 = vadd.f32 %v1107, 1.0
        %v1109 = vmul.f32 %v1108, 0.5
        %v1110 = vmul.f32 %v1097, %v1109
        %v1111 = vld [vmem:[#allocation4 + $0x140] sm:$0xf]
        %v1112 = vld [vmem:[#allocation4 + $0x144] sm:$0xf]
        %v1113 = vld [vmem:[#allocation4 + $0x148] sm:$0xf]
        %v1114 = vld [vmem:[#allocation4 + $0x14c] sm:$0xf]
        %v1115 = vld [vmem:[#allocation4 + $0x150] sm:$0xf]
        %v1116 = vld [vmem:[#allocation4 + $0x154] sm:$0xf]
        %v1117 = vld [vmem:[#allocation4 + $0x158] sm:$0xf]
        %v1118 = vld [vmem:[#allocation4 + $0x15c] sm:$0xf]
        %v1119 = vld [vmem:[#allocation4 + $0x160] sm:$0xf]
        %v1120 = vld [vmem:[#allocation4 + $0x164] sm:$0xf]
        %v1121 = vld [vmem:[#allocation4 + $0x168] sm:$0xf]
        %v1122 = vld [vmem:[#allocation4 + $0x16c] sm:$0xf]
        %v1123 = vld [vmem:[#allocation4 + $0x170] sm:$0xf]
        %v1124 = vld [vmem:[#allocation4 + $0x174] sm:$0xf]
        %v1125 = vld [vmem:[#allocation4 + $0x178] sm:$0xf]
        %v1126 = vld [vmem:[#allocation4 + $0x17c] sm:$0xf]
        %v1127 = vpack.c.bf16 %v1110, %v1110
        %v1128 = vld [vmem:[%s5 + $0x9] sm:$0x1]
        %v1129 = vlaneseq
        %v1130 = vshrl.u32 %v1129, 7
        %v1131 = vsub.s32 0, %v1130
        %v1132 = vrot.slane %v1128, %v1131
        %v1149 = vunpack.c.l.b16 %v1111
        %v1150 = vunpack.c.l.b16 %v1112
        %v1151 = vunpack.c.l.b16 %v1113
        %v1152 = vunpack.c.l.b16 %v1114
        %v1153 = vunpack.c.l.b16 %v1115
        %v1154 = vunpack.c.l.b16 %v1116
        %v1155 = vunpack.c.l.b16 %v1117
        %v1156 = vunpack.c.l.b16 %v1118
        %v1157 = vunpack.c.l.b16 %v1119
        %v1158 = vunpack.c.l.b16 %v1120
        %v1159 = vunpack.c.l.b16 %v1121
        %v1160 = vunpack.c.l.b16 %v1122
        %v1161 = vunpack.c.l.b16 %v1123
        %v1162 = vunpack.c.l.b16 %v1124
        %v1163 = vunpack.c.l.b16 %v1125
        %v1164 = vunpack.c.l.b16 %v1126
        %v1165 = vpack.c.b16 %v1150, %v1149
        %v1166 = vpack.c.b16 %v1152, %v1151
        %v1167 = vpack.c.b16 %v1154, %v1153
        %v1168 = vpack.c.b16 %v1156, %v1155
        %v1169 = vpack.c.b16 %v1158, %v1157
        %v1170 = vpack.c.b16 %v1160, %v1159
        %v1171 = vpack.c.b16 %v1162, %v1161
        %v1172 = vpack.c.b16 %v1164, %v1163
        %1181 = vmatprep.subr.bf16.mxu0 0
        %1182 = vmatpush1.bf16.msra.mxu0 %v1172
        %1183 = vmatprep.subr.bf16.mxu0 0
        %1184 = vmatpush1.bf16.msra.mxu0 %v1171
        %1185 = vmatprep.subr.bf16.mxu0 0
        %1186 = vmatpush1.bf16.msra.mxu0 %v1170
        %1187 = vmatprep.subr.bf16.mxu0 0
        %1188 = vmatpush1.bf16.msra.mxu0 %v1169
        %1189 = vmatprep.subr.bf16.mxu0 0
        %1190 = vmatpush1.bf16.msra.mxu0 %v1168
        %1191 = vmatprep.subr.bf16.mxu0 0
        %1192 = vmatpush1.bf16.msra.mxu0 %v1167
        %1193 = vmatprep.subr.bf16.mxu0 0
        %1194 = vmatpush1.bf16.msra.mxu0 %v1166
        %1195 = vmatprep.subr.bf16.mxu0 0
        %1196 = vmatpush1.bf16.msra.mxu0 %v1165
        %1197 = vmatprep.subr.bf16.mxu0 0
        %1198 = vmatpush2.bf16.msra.mxu0 0
        %1199 = vmatprep.subr.bf16.mxu0 0
        %1200 = vmatpush2.bf16.msra.mxu0 0
        %1201 = vmatprep.subr.bf16.mxu0 0
        %1202 = vmatpush2.bf16.msra.mxu0 0
        %1203 = vmatprep.subr.bf16.mxu0 0
        %1204 = vmatpush2.bf16.msra.mxu0 0
        %1205 = vmatprep.subr.bf16.mxu0 0
        %1206 = vmatpush2.bf16.msra.mxu0 0
        %1207 = vmatprep.subr.bf16.mxu0 0
        %1208 = vmatpush2.bf16.msra.mxu0 0
        %1209 = vmatprep.subr.bf16.mxu0 0
        %1210 = vmatpush2.bf16.msra.mxu0 0
        %1211 = vmatprep.subr.bf16.mxu0 0
        %1212 = vmatpush2.bf16.msra.mxu0 0
        %1213 = vmatprep.mubr.bf16.mxu0 0
        %1214 = vmatmul.mubr.bf16.gmra.mxu0 %v1127
        %v1215 = vpop.f32.mrf.mxu0
        %v1216 = vadd.f32 %v1132, %v1215
        %v1217 = vpop.f32.mrf.mxu0
        %v1218 = vpop.f32.mrf.mxu0
        %v1219 = vpop.f32.mrf.mxu0
        %1220 = vdwg.mxu0
        %v1221 = vadd.f32 %v991, %v1216
        %v1222 = vld [vmem:[%s5 + $0xa] sm:$0x1]
        %v1223 = vld [vmem:[%s5 + $0xb] sm:$0x1]
        %1224 = vadd.xlane.f32.xlu0 %v1221
        %v1225 = vpop.xlane.xlu0 %1224
        %v1226 = vmul.f32 %v1225, 0.03125
        %v1227 = vsub.f32 %v1221, %v1226
        %v1228 = vmul.f32 %v1227, %v277
        %v1229 = vmul.f32 %v1228, %v1228
        %1230 = vadd.xlane.f32.xlu0 %v1229
        %v1231 = vpop.xlane.xlu0 %1230
        %v1232 = vmul.f32 %v1231, 0.03125
        %v1233 = vadd.f32 %v1232, 1e-05
        %v1234 = vrsqrt.pop %v1233
        %v1235 = vmul.f32 %v1228, %v1234
        %v1236 = vlaneseq
        %v1237 = vshrl.u32 %v1236, 7
        %v1238 = vsub.s32 0, %v1237
        %v1239 = vrot.slane %v1222, %v1238
        %v1240 = vmul.f32 %v1235, %v1239
        %v1241 = vlaneseq
        %v1242 = vshrl.u32 %v1241, 7
        %v1243 = vsub.s32 0, %v1242
        %v1244 = vrot.slane %v1223, %v1243
        %v1245 = vadd.f32 %v1240, %v1244
        %v1246 = vld [vmem:[%s268] sm:$0xff]
        %v1247 = vld [vmem:[%s5 + $0xc] sm:$0x1]
        %v1248 = vld [vmem:[%s5 + $0xd] sm:$0x1]
        %1249 = vadd.xlane.f32.xlu0 %v1246
        %v1250 = vpop.xlane.xlu0 %1249
        %v1251 = vmul.f32 %v1250, 0.03125
        %v1252 = vsub.f32 %v1246, %v1251
        %v1253 = vmul.f32 %v1252, %v277
        %v1254 = vmul.f32 %v1253, %v1253
        %1255 = vadd.xlane.f32.xlu0 %v1254
        %v1256 = vpop.xlane.xlu0 %1255
        %v1257 = vmul.f32 %v1256, 0.03125
        %v1258 = vadd.f32 %v1257, 1e-05
        %v1259 = vrsqrt.pop %v1258
        %v1260 = vmul.f32 %v1253, %v1259
        %v1261 = vlaneseq
        %v1262 = vshrl.u32 %v1261, 7
        %v1263 = vsub.s32 0, %v1262
        %v1264 = vrot.slane %v1247, %v1263
        %v1265 = vmul.f32 %v1260, %v1264
        %v1266 = vlaneseq
        %v1267 = vshrl.u32 %v1266, 7
        %v1268 = vsub.s32 0, %v1267
        %v1269 = vrot.slane %v1248, %v1268
        %v1270 = vadd.f32 %v1265, %v1269
        %v1271 = vld [vmem:[#allocation4 + $0x180] sm:$0xf]
        %v1272 = vld [vmem:[#allocation4 + $0x184] sm:$0xf]
        %v1273 = vld [vmem:[#allocation4 + $0x188] sm:$0xf]
        %v1274 = vld [vmem:[#allocation4 + $0x18c] sm:$0xf]
        %v1275 = vld [vmem:[#allocation4 + $0x190] sm:$0xf]
        %v1276 = vld [vmem:[#allocation4 + $0x194] sm:$0xf]
        %v1277 = vld [vmem:[#allocation4 + $0x198] sm:$0xf]
        %v1278 = vld [vmem:[#allocation4 + $0x19c] sm:$0xf]
        %v1279 = vld [vmem:[#allocation4 + $0x1a0] sm:$0xf]
        %v1280 = vld [vmem:[#allocation4 + $0x1a4] sm:$0xf]
        %v1281 = vld [vmem:[#allocation4 + $0x1a8] sm:$0xf]
        %v1282 = vld [vmem:[#allocation4 + $0x1ac] sm:$0xf]
        %v1283 = vld [vmem:[#allocation4 + $0x1b0] sm:$0xf]
        %v1284 = vld [vmem:[#allocation4 + $0x1b4] sm:$0xf]
        %v1285 = vld [vmem:[#allocation4 + $0x1b8] sm:$0xf]
        %v1286 = vld [vmem:[#allocation4 + $0x1bc] sm:$0xf]
        %v1287 = vpack.c.bf16 %v1270, %v1270
        %v1288 = vld [vmem:[%s5 + $0xe] sm:$0x1]
        %v1289 = vlaneseq
        %v1290 = vshrl.u32 %v1289, 7
        %v1291 = vsub.s32 0, %v1290
        %v1292 = vrot.slane %v1288, %v1291
        %v1309 = vunpack.c.l.b16 %v1271
        %v1310 = vunpack.c.l.b16 %v1272
        %v1311 = vunpack.c.l.b16 %v1273
        %v1312 = vunpack.c.l.b16 %v1274
        %v1313 = vunpack.c.l.b16 %v1275
        %v1314 = vunpack.c.l.b16 %v1276
        %v1315 = vunpack.c.l.b16 %v1277
        %v1316 = vunpack.c.l.b16 %v1278
        %v1317 = vunpack.c.l.b16 %v1279
        %v1318 = vunpack.c.l.b16 %v1280
        %v1319 = vunpack.c.l.b16 %v1281
        %v1320 = vunpack.c.l.b16 %v1282
        %v1321 = vunpack.c.l.b16 %v1283
        %v1322 = vunpack.c.l.b16 %v1284
        %v1323 = vunpack.c.l.b16 %v1285
        %v1324 = vunpack.c.l.b16 %v1286
        %v1325 = vpack.c.b16 %v1310, %v1309
        %v1326 = vpack.c.b16 %v1312, %v1311
        %v1327 = vpack.c.b16 %v1314, %v1313
        %v1328 = vpack.c.b16 %v1316, %v1315
        %v1329 = vpack.c.b16 %v1318, %v1317
        %v1330 = vpack.c.b16 %v1320, %v1319
        %v1331 = vpack.c.b16 %v1322, %v1321
        %v1332 = vpack.c.b16 %v1324, %v1323
        %1341 = vmatprep.subr.bf16.mxu0 0
        %1342 = vmatpush1.bf16.msra.mxu0 %v1332
        %1343 = vmatprep.subr.bf16.mxu0 0
        %1344 = vmatpush1.bf16.msra.mxu0 %v1331
        %1345 = vmatprep.subr.bf16.mxu0 0
        %1346 = vmatpush1.bf16.msra.mxu0 %v1330
        %1347 = vmatprep.subr.bf16.mxu0 0
        %1348 = vmatpush1.bf16.msra.mxu0 %v1329
        %1349 = vmatprep.subr.bf16.mxu0 0
        %1350 = vmatpush1.bf16.msra.mxu0 %v1328
        %1351 = vmatprep.subr.bf16.mxu0 0
        %1352 = vmatpush1.bf16.msra.mxu0 %v1327
        %1353 = vmatprep.subr.bf16.mxu0 0
        %1354 = vmatpush1.bf16.msra.mxu0 %v1326
        %1355 = vmatprep.subr.bf16.mxu0 0
        %1356 = vmatpush1.bf16.msra.mxu0 %v1325
        %1357 = vmatprep.subr.bf16.mxu0 0
        %1358 = vmatpush2.bf16.msra.mxu0 0
        %1359 = vmatprep.subr.bf16.mxu0 0
        %1360 = vmatpush2.bf16.msra.mxu0 0
        %1361 = vmatprep.subr.bf16.mxu0 0
        %1362 = vmatpush2.bf16.msra.mxu0 0
        %1363 = vmatprep.subr.bf16.mxu0 0
        %1364 = vmatpush2.bf16.msra.mxu0 0
        %1365 = vmatprep.subr.bf16.mxu0 0
        %1366 = vmatpush2.bf16.msra.mxu0 0
        %1367 = vmatprep.subr.bf16.mxu0 0
        %1368 = vmatpush2.bf16.msra.mxu0 0
        %1369 = vmatprep.subr.bf16.mxu0 0
        %1370 = vmatpush2.bf16.msra.mxu0 0
        %1371 = vmatprep.subr.bf16.mxu0 0
        %1372 = vmatpush2.bf16.msra.mxu0 0
        %1373 = vmatprep.mubr.bf16.mxu0 0
        %1374 = vmatmul.mubr.bf16.gmra.mxu0 %v1287
        %v1375 = vpop.f32.mrf.mxu0
        %v1376 = vadd.f32 %v1292, %v1375
        %v1377 = vpop.f32.mrf.mxu0
        %v1378 = vpop.f32.mrf.mxu0
        %v1379 = vpop.f32.mrf.mxu0
        %1380 = vdwg.mxu0
        %v1381 = vmul.f32 %v1376, 0.35355338
        %v1382 = vld [vmem:[#allocation4 + $0x1c0] sm:$0xf]
        %v1383 = vld [vmem:[#allocation4 + $0x1c4] sm:$0xf]
        %v1384 = vld [vmem:[#allocation4 + $0x1c8] sm:$0xf]
        %v1385 = vld [vmem:[#allocation4 + $0x1cc] sm:$0xf]
        %v1386 = vld [vmem:[#allocation4 + $0x1d0] sm:$0xf]
        %v1387 = vld [vmem:[#allocation4 + $0x1d4] sm:$0xf]
        %v1388 = vld [vmem:[#allocation4 + $0x1d8] sm:$0xf]
        %v1389 = vld [vmem:[#allocation4 + $0x1dc] sm:$0xf]
        %v1390 = vld [vmem:[#allocation4 + $0x1e0] sm:$0xf]
        %v1391 = vld [vmem:[#allocation4 + $0x1e4] sm:$0xf]
        %v1392 = vld [vmem:[#allocation4 + $0x1e8] sm:$0xf]
        %v1393 = vld [vmem:[#allocation4 + $0x1ec] sm:$0xf]
        %v1394 = vld [vmem:[#allocation4 + $0x1f0] sm:$0xf]
        %v1395 = vld [vmem:[#allocation4 + $0x1f4] sm:$0xf]
        %v1396 = vld [vmem:[#allocation4 + $0x1f8] sm:$0xf]
        %v1397 = vld [vmem:[#allocation4 + $0x1fc] sm:$0xf]
        %v1398 = vld [vmem:[%s5 + $0xf] sm:$0x1]
        %v1399 = vlaneseq
        %v1400 = vshrl.u32 %v1399, 7
        %v1401 = vsub.s32 0, %v1400
        %v1402 = vrot.slane %v1398, %v1401
        %v1419 = vunpack.c.l.b16 %v1382
        %v1420 = vunpack.c.l.b16 %v1383
        %v1421 = vunpack.c.l.b16 %v1384
        %v1422 = vunpack.c.l.b16 %v1385
        %v1423 = vunpack.c.l.b16 %v1386
        %v1424 = vunpack.c.l.b16 %v1387
        %v1425 = vunpack.c.l.b16 %v1388
        %v1426 = vunpack.c.l.b16 %v1389
        %v1427 = vunpack.c.l.b16 %v1390
        %v1428 = vunpack.c.l.b16 %v1391
        %v1429 = vunpack.c.l.b16 %v1392
        %v1430 = vunpack.c.l.b16 %v1393
        %v1431 = vunpack.c.l.b16 %v1394
        %v1432 = vunpack.c.l.b16 %v1395
        %v1433 = vunpack.c.l.b16 %v1396
        %v1434 = vunpack.c.l.b16 %v1397
        %v1435 = vpack.c.b16 %v1420, %v1419
        %v1436 = vpack.c.b16 %v1422, %v1421
        %v1437 = vpack.c.b16 %v1424, %v1423
        %v1438 = vpack.c.b16 %v1426, %v1425
        %v1439 = vpack.c.b16 %v1428, %v1427
        %v1440 = vpack.c.b16 %v1430, %v1429
        %v1441 = vpack.c.b16 %v1432, %v1431
        %v1442 = vpack.c.b16 %v1434, %v1433
        %1451 = vmatprep.subr.bf16.mxu0 0
        %1452 = vmatpush1.bf16.msra.mxu0 %v1442
        %1453 = vmatprep.subr.bf16.mxu0 0
        %1454 = vmatpush1.bf16.msra.mxu0 %v1441
        %1455 = vmatprep.subr.bf16.mxu0 0
        %1456 = vmatpush1.bf16.msra.mxu0 %v1440
        %1457 = vmatprep.subr.bf16.mxu0 0
        %1458 = vmatpush1.bf16.msra.mxu0 %v1439
        %1459 = vmatprep.subr.bf16.mxu0 0
        %1460 = vmatpush1.bf16.msra.mxu0 %v1438
        %1461 = vmatprep.subr.bf16.mxu0 0
        %1462 = vmatpush1.bf16.msra.mxu0 %v1437
        %1463 = vmatprep.subr.bf16.mxu0 0
        %1464 = vmatpush1.bf16.msra.mxu0 %v1436
        %1465 = vmatprep.subr.bf16.mxu0 0
        %1466 = vmatpush1.bf16.msra.mxu0 %v1435
        %1467 = vmatprep.subr.bf16.mxu0 0
        %1468 = vmatpush2.bf16.msra.mxu0 0
        %1469 = vmatprep.subr.bf16.mxu0 0
        %1470 = vmatpush2.bf16.msra.mxu0 0
        %1471 = vmatprep.subr.bf16.mxu0 0
        %1472 = vmatpush2.bf16.msra.mxu0 0
        %1473 = vmatprep.subr.bf16.mxu0 0
        %1474 = vmatpush2.bf16.msra.mxu0 0
        %1475 = vmatprep.subr.bf16.mxu0 0
        %1476 = vmatpush2.bf16.msra.mxu0 0
        %1477 = vmatprep.subr.bf16.mxu0 0
        %1478 = vmatpush2.bf16.msra.mxu0 0
        %1479 = vmatprep.subr.bf16.mxu0 0
        %1480 = vmatpush2.bf16.msra.mxu0 0
        %1481 = vmatprep.subr.bf16.mxu0 0
        %1482 = vmatpush2.bf16.msra.mxu0 0
        %1483 = vmatprep.mubr.bf16.mxu0 0
        %1484 = vmatmul.mubr.bf16.gmra.mxu0 %v1287
        %v1485 = vpop.f32.mrf.mxu0
        %v1486 = vadd.f32 %v1402, %v1485
        %v1487 = vpop.f32.mrf.mxu0
        %v1488 = vpop.f32.mrf.mxu0
        %v1489 = vpop.f32.mrf.mxu0
        %1490 = vdwg.mxu0
        %v1491 = vld [vmem:[#allocation4 + $0x200] sm:$0xf]
        %v1492 = vld [vmem:[#allocation4 + $0x204] sm:$0xf]
        %v1493 = vld [vmem:[#allocation4 + $0x208] sm:$0xf]
        %v1494 = vld [vmem:[#allocation4 + $0x20c] sm:$0xf]
        %v1495 = vld [vmem:[#allocation4 + $0x210] sm:$0xf]
        %v1496 = vld [vmem:[#allocation4 + $0x214] sm:$0xf]
        %v1497 = vld [vmem:[#allocation4 + $0x218] sm:$0xf]
        %v1498 = vld [vmem:[#allocation4 + $0x21c] sm:$0xf]
        %v1499 = vld [vmem:[#allocation4 + $0x220] sm:$0xf]
        %v1500 = vld [vmem:[#allocation4 + $0x224] sm:$0xf]
        %v1501 = vld [vmem:[#allocation4 + $0x228] sm:$0xf]
        %v1502 = vld [vmem:[#allocation4 + $0x22c] sm:$0xf]
        %v1503 = vld [vmem:[#allocation4 + $0x230] sm:$0xf]
        %v1504 = vld [vmem:[#allocation4 + $0x234] sm:$0xf]
        %v1505 = vld [vmem:[#allocation4 + $0x238] sm:$0xf]
        %v1506 = vld [vmem:[#allocation4 + $0x23c] sm:$0xf]
        %v1507 = vld [vmem:[%s5 + $0x10] sm:$0x1]
        %v1508 = vlaneseq
        %v1509 = vshrl.u32 %v1508, 7
        %v1510 = vsub.s32 0, %v1509
        %v1511 = vrot.slane %v1507, %v1510
        %v1528 = vunpack.c.l.b16 %v1491
        %v1529 = vunpack.c.l.b16 %v1492
        %v1530 = vunpack.c.l.b16 %v1493
        %v1531 = vunpack.c.l.b16 %v1494
        %v1532 = vunpack.c.l.b16 %v1495
        %v1533 = vunpack.c.l.b16 %v1496
        %v1534 = vunpack.c.l.b16 %v1497
        %v1535 = vunpack.c.l.b16 %v1498
        %v1536 = vunpack.c.l.b16 %v1499
        %v1537 = vunpack.c.l.b16 %v1500
        %v1538 = vunpack.c.l.b16 %v1501
        %v1539 = vunpack.c.l.b16 %v1502
        %v1540 = vunpack.c.l.b16 %v1503
        %v1541 = vunpack.c.l.b16 %v1504
        %v1542 = vunpack.c.l.b16 %v1505
        %v1543 = vunpack.c.l.b16 %v1506
        %v1544 = vpack.c.b16 %v1529, %v1528
        %v1545 = vpack.c.b16 %v1531, %v1530
        %v1546 = vpack.c.b16 %v1533, %v1532
        %v1547 = vpack.c.b16 %v1535, %v1534
        %v1548 = vpack.c.b16 %v1537, %v1536
        %v1549 = vpack.c.b16 %v1539, %v1538
        %v1550 = vpack.c.b16 %v1541, %v1540
        %v1551 = vpack.c.b16 %v1543, %v1542
        %1560 = vmatprep.subr.bf16.mxu0 0
        %1561 = vmatpush1.bf16.msra.mxu0 %v1551
        %1562 = vmatprep.subr.bf16.mxu0 0
        %1563 = vmatpush1.bf16.msra.mxu0 %v1550
        %1564 = vmatprep.subr.bf16.mxu0 0
        %1565 = vmatpush1.bf16.msra.mxu0 %v1549
        %1566 = vmatprep.subr.bf16.mxu0 0
        %1567 = vmatpush1.bf16.msra.mxu0 %v1548
        %1568 = vmatprep.subr.bf16.mxu0 0
        %1569 = vmatpush1.bf16.msra.mxu0 %v1547
        %1570 = vmatprep.subr.bf16.mxu0 0
        %1571 = vmatpush1.bf16.msra.mxu0 %v1546
        %1572 = vmatprep.subr.bf16.mxu0 0
        %1573 = vmatpush1.bf16.msra.mxu0 %v1545
        %1574 = vmatprep.subr.bf16.mxu0 0
        %1575 = vmatpush1.bf16.msra.mxu0 %v1544
        %1576 = vmatprep.subr.bf16.mxu0 0
        %1577 = vmatpush2.bf16.msra.mxu0 0
        %1578 = vmatprep.subr.bf16.mxu0 0
        %1579 = vmatpush2.bf16.msra.mxu0 0
        %1580 = vmatprep.subr.bf16.mxu0 0
        %1581 = vmatpush2.bf16.msra.mxu0 0
        %1582 = vmatprep.subr.bf16.mxu0 0
        %1583 = vmatpush2.bf16.msra.mxu0 0
        %1584 = vmatprep.subr.bf16.mxu0 0
        %1585 = vmatpush2.bf16.msra.mxu0 0
        %1586 = vmatprep.subr.bf16.mxu0 0
        %1587 = vmatpush2.bf16.msra.mxu0 0
        %1588 = vmatprep.subr.bf16.mxu0 0
        %1589 = vmatpush2.bf16.msra.mxu0 0
        %1590 = vmatprep.subr.bf16.mxu0 0
        %1591 = vmatpush2.bf16.msra.mxu0 0
        %1592 = vmatprep.mubr.bf16.mxu0 0
        %1593 = vmatmul.mubr.bf16.gmra.mxu0 %v1287
        %v1594 = vpop.f32.mrf.mxu0
        %v1595 = vadd.f32 %v1511, %v1594
        %v1596 = vpop.f32.mrf.mxu0
        %v1597 = vpop.f32.mrf.mxu0
        %v1598 = vpop.f32.mrf.mxu0
        %1599 = vdwg.mxu0
        %v1600 = vmul.f32 %v1486, %v300
        %v1601 = vmul.f32 %v1486, %v301
        %v1602 = vmul.f32 %v1486, %v302
        %v1603 = vmul.f32 %v1486, %v303
        %v1604 = vmul.f32 %v1595, %v300
        %v1605 = vmul.f32 %v1595, %v301
        %v1606 = vmul.f32 %v1595, %v302
        %v1607 = vmul.f32 %v1595, %v303
        %v1608 = vpack.c.bf16 %v1381, %v1381
        %v1609 = vpack.c.bf16 %v1601, %v1600
        %v1610 = vpack.c.bf16 %v1603, %v1602
        %1611 = vmatprep.subr.bf16.mxu0 0
        %1612 = vmatpush1.bf16.xpose.msra.mxu0 0
        %1613 = vmatprep.subr.bf16.mxu0 0
        %1614 = vmatpush1.bf16.xpose.msra.mxu0 0
        %1615 = vmatprep.subr.bf16.mxu0 0
        %1616 = vmatpush1.bf16.xpose.msra.mxu0 0
        %1617 = vmatprep.subr.bf16.mxu0 0
        %1618 = vmatpush1.bf16.xpose.msra.mxu0 0
        %1619 = vmatprep.subr.bf16.mxu0 0
        %1620 = vmatpush1.bf16.xpose.msra.mxu0 0
        %1621 = vmatprep.subr.bf16.mxu0 0
        %1622 = vmatpush1.bf16.xpose.msra.mxu0 0
        %1623 = vmatprep.subr.bf16.mxu0 0
        %1624 = vmatpush1.bf16.xpose.msra.mxu0 %v1610
        %1625 = vmatprep.subr.bf16.mxu0 0
        %1626 = vmatpush1.bf16.xpose.msra.mxu0 %v1609
        %1627 = vmatprep.subr.bf16.mxu0 0
        %1628 = vmatpush2.bf16.xpose.msra.mxu0 0
        %1629 = vmatprep.subr.bf16.mxu0 0
        %1630 = vmatpush2.bf16.xpose.msra.mxu0 0
        %1631 = vmatprep.subr.bf16.mxu0 0
        %1632 = vmatpush2.bf16.xpose.msra.mxu0 0
        %1633 = vmatprep.subr.bf16.mxu0 0
        %1634 = vmatpush2.bf16.xpose.msra.mxu0 0
        %1635 = vmatprep.subr.bf16.mxu0 0
        %1636 = vmatpush2.bf16.xpose.msra.mxu0 0
        %1637 = vmatprep.subr.bf16.mxu0 0
        %1638 = vmatpush2.bf16.xpose.msra.mxu0 0
        %1639 = vmatprep.subr.bf16.mxu0 0
        %1640 = vmatpush2.bf16.xpose.msra.mxu0 0
        %1641 = vmatprep.subr.bf16.mxu0 0
        %1642 = vmatpush2.bf16.xpose.msra.mxu0 0
        %1643 = vmatprep.mubr.bf16.mxu0 0
        %1644 = vmatmul.mubr.bf16.gmra.mxu0 %v1608
        %v1645 = vpop.f32.mrf.mxu0
        %v1646 = vadd.f32 %v314, %v1645
        %v1647 = vpop.f32.mrf.mxu0
        %v1648 = vpop.f32.mrf.mxu0
        %v1649 = vpop.f32.mrf.mxu0
        %1650 = vdwg.mxu0
        %v1651 = vsel %vm729, %v1646, -inf
        %1652 = vmax.xlane.f32.xlu0 %v1651
        %v1653 = vpop.xlane.xlu0 %1652
        %v1654 = vsub.f32 %v1646, %v1653
        %v1655 = vmul.f32 %v1654, 1.442695
        %v1656 = vpow.pop %v1655
        %v1658 = vsel %vm729, %v1656, 0
        %1660 = vmatprep.subr.mxu0 0.0
        %1661 = vmatpush1.msra.mxu0 0.0
        %1662 = vmatprep.subr.mxu0 0.0
        %1663 = vmatpush1.msra.mxu0 0.0
        %1664 = vmatprep.subr.mxu0 0.0
        %1665 = vmatpush1.msra.mxu0 0.0
        %1666 = vmatprep.subr.mxu0 0.0
        %1667 = vmatpush1.msra.mxu0 0.0
        %1668 = vmatprep.subr.mxu0 0.0
        %1669 = vmatpush1.msra.mxu0 0.0
        %1670 = vmatprep.subr.mxu0 0.0
        %1671 = vmatpush1.msra.mxu0 0.0
        %1672 = vmatprep.subr.mxu0 0.0
        %1673 = vmatpush1.msra.mxu0 0.0
        %1674 = vmatprep.subr.mxu0 0.0
        %1675 = vmatpush1.msra.mxu0 0.0
        %1676 = vmatprep.subr.mxu0 0.0
        %1677 = vmatpush1.msra.mxu0 0.0
        %1678 = vmatprep.subr.mxu0 0.0
        %1679 = vmatpush1.msra.mxu0 0.0
        %1680 = vmatprep.subr.mxu0 0.0
        %1681 = vmatpush1.msra.mxu0 0.0
        %1682 = vmatprep.subr.mxu0 0.0
        %1683 = vmatpush1.msra.mxu0 0.0
        %1684 = vmatprep.subr.mxu0 0.0
        %1685 = vmatpush1.msra.mxu0 %v311
        %1686 = vmatprep.subr.mxu0 0.0
        %1687 = vmatpush1.msra.mxu0 %v310
        %1688 = vmatprep.subr.mxu0 0.0
        %1689 = vmatpush1.msra.mxu0 %v309
        %1690 = vmatprep.subr.mxu0 0.0
        %1691 = vmatpush1.msra.mxu0 %v308
        %1692 = vmatprep.subr.mxu0 0.0
        %1693 = vmatpush2.msra.mxu0 0.0
        %1694 = vmatprep.subr.mxu0 0.0
        %1695 = vmatpush2.msra.mxu0 0.0
        %1696 = vmatprep.subr.mxu0 0.0
        %1697 = vmatpush2.msra.mxu0 0.0
        %1698 = vmatprep.subr.mxu0 0.0
        %1699 = vmatpush2.msra.mxu0 0.0
        %1700 = vmatprep.subr.mxu0 0.0
        %1701 = vmatpush2.msra.mxu0 0.0
        %1702 = vmatprep.subr.mxu0 0.0
        %1703 = vmatpush2.msra.mxu0 0.0
        %1704 = vmatprep.subr.mxu0 0.0
        %1705 = vmatpush2.msra.mxu0 0.0
        %1706 = vmatprep.subr.mxu0 0.0
        %1707 = vmatpush2.msra.mxu0 0.0
        %1708 = vmatprep.subr.mxu0 0.0
        %1709 = vmatpush2.msra.mxu0 0.0
        %1710 = vmatprep.subr.mxu0 0.0
        %1711 = vmatpush2.msra.mxu0 0.0
        %1712 = vmatprep.subr.mxu0 0.0
        %1713 = vmatpush2.msra.mxu0 0.0
        %1714 = vmatprep.subr.mxu0 0.0
        %1715 = vmatpush2.msra.mxu0 0.0
        %1716 = vmatprep.subr.mxu0 0.0
        %1717 = vmatpush2.msra.mxu0 0.0
        %1718 = vmatprep.subr.mxu0 0.0
        %1719 = vmatpush2.msra.mxu0 0.0
        %1720 = vmatprep.subr.mxu0 0.0
        %1721 = vmatpush2.msra.mxu0 0.0
        %1722 = vmatprep.subr.mxu0 0.0
        %1723 = vmatpush2.msra.mxu0 0.0
        %1724 = vmatprep.mubr.f32.mxu0 0.0
        %1725 = vmatmul.mubr.f32.gmra.mxu0 %v1658
        %v1726 = vpop.f32.mrf.mxu0
        %v1727 = vadd.f32 0.0, %v1726
        %v1728 = vpop.f32.mrf.mxu0
        %1729 = vdwg.mxu0
        %v1730 = vrcp.pop %v1727
        %v1731 = vmul.f32 %v1656, %v1730
        %v1732 = vpack.c.bf16 %v1731, %v1731
        %v1733 = vpack.c.bf16 %v1605, %v1604
        %v1734 = vpack.c.bf16 %v1607, %v1606
        %v1736 = vsel %vm729, %v1732, 0
        %1738 = vmatprep.subr.bf16.mxu0 0
        %1739 = vmatpush1.bf16.msra.mxu0 0
        %1740 = vmatprep.subr.bf16.mxu0 0
        %1741 = vmatpush1.bf16.msra.mxu0 0
        %1742 = vmatprep.subr.bf16.mxu0 0
        %1743 = vmatpush1.bf16.msra.mxu0 0
        %1744 = vmatprep.subr.bf16.mxu0 0
        %1745 = vmatpush1.bf16.msra.mxu0 0
        %1746 = vmatprep.subr.bf16.mxu0 0
        %1747 = vmatpush1.bf16.msra.mxu0 0
        %1748 = vmatprep.subr.bf16.mxu0 0
        %1749 = vmatpush1.bf16.msra.mxu0 0
        %1750 = vmatprep.subr.bf16.mxu0 0
        %1751 = vmatpush1.bf16.msra.mxu0 %v1734
        %1752 = vmatprep.subr.bf16.mxu0 0
        %1753 = vmatpush1.bf16.msra.mxu0 %v1733
        %1754 = vmatprep.subr.bf16.mxu0 0
        %1755 = vmatpush2.bf16.msra.mxu0 0
        %1756 = vmatprep.subr.bf16.mxu0 0
        %1757 = vmatpush2.bf16.msra.mxu0 0
        %1758 = vmatprep.subr.bf16.mxu0 0
        %1759 = vmatpush2.bf16.msra.mxu0 0
        %1760 = vmatprep.subr.bf16.mxu0 0
        %1761 = vmatpush2.bf16.msra.mxu0 0
        %1762 = vmatprep.subr.bf16.mxu0 0
        %1763 = vmatpush2.bf16.msra.mxu0 0
        %1764 = vmatprep.subr.bf16.mxu0 0
        %1765 = vmatpush2.bf16.msra.mxu0 0
        %1766 = vmatprep.subr.bf16.mxu0 0
        %1767 = vmatpush2.bf16.msra.mxu0 0
        %1768 = vmatprep.subr.bf16.mxu0 0
        %1769 = vmatpush2.bf16.msra.mxu0 0
        %1770 = vmatprep.mubr.bf16.mxu0 0
        %1771 = vmatmul.mubr.bf16.gmra.mxu0 %v1736
        %v1772 = vpop.f32.mrf.mxu0
        %v1773 = vadd.f32 0.0, %v1772
        %v1774 = vpop.f32.mrf.mxu0
        %v1775 = vpop.f32.mrf.mxu0
        %v1776 = vpop.f32.mrf.mxu0
        %1777 = vdwg.mxu0
        %v1778 = vld [vmem:[#allocation4 + $0x240] sm:$0xf]
        %v1779 = vld [vmem:[#allocation4 + $0x244] sm:$0xf]
        %v1780 = vld [vmem:[#allocation4 + $0x248] sm:$0xf]
        %v1781 = vld [vmem:[#allocation4 + $0x24c] sm:$0xf]
        %v1782 = vld [vmem:[#allocation4 + $0x250] sm:$0xf]
        %v1783 = vld [vmem:[#allocation4 + $0x254] sm:$0xf]
        %v1784 = vld [vmem:[#allocation4 + $0x258] sm:$0xf]
        %v1785 = vld [vmem:[#allocation4 + $0x25c] sm:$0xf]
        %v1786 = vld [vmem:[#allocation4 + $0x260] sm:$0xf]
        %v1787 = vld [vmem:[#allocation4 + $0x264] sm:$0xf]
        %v1788 = vld [vmem:[#allocation4 + $0x268] sm:$0xf]
        %v1789 = vld [vmem:[#allocation4 + $0x26c] sm:$0xf]
        %v1790 = vld [vmem:[#allocation4 + $0x270] sm:$0xf]
        %v1791 = vld [vmem:[#allocation4 + $0x274] sm:$0xf]
        %v1792 = vld [vmem:[#allocation4 + $0x278] sm:$0xf]
        %v1793 = vld [vmem:[#allocation4 + $0x27c] sm:$0xf]
        %v1794 = vpack.c.bf16 %v1773, %v1773
        %v1795 = vld [vmem:[%s5 + $0x11] sm:$0x1]
        %v1796 = vlaneseq
        %v1797 = vshrl.u32 %v1796, 7
        %v1798 = vsub.s32 0, %v1797
        %v1799 = vrot.slane %v1795, %v1798
        %v1816 = vunpack.c.l.b16 %v1778
        %v1817 = vunpack.c.l.b16 %v1779
        %v1818 = vunpack.c.l.b16 %v1780
        %v1819 = vunpack.c.l.b16 %v1781
        %v1820 = vunpack.c.l.b16 %v1782
        %v1821 = vunpack.c.l.b16 %v1783
        %v1822 = vunpack.c.l.b16 %v1784
        %v1823 = vunpack.c.l.b16 %v1785
        %v1824 = vunpack.c.l.b16 %v1786
        %v1825 = vunpack.c.l.b16 %v1787
        %v1826 = vunpack.c.l.b16 %v1788
        %v1827 = vunpack.c.l.b16 %v1789
        %v1828 = vunpack.c.l.b16 %v1790
        %v1829 = vunpack.c.l.b16 %v1791
        %v1830 = vunpack.c.l.b16 %v1792
        %v1831 = vunpack.c.l.b16 %v1793
        %v1832 = vpack.c.b16 %v1817, %v1816
        %v1833 = vpack.c.b16 %v1819, %v1818
        %v1834 = vpack.c.b16 %v1821, %v1820
        %v1835 = vpack.c.b16 %v1823, %v1822
        %v1836 = vpack.c.b16 %v1825, %v1824
        %v1837 = vpack.c.b16 %v1827, %v1826
        %v1838 = vpack.c.b16 %v1829, %v1828
        %v1839 = vpack.c.b16 %v1831, %v1830
        %1848 = vmatprep.subr.bf16.mxu0 0
        %1849 = vmatpush1.bf16.msra.mxu0 %v1839
        %1850 = vmatprep.subr.bf16.mxu0 0
        %1851 = vmatpush1.bf16.msra.mxu0 %v1838
        %1852 = vmatprep.subr.bf16.mxu0 0
        %1853 = vmatpush1.bf16.msra.mxu0 %v1837
        %1854 = vmatprep.subr.bf16.mxu0 0
        %1855 = vmatpush1.bf16.msra.mxu0 %v1836
        %1856 = vmatprep.subr.bf16.mxu0 0
        %1857 = vmatpush1.bf16.msra.mxu0 %v1835
        %1858 = vmatprep.subr.bf16.mxu0 0
        %1859 = vmatpush1.bf16.msra.mxu0 %v1834
        %1860 = vmatprep.subr.bf16.mxu0 0
        %1861 = vmatpush1.bf16.msra.mxu0 %v1833
        %1862 = vmatprep.subr.bf16.mxu0 0
        %1863 = vmatpush1.bf16.msra.mxu0 %v1832
        %1864 = vmatprep.subr.bf16.mxu0 0
        %1865 = vmatpush2.bf16.msra.mxu0 0
        %1866 = vmatprep.subr.bf16.mxu0 0
        %1867 = vmatpush2.bf16.msra.mxu0 0
        %1868 = vmatprep.subr.bf16.mxu0 0
        %1869 = vmatpush2.bf16.msra.mxu0 0
        %1870 = vmatprep.subr.bf16.mxu0 0
        %1871 = vmatpush2.bf16.msra.mxu0 0
        %1872 = vmatprep.subr.bf16.mxu0 0
        %1873 = vmatpush2.bf16.msra.mxu0 0
        %1874 = vmatprep.subr.bf16.mxu0 0
        %1875 = vmatpush2.bf16.msra.mxu0 0
        %1876 = vmatprep.subr.bf16.mxu0 0
        %1877 = vmatpush2.bf16.msra.mxu0 0
        %1878 = vmatprep.subr.bf16.mxu0 0
        %1879 = vmatpush2.bf16.msra.mxu0 0
        %1880 = vmatprep.mubr.bf16.mxu0 0
        %1881 = vmatmul.mubr.bf16.gmra.mxu0 %v1794
        %v1882 = vpop.f32.mrf.mxu0
        %v1883 = vadd.f32 %v1799, %v1882
        %v1884 = vpop.f32.mrf.mxu0
        %v1885 = vpop.f32.mrf.mxu0
        %v1886 = vpop.f32.mrf.mxu0
        %1887 = vdwg.mxu0
        %v1888 = vadd.f32 %v1270, %v1883
        %v1889 = vld [vmem:[%s5 + $0x12] sm:$0x1]
        %v1890 = vld [vmem:[%s5 + $0x13] sm:$0x1]
        %1891 = vadd.xlane.f32.xlu0 %v1888
        %v1892 = vpop.xlane.xlu0 %1891
        %v1893 = vmul.f32 %v1892, 0.03125
        %v1894 = vsub.f32 %v1888, %v1893
        %v1895 = vmul.f32 %v1894, %v277
        %v1896 = vmul.f32 %v1895, %v1895
        %1897 = vadd.xlane.f32.xlu0 %v1896
        %v1898 = vpop.xlane.xlu0 %1897
        %v1899 = vmul.f32 %v1898, 0.03125
        %v1900 = vadd.f32 %v1899, 1e-05
        %v1901 = vrsqrt.pop %v1900
        %v1902 = vmul.f32 %v1895, %v1901
        %v1903 = vlaneseq
        %v1904 = vshrl.u32 %v1903, 7
        %v1905 = vsub.s32 0, %v1904
        %v1906 = vrot.slane %v1889, %v1905
        %v1907 = vmul.f32 %v1902, %v1906
        %v1908 = vlaneseq
        %v1909 = vshrl.u32 %v1908, 7
        %v1910 = vsub.s32 0, %v1909
        %v1911 = vrot.slane %v1890, %v1910
        %v1912 = vadd.f32 %v1907, %v1911
        %v1913 = vld [vmem:[#allocation4 + $0x280] sm:$0xf]
        %v1914 = vld [vmem:[#allocation4 + $0x284] sm:$0xf]
        %v1915 = vld [vmem:[#allocation4 + $0x288] sm:$0xf]
        %v1916 = vld [vmem:[#allocation4 + $0x28c] sm:$0xf]
        %v1917 = vld [vmem:[#allocation4 + $0x290] sm:$0xf]
        %v1918 = vld [vmem:[#allocation4 + $0x294] sm:$0xf]
        %v1919 = vld [vmem:[#allocation4 + $0x298] sm:$0xf]
        %v1920 = vld [vmem:[#allocation4 + $0x29c] sm:$0xf]
        %v1921 = vld [vmem:[#allocation4 + $0x2a0] sm:$0xf]
        %v1922 = vld [vmem:[#allocation4 + $0x2a4] sm:$0xf]
        %v1923 = vld [vmem:[#allocation4 + $0x2a8] sm:$0xf]
        %v1924 = vld [vmem:[#allocation4 + $0x2ac] sm:$0xf]
        %v1925 = vld [vmem:[#allocation4 + $0x2b0] sm:$0xf]
        %v1926 = vld [vmem:[#allocation4 + $0x2b4] sm:$0xf]
        %v1927 = vld [vmem:[#allocation4 + $0x2b8] sm:$0xf]
        %v1928 = vld [vmem:[#allocation4 + $0x2bc] sm:$0xf]
        %v1929 = vpack.c.bf16 %v1912, %v1912
        %v1930 = vld [vmem:[%s5 + $0x14] sm:$0x1]
        %v1931 = vlaneseq
        %v1932 = vshrl.u32 %v1931, 7
        %v1933 = vsub.s32 0, %v1932
        %v1934 = vrot.slane %v1930, %v1933
        %v1951 = vunpack.c.l.b16 %v1913
        %v1952 = vunpack.c.l.b16 %v1914
        %v1953 = vunpack.c.l.b16 %v1915
        %v1954 = vunpack.c.l.b16 %v1916
        %v1955 = vunpack.c.l.b16 %v1917
        %v1956 = vunpack.c.l.b16 %v1918
        %v1957 = vunpack.c.l.b16 %v1919
        %v1958 = vunpack.c.l.b16 %v1920
        %v1959 = vunpack.c.l.b16 %v1921
        %v1960 = vunpack.c.l.b16 %v1922
        %v1961 = vunpack.c.l.b16 %v1923
        %v1962 = vunpack.c.l.b16 %v1924
        %v1963 = vunpack.c.l.b16 %v1925
        %v1964 = vunpack.c.l.b16 %v1926
        %v1965 = vunpack.c.l.b16 %v1927
        %v1966 = vunpack.c.l.b16 %v1928
        %v1967 = vpack.c.b16 %v1952, %v1951
        %v1968 = vpack.c.b16 %v1954, %v1953
        %v1969 = vpack.c.b16 %v1956, %v1955
        %v1970 = vpack.c.b16 %v1958, %v1957
        %v1971 = vpack.c.b16 %v1960, %v1959
        %v1972 = vpack.c.b16 %v1962, %v1961
        %v1973 = vpack.c.b16 %v1964, %v1963
        %v1974 = vpack.c.b16 %v1966, %v1965
        %1983 = vmatprep.subr.bf16.mxu0 0
        %1984 = vmatpush1.bf16.msra.mxu0 %v1974
        %1985 = vmatprep.subr.bf16.mxu0 0
        %1986 = vmatpush1.bf16.msra.mxu0 %v1973
        %1987 = vmatprep.subr.bf16.mxu0 0
        %1988 = vmatpush1.bf16.msra.mxu0 %v1972
        %1989 = vmatprep.subr.bf16.mxu0 0
        %1990 = vmatpush1.bf16.msra.mxu0 %v1971
        %1991 = vmatprep.subr.bf16.mxu0 0
        %1992 = vmatpush1.bf16.msra.mxu0 %v1970
        %1993 = vmatprep.subr.bf16.mxu0 0
        %1994 = vmatpush1.bf16.msra.mxu0 %v1969
        %1995 = vmatprep.subr.bf16.mxu0 0
        %1996 = vmatpush1.bf16.msra.mxu0 %v1968
        %1997 = vmatprep.subr.bf16.mxu0 0
        %1998 = vmatpush1.bf16.msra.mxu0 %v1967
        %1999 = vmatprep.subr.bf16.mxu0 0
        %2000 = vmatpush2.bf16.msra.mxu0 0
        %2001 = vmatprep.subr.bf16.mxu0 0
        %2002 = vmatpush2.bf16.msra.mxu0 0
        %2003 = vmatprep.subr.bf16.mxu0 0
        %2004 = vmatpush2.bf16.msra.mxu0 0
        %2005 = vmatprep.subr.bf16.mxu0 0
        %2006 = vmatpush2.bf16.msra.mxu0 0
        %2007 = vmatprep.subr.bf16.mxu0 0
        %2008 = vmatpush2.bf16.msra.mxu0 0
        %2009 = vmatprep.subr.bf16.mxu0 0
        %2010 = vmatpush2.bf16.msra.mxu0 0
        %2011 = vmatprep.subr.bf16.mxu0 0
        %2012 = vmatpush2.bf16.msra.mxu0 0
        %2013 = vmatprep.subr.bf16.mxu0 0
        %2014 = vmatpush2.bf16.msra.mxu0 0
        %2015 = vmatprep.mubr.bf16.mxu0 0
        %2016 = vmatmul.mubr.bf16.gmra.mxu0 %v1929
        %v2017 = vpop.f32.mrf.mxu0
        %v2018 = vadd.f32 %v1934, %v2017
        %v2019 = vpop.f32.mrf.mxu0
        %v2020 = vpop.f32.mrf.mxu0
        %v2021 = vpop.f32.mrf.mxu0
        %2022 = vdwg.mxu0
        %v2023 = vmul.f32 %v2018, 0.35355338
        %v2024 = vld [vmem:[#allocation4 + $0x2c0] sm:$0xf]
        %v2025 = vld [vmem:[#allocation4 + $0x2c4] sm:$0xf]
        %v2026 = vld [vmem:[#allocation4 + $0x2c8] sm:$0xf]
        %v2027 = vld [vmem:[#allocation4 + $0x2cc] sm:$0xf]
        %v2028 = vld [vmem:[#allocation4 + $0x2d0] sm:$0xf]
        %v2029 = vld [vmem:[#allocation4 + $0x2d4] sm:$0xf]
        %v2030 = vld [vmem:[#allocation4 + $0x2d8] sm:$0xf]
        %v2031 = vld [vmem:[#allocation4 + $0x2dc] sm:$0xf]
        %v2032 = vld [vmem:[#allocation4 + $0x2e0] sm:$0xf]
        %v2033 = vld [vmem:[#allocation4 + $0x2e4] sm:$0xf]
        %v2034 = vld [vmem:[#allocation4 + $0x2e8] sm:$0xf]
        %v2035 = vld [vmem:[#allocation4 + $0x2ec] sm:$0xf]
        %v2036 = vld [vmem:[#allocation4 + $0x2f0] sm:$0xf]
        %v2037 = vld [vmem:[#allocation4 + $0x2f4] sm:$0xf]
        %v2038 = vld [vmem:[#allocation4 + $0x2f8] sm:$0xf]
        %v2039 = vld [vmem:[#allocation4 + $0x2fc] sm:$0xf]
        %v2040 = vpack.c.bf16 %v1245, %v1245
        %v2041 = vld [vmem:[%s5 + $0x15] sm:$0x1]
        %v2042 = vlaneseq
        %v2043 = vshrl.u32 %v2042, 7
        %v2044 = vsub.s32 0, %v2043
        %v2045 = vrot.slane %v2041, %v2044
        %v2062 = vunpack.c.l.b16 %v2024
        %v2063 = vunpack.c.l.b16 %v2025
        %v2064 = vunpack.c.l.b16 %v2026
        %v2065 = vunpack.c.l.b16 %v2027
        %v2066 = vunpack.c.l.b16 %v2028
        %v2067 = vunpack.c.l.b16 %v2029
        %v2068 = vunpack.c.l.b16 %v2030
        %v2069 = vunpack.c.l.b16 %v2031
        %v2070 = vunpack.c.l.b16 %v2032
        %v2071 = vunpack.c.l.b16 %v2033
        %v2072 = vunpack.c.l.b16 %v2034
        %v2073 = vunpack.c.l.b16 %v2035
        %v2074 = vunpack.c.l.b16 %v2036
        %v2075 = vunpack.c.l.b16 %v2037
        %v2076 = vunpack.c.l.b16 %v2038
        %v2077 = vunpack.c.l.b16 %v2039
        %v2078 = vpack.c.b16 %v2063, %v2062
        %v2079 = vpack.c.b16 %v2065, %v2064
        %v2080 = vpack.c.b16 %v2067, %v2066
        %v2081 = vpack.c.b16 %v2069, %v2068
        %v2082 = vpack.c.b16 %v2071, %v2070
        %v2083 = vpack.c.b16 %v2073, %v2072
        %v2084 = vpack.c.b16 %v2075, %v2074
        %v2085 = vpack.c.b16 %v2077, %v2076
        %2094 = vmatprep.subr.bf16.mxu0 0
        %2095 = vmatpush1.bf16.msra.mxu0 %v2085
        %2096 = vmatprep.subr.bf16.mxu0 0
        %2097 = vmatpush1.bf16.msra.mxu0 %v2084
        %2098 = vmatprep.subr.bf16.mxu0 0
        %2099 = vmatpush1.bf16.msra.mxu0 %v2083
        %2100 = vmatprep.subr.bf16.mxu0 0
        %2101 = vmatpush1.bf16.msra.mxu0 %v2082
        %2102 = vmatprep.subr.bf16.mxu0 0
        %2103 = vmatpush1.bf16.msra.mxu0 %v2081
        %2104 = vmatprep.subr.bf16.mxu0 0
        %2105 = vmatpush1.bf16.msra.mxu0 %v2080
        %2106 = vmatprep.subr.bf16.mxu0 0
        %2107 = vmatpush1.bf16.msra.mxu0 %v2079
        %2108 = vmatprep.subr.bf16.mxu0 0
        %2109 = vmatpush1.bf16.msra.mxu0 %v2078
        %2110 = vmatprep.subr.bf16.mxu0 0
        %2111 = vmatpush2.bf16.msra.mxu0 0
        %2112 = vmatprep.subr.bf16.mxu0 0
        %2113 = vmatpush2.bf16.msra.mxu0 0
        %2114 = vmatprep.subr.bf16.mxu0 0
        %2115 = vmatpush2.bf16.msra.mxu0 0
        %2116 = vmatprep.subr.bf16.mxu0 0
        %2117 = vmatpush2.bf16.msra.mxu0 0
        %2118 = vmatprep.subr.bf16.mxu0 0
        %2119 = vmatpush2.bf16.msra.mxu0 0
        %2120 = vmatprep.subr.bf16.mxu0 0
        %2121 = vmatpush2.bf16.msra.mxu0 0
        %2122 = vmatprep.subr.bf16.mxu0 0
        %2123 = vmatpush2.bf16.msra.mxu0 0
        %2124 = vmatprep.subr.bf16.mxu0 0
        %2125 = vmatpush2.bf16.msra.mxu0 0
        %2126 = vmatprep.mubr.bf16.mxu0 0
        %2127 = vmatmul.mubr.bf16.gmra.mxu0 %v2040
        %v2128 = vpop.f32.mrf.mxu0
        %v2129 = vadd.f32 %v2045, %v2128
        %v2130 = vpop.f32.mrf.mxu0
        %v2131 = vpop.f32.mrf.mxu0
        %v2132 = vpop.f32.mrf.mxu0
        %2133 = vdwg.mxu0
        %v2134 = vld [vmem:[#allocation4 + $0x300] sm:$0xf]
        %v2135 = vld [vmem:[#allocation4 + $0x304] sm:$0xf]
        %v2136 = vld [vmem:[#allocation4 + $0x308] sm:$0xf]
        %v2137 = vld [vmem:[#allocation4 + $0x30c] sm:$0xf]
        %v2138 = vld [vmem:[#allocation4 + $0x310] sm:$0xf]
        %v2139 = vld [vmem:[#allocation4 + $0x314] sm:$0xf]
        %v2140 = vld [vmem:[#allocation4 + $0x318] sm:$0xf]
        %v2141 = vld [vmem:[#allocation4 + $0x31c] sm:$0xf]
        %v2142 = vld [vmem:[#allocation4 + $0x320] sm:$0xf]
        %v2143 = vld [vmem:[#allocation4 + $0x324] sm:$0xf]
        %v2144 = vld [vmem:[#allocation4 + $0x328] sm:$0xf]
        %v2145 = vld [vmem:[#allocation4 + $0x32c] sm:$0xf]
        %v2146 = vld [vmem:[#allocation4 + $0x330] sm:$0xf]
        %v2147 = vld [vmem:[#allocation4 + $0x334] sm:$0xf]
        %v2148 = vld [vmem:[#allocation4 + $0x338] sm:$0xf]
        %v2149 = vld [vmem:[#allocation4 + $0x33c] sm:$0xf]
        %v2150 = vld [vmem:[%s5 + $0x16] sm:$0x1]
        %v2151 = vlaneseq
        %v2152 = vshrl.u32 %v2151, 7
        %v2153 = vsub.s32 0, %v2152
        %v2154 = vrot.slane %v2150, %v2153
        %v2171 = vunpack.c.l.b16 %v2134
        %v2172 = vunpack.c.l.b16 %v2135
        %v2173 = vunpack.c.l.b16 %v2136
        %v2174 = vunpack.c.l.b16 %v2137
        %v2175 = vunpack.c.l.b16 %v2138
        %v2176 = vunpack.c.l.b16 %v2139
        %v2177 = vunpack.c.l.b16 %v2140
        %v2178 = vunpack.c.l.b16 %v2141
        %v2179 = vunpack.c.l.b16 %v2142
        %v2180 = vunpack.c.l.b16 %v2143
        %v2181 = vunpack.c.l.b16 %v2144
        %v2182 = vunpack.c.l.b16 %v2145
        %v2183 = vunpack.c.l.b16 %v2146
        %v2184 = vunpack.c.l.b16 %v2147
        %v2185 = vunpack.c.l.b16 %v2148
        %v2186 = vunpack.c.l.b16 %v2149
        %v2187 = vpack.c.b16 %v2172, %v2171
        %v2188 = vpack.c.b16 %v2174, %v2173
        %v2189 = vpack.c.b16 %v2176, %v2175
        %v2190 = vpack.c.b16 %v2178, %v2177
        %v2191 = vpack.c.b16 %v2180, %v2179
        %v2192 = vpack.c.b16 %v2182, %v2181
        %v2193 = vpack.c.b16 %v2184, %v2183
        %v2194 = vpack.c.b16 %v2186, %v2185
        %2203 = vmatprep.subr.bf16.mxu0 0
        %2204 = vmatpush1.bf16.msra.mxu0 %v2194
        %2205 = vmatprep.subr.bf16.mxu0 0
        %2206 = vmatpush1.bf16.msra.mxu0 %v2193
        %2207 = vmatprep.subr.bf16.mxu0 0
        %2208 = vmatpush1.bf16.msra.mxu0 %v2192
        %2209 = vmatprep.subr.bf16.mxu0 0
        %2210 = vmatpush1.bf16.msra.mxu0 %v2191
        %2211 = vmatprep.subr.bf16.mxu0 0
        %2212 = vmatpush1.bf16.msra.mxu0 %v2190
        %2213 = vmatprep.subr.bf16.mxu0 0
        %2214 = vmatpush1.bf16.msra.mxu0 %v2189
        %2215 = vmatprep.subr.bf16.mxu0 0
        %2216 = vmatpush1.bf16.msra.mxu0 %v2188
        %2217 = vmatprep.subr.bf16.mxu0 0
        %2218 = vmatpush1.bf16.msra.mxu0 %v2187
        %2219 = vmatprep.subr.bf16.mxu0 0
        %2220 = vmatpush2.bf16.msra.mxu0 0
        %2221 = vmatprep.subr.bf16.mxu0 0
        %2222 = vmatpush2.bf16.msra.mxu0 0
        %2223 = vmatprep.subr.bf16.mxu0 0
        %2224 = vmatpush2.bf16.msra.mxu0 0
        %2225 = vmatprep.subr.bf16.mxu0 0
        %2226 = vmatpush2.bf16.msra.mxu0 0
        %2227 = vmatprep.subr.bf16.mxu0 0
        %2228 = vmatpush2.bf16.msra.mxu0 0
        %2229 = vmatprep.subr.bf16.mxu0 0
        %2230 = vmatpush2.bf16.msra.mxu0 0
        %2231 = vmatprep.subr.bf16.mxu0 0
        %2232 = vmatpush2.bf16.msra.mxu0 0
        %2233 = vmatprep.subr.bf16.mxu0 0
        %2234 = vmatpush2.bf16.msra.mxu0 0
        %2235 = vmatprep.mubr.bf16.mxu0 0
        %2236 = vmatmul.mubr.bf16.gmra.mxu0 %v2040
        %v2237 = vpop.f32.mrf.mxu0
        %v2238 = vadd.f32 %v2154, %v2237
        %v2239 = vpop.f32.mrf.mxu0
        %v2240 = vpop.f32.mrf.mxu0
        %v2241 = vpop.f32.mrf.mxu0
        %2242 = vdwg.mxu0
        %v2243 = vmul.f32 %v2129, %v300
        %v2244 = vmul.f32 %v2129, %v301
        %v2245 = vmul.f32 %v2129, %v302
        %v2246 = vmul.f32 %v2129, %v303
        %v2247 = vmul.f32 %v2238, %v300
        %v2248 = vmul.f32 %v2238, %v301
        %v2249 = vmul.f32 %v2238, %v302
        %v2250 = vmul.f32 %v2238, %v303
        %v2251 = vpack.c.bf16 %v2023, %v2023
        %v2252 = vpack.c.bf16 %v2244, %v2243
        %v2253 = vpack.c.bf16 %v2246, %v2245
        %2254 = vmatprep.subr.bf16.mxu0 0
        %2255 = vmatpush1.bf16.xpose.msra.mxu0 0
        %2256 = vmatprep.subr.bf16.mxu0 0
        %2257 = vmatpush1.bf16.xpose.msra.mxu0 0
        %2258 = vmatprep.subr.bf16.mxu0 0
        %2259 = vmatpush1.bf16.xpose.msra.mxu0 0
        %2260 = vmatprep.subr.bf16.mxu0 0
        %2261 = vmatpush1.bf16.xpose.msra.mxu0 0
        %2262 = vmatprep.subr.bf16.mxu0 0
        %2263 = vmatpush1.bf16.xpose.msra.mxu0 0
        %2264 = vmatprep.subr.bf16.mxu0 0
        %2265 = vmatpush1.bf16.xpose.msra.mxu0 0
        %2266 = vmatprep.subr.bf16.mxu0 0
        %2267 = vmatpush1.bf16.xpose.msra.mxu0 %v2253
        %2268 = vmatprep.subr.bf16.mxu0 0
        %2269 = vmatpush1.bf16.xpose.msra.mxu0 %v2252
        %2270 = vmatprep.subr.bf16.mxu0 0
        %2271 = vmatpush2.bf16.xpose.msra.mxu0 0
        %2272 = vmatprep.subr.bf16.mxu0 0
        %2273 = vmatpush2.bf16.xpose.msra.mxu0 0
        %2274 = vmatprep.subr.bf16.mxu0 0
        %2275 = vmatpush2.bf16.xpose.msra.mxu0 0
        %2276 = vmatprep.subr.bf16.mxu0 0
        %2277 = vmatpush2.bf16.xpose.msra.mxu0 0
        %2278 = vmatprep.subr.bf16.mxu0 0
        %2279 = vmatpush2.bf16.xpose.msra.mxu0 0
        %2280 = vmatprep.subr.bf16.mxu0 0
        %2281 = vmatpush2.bf16.xpose.msra.mxu0 0
        %2282 = vmatprep.subr.bf16.mxu0 0
        %2283 = vmatpush2.bf16.xpose.msra.mxu0 0
        %2284 = vmatprep.subr.bf16.mxu0 0
        %2285 = vmatpush2.bf16.xpose.msra.mxu0 0
        %2286 = vmatprep.mubr.bf16.mxu0 0
        %2287 = vmatmul.mubr.bf16.gmra.mxu0 %v2251
        %v2288 = vpop.f32.mrf.mxu0
        %v2289 = vadd.f32 %v687, %v2288
        %v2290 = vpop.f32.mrf.mxu0
        %v2291 = vpop.f32.mrf.mxu0
        %v2292 = vpop.f32.mrf.mxu0
        %2293 = vdwg.mxu0
        %v2294 = vsel %vm729, %v2289, -inf
        %2295 = vmax.xlane.f32.xlu0 %v2294
        %v2296 = vpop.xlane.xlu0 %2295
        %v2297 = vsub.f32 %v2289, %v2296
        %v2298 = vmul.f32 %v2297, 1.442695
        %v2299 = vpow.pop %v2298
        %v2301 = vsel %vm729, %v2299, 0
        %2303 = vmatprep.subr.mxu0 0.0
        %2304 = vmatpush1.msra.mxu0 0.0
        %2305 = vmatprep.subr.mxu0 0.0
        %2306 = vmatpush1.msra.mxu0 0.0
        %2307 = vmatprep.subr.mxu0 0.0
        %2308 = vmatpush1.msra.mxu0 0.0
        %2309 = vmatprep.subr.mxu0 0.0
        %2310 = vmatpush1.msra.mxu0 0.0
        %2311 = vmatprep.subr.mxu0 0.0
        %2312 = vmatpush1.msra.mxu0 0.0
        %2313 = vmatprep.subr.mxu0 0.0
        %2314 = vmatpush1.msra.mxu0 0.0
        %2315 = vmatprep.subr.mxu0 0.0
        %2316 = vmatpush1.msra.mxu0 0.0
        %2317 = vmatprep.subr.mxu0 0.0
        %2318 = vmatpush1.msra.mxu0 0.0
        %2319 = vmatprep.subr.mxu0 0.0
        %2320 = vmatpush1.msra.mxu0 0.0
        %2321 = vmatprep.subr.mxu0 0.0
        %2322 = vmatpush1.msra.mxu0 0.0
        %2323 = vmatprep.subr.mxu0 0.0
        %2324 = vmatpush1.msra.mxu0 0.0
        %2325 = vmatprep.subr.mxu0 0.0
        %2326 = vmatpush1.msra.mxu0 0.0
        %2327 = vmatprep.subr.mxu0 0.0
        %2328 = vmatpush1.msra.mxu0 %v311
        %2329 = vmatprep.subr.mxu0 0.0
        %2330 = vmatpush1.msra.mxu0 %v310
        %2331 = vmatprep.subr.mxu0 0.0
        %2332 = vmatpush1.msra.mxu0 %v309
        %2333 = vmatprep.subr.mxu0 0.0
        %2334 = vmatpush1.msra.mxu0 %v308
        %2335 = vmatprep.subr.mxu0 0.0
        %2336 = vmatpush2.msra.mxu0 0.0
        %2337 = vmatprep.subr.mxu0 0.0
        %2338 = vmatpush2.msra.mxu0 0.0
        %2339 = vmatprep.subr.mxu0 0.0
        %2340 = vmatpush2.msra.mxu0 0.0
        %2341 = vmatprep.subr.mxu0 0.0
        %2342 = vmatpush2.msra.mxu0 0.0
        %2343 = vmatprep.subr.mxu0 0.0
        %2344 = vmatpush2.msra.mxu0 0.0
        %2345 = vmatprep.subr.mxu0 0.0
        %2346 = vmatpush2.msra.mxu0 0.0
        %2347 = vmatprep.subr.mxu0 0.0
        %2348 = vmatpush2.msra.mxu0 0.0
        %2349 = vmatprep.subr.mxu0 0.0
        %2350 = vmatpush2.msra.mxu0 0.0
        %2351 = vmatprep.subr.mxu0 0.0
        %2352 = vmatpush2.msra.mxu0 0.0
        %2353 = vmatprep.subr.mxu0 0.0
        %2354 = vmatpush2.msra.mxu0 0.0
        %2355 = vmatprep.subr.mxu0 0.0
        %2356 = vmatpush2.msra.mxu0 0.0
        %2357 = vmatprep.subr.mxu0 0.0
        %2358 = vmatpush2.msra.mxu0 0.0
        %2359 = vmatprep.subr.mxu0 0.0
        %2360 = vmatpush2.msra.mxu0 0.0
        %2361 = vmatprep.subr.mxu0 0.0
        %2362 = vmatpush2.msra.mxu0 0.0
        %2363 = vmatprep.subr.mxu0 0.0
        %2364 = vmatpush2.msra.mxu0 0.0
        %2365 = vmatprep.subr.mxu0 0.0
        %2366 = vmatpush2.msra.mxu0 0.0
        %2367 = vmatprep.mubr.f32.mxu0 0.0
        %2368 = vmatmul.mubr.f32.gmra.mxu0 %v2301
        %v2369 = vpop.f32.mrf.mxu0
        %v2370 = vadd.f32 0.0, %v2369
        %v2371 = vpop.f32.mrf.mxu0
        %2372 = vdwg.mxu0
        %v2373 = vrcp.pop %v2370
        %v2374 = vmul.f32 %v2299, %v2373
        %v2375 = vpack.c.bf16 %v2374, %v2374
        %v2376 = vpack.c.bf16 %v2248, %v2247
        %v2377 = vpack.c.bf16 %v2250, %v2249
        %v2379 = vsel %vm729, %v2375, 0
        %2381 = vmatprep.subr.bf16.mxu0 0
        %2382 = vmatpush1.bf16.msra.mxu0 0
        %2383 = vmatprep.subr.bf16.mxu0 0
        %2384 = vmatpush1.bf16.msra.mxu0 0
        %2385 = vmatprep.subr.bf16.mxu0 0
        %2386 = vmatpush1.bf16.msra.mxu0 0
        %2387 = vmatprep.subr.bf16.mxu0 0
        %2388 = vmatpush1.bf16.msra.mxu0 0
        %2389 = vmatprep.subr.bf16.mxu0 0
        %2390 = vmatpush1.bf16.msra.mxu0 0
        %2391 = vmatprep.subr.bf16.mxu0 0
        %2392 = vmatpush1.bf16.msra.mxu0 0
        %2393 = vmatprep.subr.bf16.mxu0 0
        %2394 = vmatpush1.bf16.msra.mxu0 %v2377
        %2395 = vmatprep.subr.bf16.mxu0 0
        %2396 = vmatpush1.bf16.msra.mxu0 %v2376
        %2397 = vmatprep.subr.bf16.mxu0 0
        %2398 = vmatpush2.bf16.msra.mxu0 0
        %2399 = vmatprep.subr.bf16.mxu0 0
        %2400 = vmatpush2.bf16.msra.mxu0 0
        %2401 = vmatprep.subr.bf16.mxu0 0
        %2402 = vmatpush2.bf16.msra.mxu0 0
        %2403 = vmatprep.subr.bf16.mxu0 0
        %2404 = vmatpush2.bf16.msra.mxu0 0
        %2405 = vmatprep.subr.bf16.mxu0 0
        %2406 = vmatpush2.bf16.msra.mxu0 0
        %2407 = vmatprep.subr.bf16.mxu0 0
        %2408 = vmatpush2.bf16.msra.mxu0 0
        %2409 = vmatprep.subr.bf16.mxu0 0
        %2410 = vmatpush2.bf16.msra.mxu0 0
        %2411 = vmatprep.subr.bf16.mxu0 0
        %2412 = vmatpush2.bf16.msra.mxu0 0
        %2413 = vmatprep.mubr.bf16.mxu0 0
        %2414 = vmatmul.mubr.bf16.gmra.mxu0 %v2379
        %v2415 = vpop.f32.mrf.mxu0
        %v2416 = vadd.f32 0.0, %v2415
        %v2417 = vpop.f32.mrf.mxu0
        %v2418 = vpop.f32.mrf.mxu0
        %v2419 = vpop.f32.mrf.mxu0
        %2420 = vdwg.mxu0
        %v2421 = vld [vmem:[#allocation4 + $0x340] sm:$0xf]
        %v2422 = vld [vmem:[#allocation4 + $0x344] sm:$0xf]
        %v2423 = vld [vmem:[#allocation4 + $0x348] sm:$0xf]
        %v2424 = vld [vmem:[#allocation4 + $0x34c] sm:$0xf]
        %v2425 = vld [vmem:[#allocation4 + $0x350] sm:$0xf]
        %v2426 = vld [vmem:[#allocation4 + $0x354] sm:$0xf]
        %v2427 = vld [vmem:[#allocation4 + $0x358] sm:$0xf]
        %v2428 = vld [vmem:[#allocation4 + $0x35c] sm:$0xf]
        %v2429 = vld [vmem:[#allocation4 + $0x360] sm:$0xf]
        %v2430 = vld [vmem:[#allocation4 + $0x364] sm:$0xf]
        %v2431 = vld [vmem:[#allocation4 + $0x368] sm:$0xf]
        %v2432 = vld [vmem:[#allocation4 + $0x36c] sm:$0xf]
        %v2433 = vld [vmem:[#allocation4 + $0x370] sm:$0xf]
        %v2434 = vld [vmem:[#allocation4 + $0x374] sm:$0xf]
        %v2435 = vld [vmem:[#allocation4 + $0x378] sm:$0xf]
        %v2436 = vld [vmem:[#allocation4 + $0x37c] sm:$0xf]
        %v2437 = vpack.c.bf16 %v2416, %v2416
        %v2438 = vld [vmem:[%s5 + $0x17] sm:$0x1]
        %v2439 = vlaneseq
        %v2440 = vshrl.u32 %v2439, 7
        %v2441 = vsub.s32 0, %v2440
        %v2442 = vrot.slane %v2438, %v2441
        %v2459 = vunpack.c.l.b16 %v2421
        %v2460 = vunpack.c.l.b16 %v2422
        %v2461 = vunpack.c.l.b16 %v2423
        %v2462 = vunpack.c.l.b16 %v2424
        %v2463 = vunpack.c.l.b16 %v2425
        %v2464 = vunpack.c.l.b16 %v2426
        %v2465 = vunpack.c.l.b16 %v2427
        %v2466 = vunpack.c.l.b16 %v2428
        %v2467 = vunpack.c.l.b16 %v2429
        %v2468 = vunpack.c.l.b16 %v2430
        %v2469 = vunpack.c.l.b16 %v2431
        %v2470 = vunpack.c.l.b16 %v2432
        %v2471 = vunpack.c.l.b16 %v2433
        %v2472 = vunpack.c.l.b16 %v2434
        %v2473 = vunpack.c.l.b16 %v2435
        %v2474 = vunpack.c.l.b16 %v2436
        %v2475 = vpack.c.b16 %v2460, %v2459
        %v2476 = vpack.c.b16 %v2462, %v2461
        %v2477 = vpack.c.b16 %v2464, %v2463
        %v2478 = vpack.c.b16 %v2466, %v2465
        %v2479 = vpack.c.b16 %v2468, %v2467
        %v2480 = vpack.c.b16 %v2470, %v2469
        %v2481 = vpack.c.b16 %v2472, %v2471
        %v2482 = vpack.c.b16 %v2474, %v2473
        %2491 = vmatprep.subr.bf16.mxu0 0
        %2492 = vmatpush1.bf16.msra.mxu0 %v2482
        %2493 = vmatprep.subr.bf16.mxu0 0
        %2494 = vmatpush1.bf16.msra.mxu0 %v2481
        %2495 = vmatprep.subr.bf16.mxu0 0
        %2496 = vmatpush1.bf16.msra.mxu0 %v2480
        %2497 = vmatprep.subr.bf16.mxu0 0
        %2498 = vmatpush1.bf16.msra.mxu0 %v2479
        %2499 = vmatprep.subr.bf16.mxu0 0
        %2500 = vmatpush1.bf16.msra.mxu0 %v2478
        %2501 = vmatprep.subr.bf16.mxu0 0
        %2502 = vmatpush1.bf16.msra.mxu0 %v2477
        %2503 = vmatprep.subr.bf16.mxu0 0
        %2504 = vmatpush1.bf16.msra.mxu0 %v2476
        %2505 = vmatprep.subr.bf16.mxu0 0
        %2506 = vmatpush1.bf16.msra.mxu0 %v2475
        %2507 = vmatprep.subr.bf16.mxu0 0
        %2508 = vmatpush2.bf16.msra.mxu0 0
        %2509 = vmatprep.subr.bf16.mxu0 0
        %2510 = vmatpush2.bf16.msra.mxu0 0
        %2511 = vmatprep.subr.bf16.mxu0 0
        %2512 = vmatpush2.bf16.msra.mxu0 0
        %2513 = vmatprep.subr.bf16.mxu0 0
        %2514 = vmatpush2.bf16.msra.mxu0 0
        %2515 = vmatprep.subr.bf16.mxu0 0
        %2516 = vmatpush2.bf16.msra.mxu0 0
        %2517 = vmatprep.subr.bf16.mxu0 0
        %2518 = vmatpush2.bf16.msra.mxu0 0
        %2519 = vmatprep.subr.bf16.mxu0 0
        %2520 = vmatpush2.bf16.msra.mxu0 0
        %2521 = vmatprep.subr.bf16.mxu0 0
        %2522 = vmatpush2.bf16.msra.mxu0 0
        %2523 = vmatprep.mubr.bf16.mxu0 0
        %2524 = vmatmul.mubr.bf16.gmra.mxu0 %v2437
        %v2525 = vpop.f32.mrf.mxu0
        %v2526 = vadd.f32 %v2442, %v2525
        %v2527 = vpop.f32.mrf.mxu0
        %v2528 = vpop.f32.mrf.mxu0
        %v2529 = vpop.f32.mrf.mxu0
        %2530 = vdwg.mxu0
        %v2531 = vadd.f32 %v1912, %v2526
        %v2532 = vld [vmem:[%s5 + $0x18] sm:$0x1]
        %v2533 = vld [vmem:[%s5 + $0x19] sm:$0x1]
        %2534 = vadd.xlane.f32.xlu0 %v2531
        %v2535 = vpop.xlane.xlu0 %2534
        %v2536 = vmul.f32 %v2535, 0.03125
        %v2537 = vsub.f32 %v2531, %v2536
        %v2538 = vmul.f32 %v2537, %v277
        %v2539 = vmul.f32 %v2538, %v2538
        %2540 = vadd.xlane.f32.xlu0 %v2539
        %v2541 = vpop.xlane.xlu0 %2540
        %v2542 = vmul.f32 %v2541, 0.03125
        %v2543 = vadd.f32 %v2542, 1e-05
        %v2544 = vrsqrt.pop %v2543
        %v2545 = vmul.f32 %v2538, %v2544
        %v2546 = vlaneseq
        %v2547 = vshrl.u32 %v2546, 7
        %v2548 = vsub.s32 0, %v2547
        %v2549 = vrot.slane %v2532, %v2548
        %v2550 = vmul.f32 %v2545, %v2549
        %v2551 = vlaneseq
        %v2552 = vshrl.u32 %v2551, 7
        %v2553 = vsub.s32 0, %v2552
        %v2554 = vrot.slane %v2533, %v2553
        %v2555 = vadd.f32 %v2550, %v2554
        %v2556 = vld [vmem:[#allocation4 + $0x380] sm:$0xf]
        %v2557 = vld [vmem:[#allocation4 + $0x384] sm:$0xf]
        %v2558 = vld [vmem:[#allocation4 + $0x388] sm:$0xf]
        %v2559 = vld [vmem:[#allocation4 + $0x38c] sm:$0xf]
        %v2560 = vld [vmem:[#allocation4 + $0x390] sm:$0xf]
        %v2561 = vld [vmem:[#allocation4 + $0x394] sm:$0xf]
        %v2562 = vld [vmem:[#allocation4 + $0x398] sm:$0xf]
        %v2563 = vld [vmem:[#allocation4 + $0x39c] sm:$0xf]
        %v2564 = vld [vmem:[#allocation4 + $0x3a0] sm:$0xf]
        %v2565 = vld [vmem:[#allocation4 + $0x3a4] sm:$0xf]
        %v2566 = vld [vmem:[#allocation4 + $0x3a8] sm:$0xf]
        %v2567 = vld [vmem:[#allocation4 + $0x3ac] sm:$0xf]
        %v2568 = vld [vmem:[#allocation4 + $0x3b0] sm:$0xf]
        %v2569 = vld [vmem:[#allocation4 + $0x3b4] sm:$0xf]
        %v2570 = vld [vmem:[#allocation4 + $0x3b8] sm:$0xf]
        %v2571 = vld [vmem:[#allocation4 + $0x3bc] sm:$0xf]
        %v2572 = vpack.c.bf16 %v2555, %v2555
        %v2573 = vld [vmem:[%s5 + $0x1a] sm:$0x1]
        %v2574 = vlaneseq
        %v2575 = vshrl.u32 %v2574, 7
        %v2576 = vsub.s32 0, %v2575
        %v2577 = vrot.slane %v2573, %v2576
        %v2594 = vunpack.c.l.b16 %v2556
        %v2595 = vunpack.c.l.b16 %v2557
        %v2596 = vunpack.c.l.b16 %v2558
        %v2597 = vunpack.c.l.b16 %v2559
        %v2598 = vunpack.c.l.b16 %v2560
        %v2599 = vunpack.c.l.b16 %v2561
        %v2600 = vunpack.c.l.b16 %v2562
        %v2601 = vunpack.c.l.b16 %v2563
        %v2602 = vunpack.c.l.b16 %v2564
        %v2603 = vunpack.c.l.b16 %v2565
        %v2604 = vunpack.c.l.b16 %v2566
        %v2605 = vunpack.c.l.b16 %v2567
        %v2606 = vunpack.c.l.b16 %v2568
        %v2607 = vunpack.c.l.b16 %v2569
        %v2608 = vunpack.c.l.b16 %v2570
        %v2609 = vunpack.c.l.b16 %v2571
        %v2610 = vpack.c.b16 %v2595, %v2594
        %v2611 = vpack.c.b16 %v2597, %v2596
        %v2612 = vpack.c.b16 %v2599, %v2598
        %v2613 = vpack.c.b16 %v2601, %v2600
        %v2614 = vpack.c.b16 %v2603, %v2602
        %v2615 = vpack.c.b16 %v2605, %v2604
        %v2616 = vpack.c.b16 %v2607, %v2606
        %v2617 = vpack.c.b16 %v2609, %v2608
        %2626 = vmatprep.subr.bf16.mxu0 0
        %2627 = vmatpush1.bf16.msra.mxu0 %v2617
        %2628 = vmatprep.subr.bf16.mxu0 0
        %2629 = vmatpush1.bf16.msra.mxu0 %v2616
        %2630 = vmatprep.subr.bf16.mxu0 0
        %2631 = vmatpush1.bf16.msra.mxu0 %v2615
        %2632 = vmatprep.subr.bf16.mxu0 0
        %2633 = vmatpush1.bf16.msra.mxu0 %v2614
        %2634 = vmatprep.subr.bf16.mxu0 0
        %2635 = vmatpush1.bf16.msra.mxu0 %v2613
        %2636 = vmatprep.subr.bf16.mxu0 0
        %2637 = vmatpush1.bf16.msra.mxu0 %v2612
        %2638 = vmatprep.subr.bf16.mxu0 0
        %2639 = vmatpush1.bf16.msra.mxu0 %v2611
        %2640 = vmatprep.subr.bf16.mxu0 0
        %2641 = vmatpush1.bf16.msra.mxu0 %v2610
        %2642 = vmatprep.subr.bf16.mxu0 0
        %2643 = vmatpush2.bf16.msra.mxu0 0
        %2644 = vmatprep.subr.bf16.mxu0 0
        %2645 = vmatpush2.bf16.msra.mxu0 0
        %2646 = vmatprep.subr.bf16.mxu0 0
        %2647 = vmatpush2.bf16.msra.mxu0 0
        %2648 = vmatprep.subr.bf16.mxu0 0
        %2649 = vmatpush2.bf16.msra.mxu0 0
        %2650 = vmatprep.subr.bf16.mxu0 0
        %2651 = vmatpush2.bf16.msra.mxu0 0
        %2652 = vmatprep.subr.bf16.mxu0 0
        %2653 = vmatpush2.bf16.msra.mxu0 0
        %2654 = vmatprep.subr.bf16.mxu0 0
        %2655 = vmatpush2.bf16.msra.mxu0 0
        %2656 = vmatprep.subr.bf16.mxu0 0
        %2657 = vmatpush2.bf16.msra.mxu0 0
        %2658 = vmatprep.mubr.bf16.mxu0 0
        %2659 = vmatmul.mubr.bf16.gmra.mxu0 %v2572
        %v2660 = vpop.f32.mrf.mxu0
        %v2661 = vadd.f32 %v2577, %v2660
        %v2662 = vpop.f32.mrf.mxu0
        %v2663 = vpop.f32.mrf.mxu0
        %v2664 = vpop.f32.mrf.mxu0
        %2665 = vdwg.mxu0
        %v2666 = vmul.f32 %v2661, %v2661
        %v2667 = vmul.f32 %v2661, %v2666
        %v2668 = vmul.f32 %v2667, 0.044715
        %v2669 = vadd.f32 %v2661, %v2668
        %v2670 = vmul.f32 %v2669, 0.7978846
        %v2671 = vtanh.pop %v2670
        %v2672 = vadd.f32 %v2671, 1.0
        %v2673 = vmul.f32 %v2672, 0.5
        %v2674 = vmul.f32 %v2661, %v2673
        %v2675 = vld [vmem:[#allocation4 + $0x3c0] sm:$0xf]
        %v2676 = vld [vmem:[#allocation4 + $0x3c4] sm:$0xf]
        %v2677 = vld [vmem:[#allocation4 + $0x3c8] sm:$0xf]
        %v2678 = vld [vmem:[#allocation4 + $0x3cc] sm:$0xf]
        %v2679 = vld [vmem:[#allocation4 + $0x3d0] sm:$0xf]
        %v2680 = vld [vmem:[#allocation4 + $0x3d4] sm:$0xf]
        %v2681 = vld [vmem:[#allocation4 + $0x3d8] sm:$0xf]
        %v2682 = vld [vmem:[#allocation4 + $0x3dc] sm:$0xf]
        %v2683 = vld [vmem:[#allocation4 + $0x3e0] sm:$0xf]
        %v2684 = vld [vmem:[#allocation4 + $0x3e4] sm:$0xf]
        %v2685 = vld [vmem:[#allocation4 + $0x3e8] sm:$0xf]
        %v2686 = vld [vmem:[#allocation4 + $0x3ec] sm:$0xf]
        %v2687 = vld [vmem:[#allocation4 + $0x3f0] sm:$0xf]
        %v2688 = vld [vmem:[#allocation4 + $0x3f4] sm:$0xf]
        %v2689 = vld [vmem:[#allocation4 + $0x3f8] sm:$0xf]
        %v2690 = vld [vmem:[#allocation4 + $0x3fc] sm:$0xf]
        %v2691 = vpack.c.bf16 %v2674, %v2674
        %v2692 = vld [vmem:[%s5 + $0x1b] sm:$0x1]
        %v2693 = vlaneseq
        %v2694 = vshrl.u32 %v2693, 7
        %v2695 = vsub.s32 0, %v2694
        %v2696 = vrot.slane %v2692, %v2695
        %v2713 = vunpack.c.l.b16 %v2675
        %v2714 = vunpack.c.l.b16 %v2676
        %v2715 = vunpack.c.l.b16 %v2677
        %v2716 = vunpack.c.l.b16 %v2678
        %v2717 = vunpack.c.l.b16 %v2679
        %v2718 = vunpack.c.l.b16 %v2680
        %v2719 = vunpack.c.l.b16 %v2681
        %v2720 = vunpack.c.l.b16 %v2682
        %v2721 = vunpack.c.l.b16 %v2683
        %v2722 = vunpack.c.l.b16 %v2684
        %v2723 = vunpack.c.l.b16 %v2685
        %v2724 = vunpack.c.l.b16 %v2686
        %v2725 = vunpack.c.l.b16 %v2687
        %v2726 = vunpack.c.l.b16 %v2688
        %v2727 = vunpack.c.l.b16 %v2689
        %v2728 = vunpack.c.l.b16 %v2690
        %v2729 = vpack.c.b16 %v2714, %v2713
        %v2730 = vpack.c.b16 %v2716, %v2715
        %v2731 = vpack.c.b16 %v2718, %v2717
        %v2732 = vpack.c.b16 %v2720, %v2719
        %v2733 = vpack.c.b16 %v2722, %v2721
        %v2734 = vpack.c.b16 %v2724, %v2723
        %v2735 = vpack.c.b16 %v2726, %v2725
        %v2736 = vpack.c.b16 %v2728, %v2727
        %2745 = vmatprep.subr.bf16.mxu0 0
        %2746 = vmatpush1.bf16.msra.mxu0 %v2736
        %2747 = vmatprep.subr.bf16.mxu0 0
        %2748 = vmatpush1.bf16.msra.mxu0 %v2735
        %2749 = vmatprep.subr.bf16.mxu0 0
        %2750 = vmatpush1.bf16.msra.mxu0 %v2734
        %2751 = vmatprep.subr.bf16.mxu0 0
        %2752 = vmatpush1.bf16.msra.mxu0 %v2733
        %2753 = vmatprep.subr.bf16.mxu0 0
        %2754 = vmatpush1.bf16.msra.mxu0 %v2732
        %2755 = vmatprep.subr.bf16.mxu0 0
        %2756 = vmatpush1.bf16.msra.mxu0 %v2731
        %2757 = vmatprep.subr.bf16.mxu0 0
        %2758 = vmatpush1.bf16.msra.mxu0 %v2730
        %2759 = vmatprep.subr.bf16.mxu0 0
        %2760 = vmatpush1.bf16.msra.mxu0 %v2729
        %2761 = vmatprep.subr.bf16.mxu0 0
        %2762 = vmatpush2.bf16.msra.mxu0 0
        %2763 = vmatprep.subr.bf16.mxu0 0
        %2764 = vmatpush2.bf16.msra.mxu0 0
        %2765 = vmatprep.subr.bf16.mxu0 0
        %2766 = vmatpush2.bf16.msra.mxu0 0
        %2767 = vmatprep.subr.bf16.mxu0 0
        %2768 = vmatpush2.bf16.msra.mxu0 0
        %2769 = vmatprep.subr.bf16.mxu0 0
        %2770 = vmatpush2.bf16.msra.mxu0 0
        %2771 = vmatprep.subr.bf16.mxu0 0
        %2772 = vmatpush2.bf16.msra.mxu0 0
        %2773 = vmatprep.subr.bf16.mxu0 0
        %2774 = vmatpush2.bf16.msra.mxu0 0
        %2775 = vmatprep.subr.bf16.mxu0 0
        %2776 = vmatpush2.bf16.msra.mxu0 0
        %2777 = vmatprep.mubr.bf16.mxu0 0
        %2778 = vmatmul.mubr.bf16.gmra.mxu0 %v2691
        %v2779 = vpop.f32.mrf.mxu0
        %v2780 = vadd.f32 %v2696, %v2779
        %v2781 = vpop.f32.mrf.mxu0
        %v2782 = vpop.f32.mrf.mxu0
        %v2783 = vpop.f32.mrf.mxu0
        %2784 = vdwg.mxu0
        %v2785 = vadd.f32 %v2555, %v2780
        %v2786 = vld [vmem:[%s5 + $0x1c] sm:$0x1]
        %v2787 = vld [vmem:[%s5 + $0x1d] sm:$0x1]
        %2788 = vadd.xlane.f32.xlu0 %v2785
        %v2789 = vpop.xlane.xlu0 %2788
        %v2790 = vmul.f32 %v2789, 0.03125
        %v2791 = vsub.f32 %v2785, %v2790
        %v2792 = vmul.f32 %v2791, %v277
        %v2793 = vmul.f32 %v2792, %v2792
        %2794 = vadd.xlane.f32.xlu0 %v2793
        %v2795 = vpop.xlane.xlu0 %2794
        %v2796 = vmul.f32 %v2795, 0.03125
        %v2797 = vadd.f32 %v2796, 1e-05
        %v2798 = vrsqrt.pop %v2797
        %v2799 = vmul.f32 %v2792, %v2798
        %v2800 = vlaneseq
        %v2801 = vshrl.u32 %v2800, 7
        %v2802 = vsub.s32 0, %v2801
        %v2803 = vrot.slane %v2786, %v2802
        %v2804 = vmul.f32 %v2799, %v2803
        %v2805 = vlaneseq
        %v2806 = vshrl.u32 %v2805, 7
        %v2807 = vsub.s32 0, %v2806
        %v2808 = vrot.slane %v2787, %v2807
        %v2809 = vadd.f32 %v2804, %v2808
        %v2810 = vld [vmem:[#allocation4 + $0x400] sm:$0xf]
        %v2811 = vld [vmem:[#allocation4 + $0x404] sm:$0xf]
        %v2812 = vld [vmem:[#allocation4 + $0x408] sm:$0xf]
        %v2813 = vld [vmem:[#allocation4 + $0x40c] sm:$0xf]
        %v2814 = vld [vmem:[#allocation4 + $0x410] sm:$0xf]
        %v2815 = vld [vmem:[#allocation4 + $0x414] sm:$0xf]
        %v2816 = vld [vmem:[#allocation4 + $0x418] sm:$0xf]
        %v2817 = vld [vmem:[#allocation4 + $0x41c] sm:$0xf]
        %v2818 = vld [vmem:[#allocation4 + $0x420] sm:$0xf]
        %v2819 = vld [vmem:[#allocation4 + $0x424] sm:$0xf]
        %v2820 = vld [vmem:[#allocation4 + $0x428] sm:$0xf]
        %v2821 = vld [vmem:[#allocation4 + $0x42c] sm:$0xf]
        %v2822 = vld [vmem:[#allocation4 + $0x430] sm:$0xf]
        %v2823 = vld [vmem:[#allocation4 + $0x434] sm:$0xf]
        %v2824 = vld [vmem:[#allocation4 + $0x438] sm:$0xf]
        %v2825 = vld [vmem:[#allocation4 + $0x43c] sm:$0xf]
        %v2826 = vpack.c.bf16 %v2809, %v2809
        %v2827 = vld [vmem:[%s5 + $0x1e] sm:$0x1]
        %v2828 = vlaneseq
        %v2829 = vshrl.u32 %v2828, 7
        %v2830 = vsub.s32 0, %v2829
        %v2831 = vrot.slane %v2827, %v2830
        %v2848 = vunpack.c.l.b16 %v2810
        %v2849 = vunpack.c.l.b16 %v2811
        %v2850 = vunpack.c.l.b16 %v2812
        %v2851 = vunpack.c.l.b16 %v2813
        %v2852 = vunpack.c.l.b16 %v2814
        %v2853 = vunpack.c.l.b16 %v2815
        %v2854 = vunpack.c.l.b16 %v2816
        %v2855 = vunpack.c.l.b16 %v2817
        %v2856 = vunpack.c.l.b16 %v2818
        %v2857 = vunpack.c.l.b16 %v2819
        %v2858 = vunpack.c.l.b16 %v2820
        %v2859 = vunpack.c.l.b16 %v2821
        %v2860 = vunpack.c.l.b16 %v2822
        %v2861 = vunpack.c.l.b16 %v2823
        %v2862 = vunpack.c.l.b16 %v2824
        %v2863 = vunpack.c.l.b16 %v2825
        %v2864 = vpack.c.b16 %v2849, %v2848
        %v2865 = vpack.c.b16 %v2851, %v2850
        %v2866 = vpack.c.b16 %v2853, %v2852
        %v2867 = vpack.c.b16 %v2855, %v2854
        %v2868 = vpack.c.b16 %v2857, %v2856
        %v2869 = vpack.c.b16 %v2859, %v2858
        %v2870 = vpack.c.b16 %v2861, %v2860
        %v2871 = vpack.c.b16 %v2863, %v2862
        %2880 = vmatprep.subr.bf16.mxu0 0
        %2881 = vmatpush1.bf16.msra.mxu0 %v2871
        %2882 = vmatprep.subr.bf16.mxu0 0
        %2883 = vmatpush1.bf16.msra.mxu0 %v2870
        %2884 = vmatprep.subr.bf16.mxu0 0
        %2885 = vmatpush1.bf16.msra.mxu0 %v2869
        %2886 = vmatprep.subr.bf16.mxu0 0
        %2887 = vmatpush1.bf16.msra.mxu0 %v2868
        %2888 = vmatprep.subr.bf16.mxu0 0
        %2889 = vmatpush1.bf16.msra.mxu0 %v2867
        %2890 = vmatprep.subr.bf16.mxu0 0
        %2891 = vmatpush1.bf16.msra.mxu0 %v2866
        %2892 = vmatprep.subr.bf16.mxu0 0
        %2893 = vmatpush1.bf16.msra.mxu0 %v2865
        %2894 = vmatprep.subr.bf16.mxu0 0
        %2895 = vmatpush1.bf16.msra.mxu0 %v2864
        %2896 = vmatprep.subr.bf16.mxu0 0
        %2897 = vmatpush2.bf16.msra.mxu0 0
        %2898 = vmatprep.subr.bf16.mxu0 0
        %2899 = vmatpush2.bf16.msra.mxu0 0
        %2900 = vmatprep.subr.bf16.mxu0 0
        %2901 = vmatpush2.bf16.msra.mxu0 0
        %2902 = vmatprep.subr.bf16.mxu0 0
        %2903 = vmatpush2.bf16.msra.mxu0 0
        %2904 = vmatprep.subr.bf16.mxu0 0
        %2905 = vmatpush2.bf16.msra.mxu0 0
        %2906 = vmatprep.subr.bf16.mxu0 0
        %2907 = vmatpush2.bf16.msra.mxu0 0
        %2908 = vmatprep.subr.bf16.mxu0 0
        %2909 = vmatpush2.bf16.msra.mxu0 0
        %2910 = vmatprep.subr.bf16.mxu0 0
        %2911 = vmatpush2.bf16.msra.mxu0 0
        %2912 = vmatprep.mubr.bf16.mxu0 0
        %2913 = vmatmul.mubr.bf16.gmra.mxu0 %v2826
        %v2914 = vpop.f32.mrf.mxu0
        %v2915 = vadd.f32 %v2831, %v2914
        %v2916 = vpop.f32.mrf.mxu0
        %v2917 = vpop.f32.mrf.mxu0
        %v2918 = vpop.f32.mrf.mxu0
        %2919 = vdwg.mxu0
        %v2920 = vtanh.pop %v2915
        %v2921 = vld [vmem:[#allocation4 + $0x440] sm:$0xf]
        %v2922 = vld [vmem:[#allocation4 + $0x444] sm:$0xf]
        %v2923 = vld [vmem:[#allocation4 + $0x448] sm:$0xf]
        %v2924 = vld [vmem:[#allocation4 + $0x44c] sm:$0xf]
        %v2925 = vld [vmem:[#allocation4 + $0x450] sm:$0xf]
        %v2926 = vld [vmem:[#allocation4 + $0x454] sm:$0xf]
        %v2927 = vld [vmem:[#allocation4 + $0x458] sm:$0xf]
        %v2928 = vld [vmem:[#allocation4 + $0x45c] sm:$0xf]
        %v2929 = vld [vmem:[#allocation4 + $0x460] sm:$0xf]
        %v2930 = vld [vmem:[#allocation4 + $0x464] sm:$0xf]
        %v2931 = vld [vmem:[#allocation4 + $0x468] sm:$0xf]
        %v2932 = vld [vmem:[#allocation4 + $0x46c] sm:$0xf]
        %v2933 = vld [vmem:[#allocation4 + $0x470] sm:$0xf]
        %v2934 = vld [vmem:[#allocation4 + $0x474] sm:$0xf]
        %v2935 = vld [vmem:[#allocation4 + $0x478] sm:$0xf]
        %v2936 = vld [vmem:[#allocation4 + $0x47c] sm:$0xf]
        %v2937 = vpack.c.bf16 %v2920, %v2920
        %v2938 = vld [vmem:[%s5 + $0x1f] sm:$0x1]
        %v2939 = vlaneseq
        %v2940 = vshrl.u32 %v2939, 7
        %v2941 = vsub.s32 0, %v2940
        %v2942 = vrot.slane %v2938, %v2941
        %v2959 = vunpack.c.l.b16 %v2921
        %v2960 = vunpack.c.l.b16 %v2922
        %v2961 = vunpack.c.l.b16 %v2923
        %v2962 = vunpack.c.l.b16 %v2924
        %v2963 = vunpack.c.l.b16 %v2925
        %v2964 = vunpack.c.l.b16 %v2926
        %v2965 = vunpack.c.l.b16 %v2927
        %v2966 = vunpack.c.l.b16 %v2928
        %v2967 = vunpack.c.l.b16 %v2929
        %v2968 = vunpack.c.l.b16 %v2930
        %v2969 = vunpack.c.l.b16 %v2931
        %v2970 = vunpack.c.l.b16 %v2932
        %v2971 = vunpack.c.l.b16 %v2933
        %v2972 = vunpack.c.l.b16 %v2934
        %v2973 = vunpack.c.l.b16 %v2935
        %v2974 = vunpack.c.l.b16 %v2936
        %v2975 = vpack.c.b16 %v2960, %v2959
        %v2976 = vpack.c.b16 %v2962, %v2961
        %v2977 = vpack.c.b16 %v2964, %v2963
        %v2978 = vpack.c.b16 %v2966, %v2965
        %v2979 = vpack.c.b16 %v2968, %v2967
        %v2980 = vpack.c.b16 %v2970, %v2969
        %v2981 = vpack.c.b16 %v2972, %v2971
        %v2982 = vpack.c.b16 %v2974, %v2973
        %2991 = vmatprep.subr.bf16.mxu0 0
        %2992 = vmatpush1.bf16.msra.mxu0 %v2982
        %2993 = vmatprep.subr.bf16.mxu0 0
        %2994 = vmatpush1.bf16.msra.mxu0 %v2981
        %2995 = vmatprep.subr.bf16.mxu0 0
        %2996 = vmatpush1.bf16.msra.mxu0 %v2980
        %2997 = vmatprep.subr.bf16.mxu0 0
        %2998 = vmatpush1.bf16.msra.mxu0 %v2979
        %2999 = vmatprep.subr.bf16.mxu0 0
        %3000 = vmatpush1.bf16.msra.mxu0 %v2978
        %3001 = vmatprep.subr.bf16.mxu0 0
        %3002 = vmatpush1.bf16.msra.mxu0 %v2977
        %3003 = vmatprep.subr.bf16.mxu0 0
        %3004 = vmatpush1.bf16.msra.mxu0 %v2976
        %3005 = vmatprep.subr.bf16.mxu0 0
        %3006 = vmatpush1.bf16.msra.mxu0 %v2975
        %3007 = vmatprep.subr.bf16.mxu0 0
        %3008 = vmatpush2.bf16.msra.mxu0 0
        %3009 = vmatprep.subr.bf16.mxu0 0
        %3010 = vmatpush2.bf16.msra.mxu0 0
        %3011 = vmatprep.subr.bf16.mxu0 0
        %3012 = vmatpush2.bf16.msra.mxu0 0
        %3013 = vmatprep.subr.bf16.mxu0 0
        %3014 = vmatpush2.bf16.msra.mxu0 0
        %3015 = vmatprep.subr.bf16.mxu0 0
        %3016 = vmatpush2.bf16.msra.mxu0 0
        %3017 = vmatprep.subr.bf16.mxu0 0
        %3018 = vmatpush2.bf16.msra.mxu0 0
        %3019 = vmatprep.subr.bf16.mxu0 0
        %3020 = vmatpush2.bf16.msra.mxu0 0
        %3021 = vmatprep.subr.bf16.mxu0 0
        %3022 = vmatpush2.bf16.msra.mxu0 0
        %3023 = vmatprep.mubr.bf16.mxu0 0
        %3024 = vmatmul.mubr.bf16.gmra.mxu0 %v2937
        %v3025 = vpop.f32.mrf.mxu0
        %v3026 = vadd.f32 %v2942, %v3025
        %v3027 = vpop.f32.mrf.mxu0
        %v3028 = vpop.f32.mrf.mxu0
        %v3029 = vpop.f32.mrf.mxu0
        %3030 = vdwg.mxu0
        %v3031 = vmax.f32 %v3026, 0.0
        %s3032 = sld [smem:[#allocation3 + %s27]]
        %v3033 = vstv %s3032
        %vm3034 = vcmp.eq.s32.totalorder %v279, %v3033
        %v3035 = vsel %vm3034, 1, 0
        %v3036 = vcvt.s32.f32 %v3035
        %v3037 = vmul.f32 %v3031, %v3036
        %v3038 = vrot.slane %v3037, 4
        %v3039 = vadd.f32 %v3037, %v3038
        %v3040 = vrot.slane %v3039, 2
        %v3041 = vadd.f32 %v3039, %v3040
        %v3042 = vrot.slane %v3041, 1
        %v3043 = vadd.f32 %v3041, %v3042
        %3044 = vst [vmem:[%s260] sm:$0x1] %v3043
        %s3045 = sand.u32 %s155, 1
        %s3046 = scalar_lea.sflag [#allocation6], %s3045
        %s3047 = sand.u32 %s155, 1
        %s3048 = scalar_lea.vmem [#allocation7], %s3047
        // Predicated region
        $region45: #{lsg_bart_eval_forward.1} parent=39 // pred_check
          %p3049 = pneg %p165
        $region46: #{lsg_bart_eval_forward.1} parent=39 // pred_check_branch
          %3051 = sbr.rel (%p3049) target = $region48
        $region47: #{lsg_bart_eval_forward.1} parent=39 // pred_region
          %s3053 = ssub.s32 16, 16
          %3054 = vsyncadd %s3046, %s3053
          %s3055 = smul.addr %s27, 16
          %s3056 = scalar_lea.hbm %s6, %s3055
          %s3058 = sshll.u32 %s3048, 4
          %s3059 = int_to_ptr.vmem [resolvable:$true] %s3058
          %3061 = dma.vmem_to_hbm [thread:$0]  %s3059, 16, %s3056, %s3046
        $region48: #{lsg_bart_eval_forward.1} parent=39 // pred_fallthru
          _
      $region40: #{lsg_bart_eval_forward.1} parent=5 // pred_fallthru
        _
      %p3062 = scmp.le.s32.totalorder 2, %s22
      // Predicated region
      $region49: #{lsg_bart_eval_forward.1} parent=5 // pred_check
        %p3063 = pneg %p3062
      $region50: #{lsg_bart_eval_forward.1} parent=5 // pred_check_branch
        %3065 = sbr.rel (%p3063) target = $region52
      $region51: #{lsg_bart_eval_forward.1} parent=5 // pred_region
        %s3066 = ssub.s32 %s22, 2
        // Predicated region
        $region53: #{lsg_bart_eval_forward.1} parent=51 // pred_check
          %p3067 = pneg %p171
        $region54: #{lsg_bart_eval_forward.1} parent=51 // pred_check_branch
          %3069 = sbr.rel (%p3067) target = $region56
        $region55: #{lsg_bart_eval_forward.1} parent=51 // pred_region
          %s3070 = sand.u32 %s156, 1
          %s3071 = scalar_lea.sflag [#allocation6], %s3070
          %s3072 = sand.u32 %s156, 1
          %s3073 = scalar_lea.vmem [#allocation7], %s3072
          %3074 = dma.done %s3071, 16
        $region56: #{lsg_bart_eval_forward.1} parent=51 // pred_fallthru
          _
      $region52: #{lsg_bart_eval_forward.1} parent=5 // pred_fallthru
        _
    $region6: #{lsg_bart_eval_forward.1} parent=1 // loop_footer
      %s26 = sadd.s32 1, %s22
    $region7: #{lsg_bart_eval_forward.1} parent=1 // loop_footer_branch
      %21 = sbr.rel target = $region3
    $region8: #{lsg_bart_eval_forward.1} parent=1 // loop_exit
      _
    %3075 = vsyncpa [#allocation5], 1
    %s3076 = scalar_lea.sflag [#allocation5], 1
    %3077 = vsyncpa %s3076, 1
    %3078 = vsyncpa [#allocation6], 1
    %s3079 = scalar_lea.sflag [#allocation6], 1
    %3080 = vsyncpa %s3079, 1

</llo_original>
